<compile_context>
chip_gen: v7x
topology: tpu7x:2x2x1
jax: 0.10.0
libtpu: 0.0.40
codegen_flags: <defaults>
</compile_context>

<pallas_src>
import functools

import jax
import jax.numpy as jnp
from jax.experimental import pallas as pl
from jax.experimental.pallas import tpu as pltpu


LANE = 128                        # pad channel dims to multiples of the lane width
VMEM_LIMIT = 32 * 1024 * 1024     # safe on v5e/v6e/v7x (v7x has 64 MiB physical)


def _round_up(v, m):
    return -(-v // m) * m


def _pick_tile(dim, cap=512):
    """Row/col tile: full extent when small (always legal: block == array dim),
    otherwise the 512 cap (85%+ of HBM roofline measured at 512-row tiles)."""
    return dim if dim <= cap else cap


def _pick_rows_tile(ho, wo, cop, acc_budget=1 << 20):
    """Largest divisor of ho keeping the per-band f32 accumulator under budget
    (exact division -> no ragged row bands, no clamping concerns)."""
    max_rows = max(1, acc_budget // (wo * cop * 4))
    rt = 1
    for d in range(1, ho + 1):
        if ho % d == 0 and d <= max_rows:
            rt = d
    return rt


def _compiler_params(sems):
    return pltpu.CompilerParams(dimension_semantics=sems,
                                vmem_limit_bytes=VMEM_LIMIT)


# -----------------------------------------------------------------------------
# Fused 1x1-conv matmul kernels (BN scale pre-folded into the weight columns)
# -----------------------------------------------------------------------------
def _mm_kernel(x_ref, w_ref, shift_ref, o_ref, *, relu):
    acc = jnp.dot(x_ref[...], w_ref[...], preferred_element_type=jnp.float32)
    acc = acc + shift_ref[...]
    if relu:
        acc = jnp.maximum(acc, 0.0)
    o_ref[...] = acc.astype(o_ref.dtype)


def _mm_res_kernel(x_ref, w_ref, shift_ref, res_ref, o_ref, *, relu):
    acc = jnp.dot(x_ref[...], w_ref[...], preferred_element_type=jnp.float32)
    acc = acc + shift_ref[...] + res_ref[...].astype(jnp.float32)
    if relu:
        acc = jnp.maximum(acc, 0.0)
    o_ref[...] = acc.astype(o_ref.dtype)


def _mm2_kernel(x1_ref, w1_ref, x2_ref, w2_ref, shift_ref, o_ref, *, relu):
    acc = jnp.dot(x1_ref[...], w1_ref[...], preferred_element_type=jnp.float32)
    acc = acc + jnp.dot(x2_ref[...], w2_ref[...], preferred_element_type=jnp.float32)
    acc = acc + shift_ref[...]
    if relu:
        acc = jnp.maximum(acc, 0.0)
    o_ref[...] = acc.astype(o_ref.dtype)


def matmul_bn_act(x, w, shift, residual=None, relu=True, out_dtype=jnp.bfloat16):
    """(M,K)@(K,N) + shift (+ residual) (+ relu).  bf16 operands, f32 accumulate."""
    M, K = x.shape
    _, N = w.shape
    tm = _pick_tile(M)
    tn = _pick_tile(N)
    grid = (pl.cdiv(M, tm), pl.cdiv(N, tn))
    shift2 = shift.reshape(1, N).astype(jnp.float32)

    in_specs = [pl.BlockSpec((tm, K), lambda i, j: (i, 0)),   # activation tile
                pl.BlockSpec((K, tn), lambda i, j: (0, j)),   # weight columns
                pl.BlockSpec((1, tn), lambda i, j: (0, j))]   # BN shift
    args = [x, w, shift2]
    if residual is not None:
        in_specs.append(pl.BlockSpec((tm, tn), lambda i, j: (i, j)))
        args.append(residual)
        kernel = functools.partial(_mm_res_kernel, relu=relu)
    else:
        kernel = functools.partial(_mm_kernel, relu=relu)

    return pl.pallas_call(
        kernel,
        out_shape=jax.ShapeDtypeStruct((M, N), out_dtype),
        grid_spec=pltpu.PrefetchScalarGridSpec(
            num_scalar_prefetch=0, grid=grid, in_specs=in_specs,
            out_specs=pl.BlockSpec((tm, tn), lambda i, j: (i, j))),
        compiler_params=_compiler_params(("parallel", "parallel")),
    )(*args)


def dual_matmul_bn_relu(x1, w1, x2, w2, shift, out_dtype=jnp.bfloat16):
    """relu(x1@w1 + x2@w2 + shift): conv3+bn3 fused with the conv-shortcut branch.
    N-tiled so per-step VMEM stays small even on v7x (64 MiB physical)."""
    M, K1 = x1.shape
    _, N = w1.shape
    K2 = x2.shape[1]
    tm = _pick_tile(M)
    tn = _pick_tile(N)
    grid = (pl.cdiv(M, tm), pl.cdiv(N, tn))
    shift2 = shift.reshape(1, N).astype(jnp.float32)
    return pl.pallas_call(
        functools.partial(_mm2_kernel, relu=True),
        out_shape=jax.ShapeDtypeStruct((M, N), out_dtype),
        grid_spec=pltpu.PrefetchScalarGridSpec(
            num_scalar_prefetch=0, grid=grid,
            in_specs=[pl.BlockSpec((tm, K1), lambda i, j: (i, 0)),
                      pl.BlockSpec((K1, tn), lambda i, j: (0, j)),
                      pl.BlockSpec((tm, K2), lambda i, j: (i, 0)),
                      pl.BlockSpec((K2, tn), lambda i, j: (0, j)),
                      pl.BlockSpec((1, tn), lambda i, j: (0, j))],
            out_specs=pl.BlockSpec((tm, tn), lambda i, j: (i, j))),
        compiler_params=_compiler_params(("parallel", "parallel")),
    )(x1, w1, x2, w2, shift2)


# -----------------------------------------------------------------------------
# Fused 3x3 conv + BN + ReLU kernel — no im2col materialization in HBM.
# The wrapper space-to-depths the (spatially padded) input by the stride; the
# kernel processes one output-row band per grid step, slicing the 9 tap windows
# straight out of the resident s2d image ref and accumulating 9 bf16 MXU dots
# into an f32 band accumulator.
# -----------------------------------------------------------------------------
def _conv3x3_kernel(x_ref, w_ref, shift_ref, o_ref, *, s, rows, wo):
    # x_ref : (s*s, ht, wt, cin_p) bf16   (full s2d image, resident across bands)
    # w_ref : (9, cin_p, cout_p)  bf16    (tap-major, BN scale folded in)
    # o_ref : (1, rows, wo, cout_p) bf16
    cin = x_ref.shape[-1]
    cop = o_ref.shape[-1]
    r0 = pl.program_id(1) * rows
    acc = None
    for dh in range(3):
        for dw in range(3):
            ph, ih = dh % s, dh // s
            pw, iw = dw % s, dw // s
            xt = x_ref[ph * s + pw, pl.ds(r0 + ih, rows), pl.ds(iw, wo), :]
            d = jnp.dot(xt.reshape(rows * wo, cin), w_ref[dh * 3 + dw],
                        preferred_element_type=jnp.float32)
            acc = d if acc is None else acc + d
    acc = acc + shift_ref[...]
    acc = jnp.maximum(acc, 0.0)
    o_ref[0] = acc.reshape(rows, wo, cop).astype(o_ref.dtype)


def conv3x3_bn_relu(x, w9, shift, stride):
    """3x3 conv (pad=1, stride) + BN shift + ReLU.
    x: (n, h, w, cin_p) bf16  ->  (n, ho, wo, cout_p) bf16."""
    n, h, w, cp = x.shape
    cop = w9.shape[-1]
    s = stride
    ho = (h - 1) // s + 1
    wo = (w - 1) // s + 1
    hp = _round_up(h + 2, s)
    wp = _round_up(w + 2, s)
    ht, wt = hp // s, wp // s

    xp = jnp.pad(x, ((0, 0), (1, hp - h - 1), (1, wp - w - 1), (0, 0)))
    # space-to-depth by the stride: xs[n, ph*s+pw, i, j, c] = xp[n, s*i+ph, s*j+pw, c]
    xs = xp.reshape(n, ht, s, wt, s, cp).transpose(0, 2, 4, 1, 3, 5)
    xs = xs.reshape(n * s * s, ht, wt, cp)

    rows = _pick_rows_tile(ho, wo, cop)
    nb = ho // rows
    shift2 = shift.reshape(1, cop).astype(jnp.float32)
    kernel = functools.partial(_conv3x3_kernel, s=s, rows=rows, wo=wo)
    return pl.pallas_call(
        kernel,
        out_shape=jax.ShapeDtypeStruct((n, ho, wo, cop), jnp.bfloat16),
        grid_spec=pltpu.PrefetchScalarGridSpec(
            num_scalar_prefetch=0,
            grid=(n, nb),
            in_specs=[
                # full s2d image per batch element; constant across the band axis
                pl.BlockSpec((s * s, ht, wt, cp), lambda b, r: (b, 0, 0, 0)),
                pl.BlockSpec((9, cp, cop), lambda b, r: (0, 0, 0)),
                pl.BlockSpec((1, cop), lambda b, r: (0, 0)),
            ],
            out_specs=pl.BlockSpec((1, rows, wo, cop), lambda b, r: (b, r, 0, 0)),
        ),
        compiler_params=_compiler_params(("parallel", "parallel")),
    )(xs, w9, shift2)


# -----------------------------------------------------------------------------
# Bottleneck forward (NCHW in / NCHW out)
# -----------------------------------------------------------------------------
def bottleneck_forward(x_nchw, params, *, stride, out_channels):
    p = params
    n, c, h, w = x_nchw.shape
    cin_p = p["w1"].shape[0]
    planes_p = p["w1"].shape[1]
    cout_p = p["w3"].shape[1]

    # single entry transform: NHWC, bf16, channels zero-padded to a lane multiple
    x = jnp.transpose(x_nchw, (0, 2, 3, 1)).astype(jnp.bfloat16)
    if cin_p > c:
        x = jnp.pad(x, ((0, 0), (0, 0), (0, 0), (0, cin_p - c)))

    # conv1 (1x1) + bn1 + relu
    out = matmul_bn_act(x.reshape(n * h * w, cin_p), p["w1"], p["b1"], relu=True)
    out = out.reshape(n, h, w, planes_p)

    # conv2 (3x3, stride, pad=1) + bn2 + relu
    ho = (h - 1) // stride + 1
    wo = (w - 1) // stride + 1
    out = conv3x3_bn_relu(out, p["w2"], p["b2"], stride)        # (n, ho, wo, planes_p)
    out2d = out.reshape(n * ho * wo, planes_p)

    # conv3 (1x1) + bn3 + shortcut + add + relu  (bf16 writeback)
    if "ws" in p:
        # TODO(synk): the strided shortcut subsample remains one small XLA slice;
        # folding it into the kernel would need strided in-kernel loads.
        xs_sub = x[:, ::stride, ::stride, :] if stride > 1 else x
        out2d = dual_matmul_bn_relu(out2d, p["w3"],
                                    xs_sub.reshape(n * ho * wo, cin_p), p["ws"],
                                    p["b3"] + p["bs"])
    else:
        # identity shortcut: only valid when stride==1 and channels already match
        assert stride == 1 and cin_p == cout_p
        out2d = matmul_bn_act(out2d, p["w3"], p["b3"],
                              residual=x.reshape(n * h * w, cin_p), relu=True)

    out = out2d.reshape(n, ho, wo, cout_p)[..., :out_channels]
    return jnp.transpose(out, (0, 3, 1, 2))                     # back to NCHW


# -----------------------------------------------------------------------------
# Deterministic parameters (PyTorch shapes; eval-mode BN folded; scale folded
# into weights; channels zero-padded to lane-dense multiples of 128; bf16)
# -----------------------------------------------------------------------------
def _bn_fold(key, ch, eps=1e-5):
    k1, k2, k3, k4 = jax.random.split(key, 4)
    gamma = jax.random.uniform(k1, (ch,), minval=0.5, maxval=1.5)
    beta = 0.1 * jax.random.normal(k2, (ch,))
    rmean = 0.1 * jax.random.normal(k3, (ch,))
    rvar = jax.random.uniform(k4, (ch,), minval=0.5, maxval=1.5)
    scale = gamma / jnp.sqrt(rvar + eps)
    shift = beta - rmean * scale
    return scale, shift


def _pad2(a, r, c):
    return jnp.pad(a, ((0, r - a.shape[0]), (0, c - a.shape[1])))


def make_params(key, in_planes, planes, stride, expansion=4):
    cin_p = _round_up(in_planes, LANE)
    pln_p = _round_up(planes, LANE)
    cout_p = _round_up(expansion * planes, LANE)
    keys = jax.random.split(key, 8)

    raw = {}
    raw["c1"] = 0.1 * jax.random.normal(keys[0], (planes, in_planes, 1, 1))
    raw["c2"] = 0.1 * jax.random.normal(keys[1], (planes, planes, 3, 3))
    raw["c3"] = 0.1 * jax.random.normal(keys[2], (expansion * planes, planes, 1, 1))
    raw["s1"], raw["b1"] = _bn_fold(keys[3], planes)
    raw["s2"], raw["b2"] = _bn_fold(keys[4], planes)
    raw["s3"], raw["b3"] = _bn_fold(keys[5], expansion * planes)

    p = {}
    p["w1"] = _pad2(raw["c1"][:, :, 0, 0].T * raw["s1"][None, :],
                    cin_p, pln_p).astype(jnp.bfloat16)
    p["b1"] = jnp.pad(raw["b1"], (0, pln_p - planes)).astype(jnp.float32)

    w2 = jnp.transpose(raw["c2"], (2, 3, 1, 0)).reshape(9, planes, planes)
    w2 = w2 * raw["s2"][None, None, :]
    p["w2"] = jnp.pad(w2, ((0, 0), (0, pln_p - planes),
                           (0, pln_p - planes))).astype(jnp.bfloat16)
    p["b2"] = jnp.pad(raw["b2"], (0, pln_p - planes)).astype(jnp.float32)

    p["w3"] = _pad2(raw["c3"][:, :, 0, 0].T * raw["s3"][None, :],
                    pln_p, cout_p).astype(jnp.bfloat16)
    p["b3"] = jnp.pad(raw["b3"], (0, cout_p - expansion * planes)).astype(jnp.float32)

    if stride != 1 or in_planes != expansion * planes:
        raw["cs"] = 0.1 * jax.random.normal(
            keys[6], (expansion * planes, in_planes, 1, 1))
        raw["ss"], raw["bs"] = _bn_fold(keys[7], expansion * planes)
        p["ws"] = _pad2(raw["cs"][:, :, 0, 0].T * raw["ss"][None, :],
                        cin_p, cout_p).astype(jnp.bfloat16)
        p["bs"] = jnp.pad(raw["bs"],
                          (0, cout_p - expansion * planes)).astype(jnp.float32)
    return p, raw


# -----------------------------------------------------------------------------
# Pure-JAX reference (f32, lax.conv) to sanity-check the Pallas path
# -----------------------------------------------------------------------------
def reference_forward(x, raw, stride):
    def conv(x, w, s=1, pad=0):
        return jax.lax.conv_general_dilated(
            x, w, (s, s), [(pad, pad), (pad, pad)],
            dimension_numbers=("NCHW", "OIHW", "NCHW"),
            precision=jax.lax.Precision.HIGHEST)

    def bn(x, scale, shift):
        return x * scale[None, :, None, None] + shift[None, :, None, None]

    out = jax.nn.relu(bn(conv(x, raw["c1"]), raw["s1"], raw["b1"]))
    out = jax.nn.relu(bn(conv(out, raw["c2"], stride, 1), raw["s2"], raw["b2"]))
    out = bn(conv(out, raw["c3"]), raw["s3"], raw["b3"])
    if "cs" in raw:
        sc = bn(conv(x, raw["cs"], stride), raw["ss"], raw["bs"])
    else:
        sc = x
    return jax.nn.relu(out + sc)


if __name__ == "__main__":
    # cfg 1: stride-2 block with conv shortcut; cfg 2: stride-1 identity shortcut
    configs = [(4, 4, 2), (16, 4, 1)]
    N, H, W = 2, 16, 16

    key = jax.random.PRNGKey(0)
    for idx, (in_planes, planes, stride) in enumerate(configs):
        kx, kp, key = jax.random.split(key, 3)
        x = jax.random.normal(kx, (N, in_planes, H, W), dtype=jnp.float32)
        params, raw = make_params(kp, in_planes, planes, stride)

        fwd = jax.jit(functools.partial(bottleneck_forward, stride=stride,
                                        out_channels=4 * planes))
        out = jax.block_until_ready(fwd(x, params))
        ref = jax.block_until_ready(reference_forward(x, raw, stride))

        ho = (H - 1) // stride + 1
        wo = (W - 1) // stride + 1
        assert out.shape == ref.shape == (N, 4 * planes, ho, wo)
        # bf16 operands + bf16 output rounding vs an all-f32 HIGHEST reference
        scale = float(jnp.max(jnp.abs(ref)))
        err = float(jnp.max(jnp.abs(out.astype(jnp.float32) - ref)))
        assert err <= 3e-2 * (1.0 + scale), \
            f"cfg{idx}: max abs err = {err} (scale {scale})"
    print("KERNEL_OK")
</pallas_src>

<mosaic_0001>
module attributes {stable_mosaic.version = 11 : i64} {
  func.func @_mm_kernel(%arg0: i32, %arg1: i32, %arg2: memref<512x128xbf16, #tpu.memory_space<vmem>>, %arg3: memref<128x128xbf16, #tpu.memory_space<vmem>>, %arg4: memref<1x128xf32, #tpu.memory_space<vmem>>, %arg5: memref<512x128xbf16, #tpu.memory_space<vmem>>) attributes {dimension_semantics = [#tpu.dimension_semantics<parallel>, #tpu.dimension_semantics<parallel>], iteration_bounds = array<i64: 1, 1>, scalar_prefetch = 0 : i64, scratch_operands = 0 : i64, tpu.core_type = #tpu.core_type<tc>, window_params = [{transform_indices = @transform_0, window_bounds = array<i64: 512, 128>}, {transform_indices = @transform_1, window_bounds = array<i64: 128, 128>}, {transform_indices = @transform_2, window_bounds = array<i64: 1, 128>}, {transform_indices = @transform_3, window_bounds = array<i64: 512, 128>}]} {
    %c0 = arith.constant 0 : index
    %c0_0 = arith.constant 0 : index
    %0 = vector.load %arg2[%c0, %c0_0] : memref<512x128xbf16, #tpu.memory_space<vmem>>, vector<512x128xbf16>
    %c0_1 = arith.constant 0 : index
    %c0_2 = arith.constant 0 : index
    %1 = vector.load %arg3[%c0_1, %c0_2] : memref<128x128xbf16, #tpu.memory_space<vmem>>, vector<128x128xbf16>
    %cst = arith.constant dense<0.000000e+00> : vector<512x128xf32>
    %2 = tpu.matmul %0, %1, %cst {dimension_numbers = #tpu.dot_dimension_numbers<[1], [0], [0], [1], [0, 0, 1, 1], [], []>} : vector<512x128xbf16>, vector<128x128xbf16>, vector<512x128xf32> -> vector<512x128xf32>
    %c0_3 = arith.constant 0 : index
    %c0_4 = arith.constant 0 : index
    %3 = vector.load %arg4[%c0_3, %c0_4] : memref<1x128xf32, #tpu.memory_space<vmem>>, vector<1x128xf32>
    %4 = vector.broadcast %3 : vector<1x128xf32> to vector<512x128xf32>
    %5 = arith.addf %2, %4 : vector<512x128xf32>
    %cst_5 = arith.constant 0.000000e+00 : f32
    %6 = vector.broadcast %cst_5 : f32 to vector<512x128xf32>
    %7 = arith.maximumf %5, %6 : vector<512x128xf32>
    %8 = arith.truncf %7 : vector<512x128xf32> to vector<512x128xbf16>
    %c0_6 = arith.constant 0 : index
    %c0_7 = arith.constant 0 : index
    %9 = vector.load %arg5[%c0_6, %c0_7] : memref<512x128xbf16, #tpu.memory_space<vmem>>, vector<512x128xbf16>
    tpu.vector_store %arg5[%c0_6, %c0_7], %8 {strides = array<i32>} : memref<512x128xbf16, #tpu.memory_space<vmem>>, vector<512x128xbf16>,
    return
  }
  func.func @transform_0(%arg0: i32, %arg1: i32) -> (i32, i32) {
    %c0_i32 = arith.constant 0 : i32
    %c0_i32_0 = arith.constant 0 : i32
    return %arg0, %c0_i32 : i32, i32
  }
  func.func @transform_1(%arg0: i32, %arg1: i32) -> (i32, i32) {
    %c0_i32 = arith.constant 0 : i32
    %c0_i32_0 = arith.constant 0 : i32
    return %c0_i32, %arg1 : i32, i32
  }
  func.func @transform_2(%arg0: i32, %arg1: i32) -> (i32, i32) {
    %c0_i32 = arith.constant 0 : i32
    %c0_i32_0 = arith.constant 0 : i32
    return %c0_i32, %arg1 : i32, i32
  }
  func.func @transform_3(%arg0: i32, %arg1: i32) -> (i32, i32) {
    %c0_i32 = arith.constant 0 : i32
    return %arg0, %arg1 : i32, i32
  }
}

module attributes {stable_mosaic.version = 11 : i64} {
  func.func @_conv3x3_kernel(%arg0: i32, %arg1: i32, %arg2: memref<4x9x9x128xbf16, #tpu.memory_space<vmem>>, %arg3: memref<9x128x128xbf16, #tpu.memory_space<vmem>>, %arg4: memref<1x128xf32, #tpu.memory_space<vmem>>, %arg5: memref<1x8x8x128xbf16, #tpu.memory_space<vmem>>) attributes {dimension_semantics = [#tpu.dimension_semantics<parallel>, #tpu.dimension_semantics<parallel>], iteration_bounds = array<i64: 2, 1>, scalar_prefetch = 0 : i64, scratch_operands = 0 : i64, tpu.core_type = #tpu.core_type<tc>, window_params = [{transform_indices = @transform_0, window_bounds = array<i64: 4, 9, 9, 128>}, {pipeline_mode = #tpu.pipeline_mode<synchronous>, transform_indices = @transform_1, window_bounds = array<i64: 9, 128, 128>}, {pipeline_mode = #tpu.pipeline_mode<synchronous>, transform_indices = @transform_2, window_bounds = array<i64: 1, 128>}, {transform_indices = @transform_3, window_bounds = array<i64: 1, 8, 8, 128>}]} {
    %c8_i32 = arith.constant 8 : i32
    %0 = arith.muli %arg1, %c8_i32 : i32
    %c0_i32 = arith.constant 0 : i32
    %1 = arith.addi %0, %c0_i32 : i32
    %c0 = arith.constant 0 : index
    %2 = arith.index_cast %1 : i32 to index
    %c0_0 = arith.constant 0 : index
    %c0_1 = arith.constant 0 : index
    %3 = vector.load %arg2[%c0, %2, %c0_0, %c0_1] : memref<4x9x9x128xbf16, #tpu.memory_space<vmem>>, vector<1x8x8x128xbf16>
    %4 = vector.shape_cast %3 : vector<1x8x8x128xbf16> to vector<8x8x128xbf16>
    %5 = vector.shape_cast %4 : vector<8x8x128xbf16> to vector<64x128xbf16>
    %c0_2 = arith.constant 0 : index
    %c0_3 = arith.constant 0 : index
    %c0_4 = arith.constant 0 : index
    %6 = vector.load %arg3[%c0_2, %c0_3, %c0_4] : memref<9x128x128xbf16, #tpu.memory_space<vmem>>, vector<1x128x128xbf16>
    %7 = vector.shape_cast %6 : vector<1x128x128xbf16> to vector<128x128xbf16>
    %cst = arith.constant dense<0.000000e+00> : vector<64x128xf32>
    %8 = tpu.matmul %5, %7, %cst {dimension_numbers = #tpu.dot_dimension_numbers<[1], [0], [0], [1], [0, 0, 1, 1], [], []>} : vector<64x128xbf16>, vector<128x128xbf16>, vector<64x128xf32> -> vector<64x128xf32>
    %c0_i32_5 = arith.constant 0 : i32
    %9 = arith.addi %0, %c0_i32_5 : i32
    %c1 = arith.constant 1 : index
    %10 = arith.index_cast %9 : i32 to index
    %c0_6 = arith.constant 0 : index
    %c0_7 = arith.constant 0 : index
    %11 = vector.load %arg2[%c1, %10, %c0_6, %c0_7] : memref<4x9x9x128xbf16, #tpu.memory_space<vmem>>, vector<1x8x8x128xbf16>
    %12 = vector.shape_cast %11 : vector<1x8x8x128xbf16> to vector<8x8x128xbf16>
    %13 = vector.shape_cast %12 : vector<8x8x128xbf16> to vector<64x128xbf16>
    %c1_8 = arith.constant 1 : index
    %c0_9 = arith.constant 0 : index
    %c0_10 = arith.constant 0 : index
    %14 = vector.load %arg3[%c1_8, %c0_9, %c0_10] : memref<9x128x128xbf16, #tpu.memory_space<vmem>>, vector<1x128x128xbf16>
    %15 = vector.shape_cast %14 : vector<1x128x128xbf16> to vector<128x128xbf16>
    %cst_11 = arith.constant dense<0.000000e+00> : vector<64x128xf32>
    %16 = tpu.matmul %13, %15, %cst_11 {dimension_numbers = #tpu.dot_dimension_numbers<[1], [0], [0], [1], [0, 0, 1, 1], [], []>} : vector<64x128xbf16>, vector<128x128xbf16>, vector<64x128xf32> -> vector<64x128xf32>
    %17 = arith.addf %8, %16 : vector<64x128xf32>
    %c0_i32_12 = arith.constant 0 : i32
    %18 = arith.addi %0, %c0_i32_12 : i32
    %c0_13 = arith.constant 0 : index
    %19 = arith.index_cast %18 : i32 to index
    %c1_14 = arith.constant 1 : index
    %c0_15 = arith.constant 0 : index
    %20 = vector.load %arg2[%c0_13, %19, %c1_14, %c0_15] : memref<4x9x9x128xbf16, #tpu.memory_space<vmem>>, vector<1x8x8x128xbf16>
    %21 = vector.shape_cast %20 : vector<1x8x8x128xbf16> to vector<8x8x128xbf16>
    %22 = vector.shape_cast %21 : vector<8x8x128xbf16> to vector<64x128xbf16>
    %c2 = arith.constant 2 : index
    %c0_16 = arith.constant 0 : index
    %c0_17 = arith.constant 0 : index
    %23 = vector.load %arg3[%c2, %c0_16, %c0_17] : memref<9x128x128xbf16, #tpu.memory_space<vmem>>, vector<1x128x128xbf16>
    %24 = vector.shape_cast %23 : vector<1x128x128xbf16> to vector<128x128xbf16>
    %cst_18 = arith.constant dense<0.000000e+00> : vector<64x128xf32>
    %25 = tpu.matmul %22, %24, %cst_18 {dimension_numbers = #tpu.dot_dimension_numbers<[1], [0], [0], [1], [0, 0, 1, 1], [], []>} : vector<64x128xbf16>, vector<128x128xbf16>, vector<64x128xf32> -> vector<64x128xf32>
    %26 = arith.addf %17, %25 : vector<64x128xf32>
    %c0_i32_19 = arith.constant 0 : i32
    %27 = arith.addi %0, %c0_i32_19 : i32
    %c2_20 = arith.constant 2 : index
    %28 = arith.index_cast %27 : i32 to index
    %c0_21 = arith.constant 0 : index
    %c0_22 = arith.constant 0 : index
    %29 = vector.load %arg2[%c2_20, %28, %c0_21, %c0_22] : memref<4x9x9x128xbf16, #tpu.memory_space<vmem>>, vector<1x8x8x128xbf16>
    %30 = vector.shape_cast %29 : vector<1x8x8x128xbf16> to vector<8x8x128xbf16>
    %31 = vector.shape_cast %30 : vector<8x8x128xbf16> to vector<64x128xbf16>
    %c3 = arith.constant 3 : index
    %c0_23 = arith.constant 0 : index
    %c0_24 = arith.constant 0 : index
    %32 = vector.load %arg3[%c3, %c0_23, %c0_24] : memref<9x128x128xbf16, #tpu.memory_space<vmem>>, vector<1x128x128xbf16>
    %33 = vector.shape_cast %32 : vector<1x128x128xbf16> to vector<128x128xbf16>
    %cst_25 = arith.constant dense<0.000000e+00> : vector<64x128xf32>
    %34 = tpu.matmul %31, %33, %cst_25 {dimension_numbers = #tpu.dot_dimension_numbers<[1], [0], [0], [1], [0, 0, 1, 1], [], []>} : vector<64x128xbf16>, vector<128x128xbf16>, vector<64x128xf32> -> vector<64x128xf32>
    %35 = arith.addf %26, %34 : vector<64x128xf32>
    %c0_i32_26 = arith.constant 0 : i32
    %36 = arith.addi %0, %c0_i32_26 : i32
    %c3_27 = arith.constant 3 : index
    %37 = arith.index_cast %36 : i32 to index
    %c0_28 = arith.constant 0 : index
    %c0_29 = arith.constant 0 : index
    %38 = vector.load %arg2[%c3_27, %37, %c0_28, %c0_29] : memref<4x9x9x128xbf16, #tpu.memory_space<vmem>>, vector<1x8x8x128xbf16>
    %39 = vector.shape_cast %38 : vector<1x8x8x128xbf16> to vector<8x8x128xbf16>
    %40 = vector.shape_cast %39 : vector<8x8x128xbf16> to vector<64x128xbf16>
    %c4 = arith.constant 4 : index
    %c0_30 = arith.constant 0 : index
    %c0_31 = arith.constant 0 : index
    %41 = vector.load %arg3[%c4, %c0_30, %c0_31] : memref<9x128x128xbf16, #tpu.memory_space<vmem>>, vector<1x128x128xbf16>
    %42 = vector.shape_cast %41 : vector<1x128x128xbf16> to vector<128x128xbf16>
    %cst_32 = arith.constant dense<0.000000e+00> : vector<64x128xf32>
    %43 = tpu.matmul %40, %42, %cst_32 {dimension_numbers = #tpu.dot_dimension_numbers<[1], [0], [0], [1], [0, 0, 1, 1], [], []>} : vector<64x128xbf16>, vector<128x128xbf16>, vector<64x128xf32> -> vector<64x128xf32>
    %44 = arith.addf %35, %43 : vector<64x128xf32>
    %c0_i32_33 = arith.constant 0 : i32
    %45 = arith.addi %0, %c0_i32_33 : i32
    %c2_34 = arith.constant 2 : index
    %46 = arith.index_cast %45 : i32 to index
    %c1_35 = arith.constant 1 : index
    %c0_36 = arith.constant 0 : index
    %47 = vector.load %arg2[%c2_34, %46, %c1_35, %c0_36] : memref<4x9x9x128xbf16, #tpu.memory_space<vmem>>, vector<1x8x8x128xbf16>
    %48 = vector.shape_cast %47 : vector<1x8x8x128xbf16> to vector<8x8x128xbf16>
    %49 = vector.shape_cast %48 : vector<8x8x128xbf16> to vector<64x128xbf16>
    %c5 = arith.constant 5 : index
    %c0_37 = arith.constant 0 : index
    %c0_38 = arith.constant 0 : index
    %50 = vector.load %arg3[%c5, %c0_37, %c0_38] : memref<9x128x128xbf16, #tpu.memory_space<vmem>>, vector<1x128x128xbf16>
    %51 = vector.shape_cast %50 : vector<1x128x128xbf16> to vector<128x128xbf16>
    %cst_39 = arith.constant dense<0.000000e+00> : vector<64x128xf32>
    %52 = tpu.matmul %49, %51, %cst_39 {dimension_numbers = #tpu.dot_dimension_numbers<[1], [0], [0], [1], [0, 0, 1, 1], [], []>} : vector<64x128xbf16>, vector<128x128xbf16>, vector<64x128xf32> -> vector<64x128xf32>
    %53 = arith.addf %44, %52 : vector<64x128xf32>
    %c1_i32 = arith.constant 1 : i32
    %54 = arith.addi %0, %c1_i32 : i32
    %c0_40 = arith.constant 0 : index
    %55 = arith.index_cast %54 : i32 to index
    %c0_41 = arith.constant 0 : index
    %c0_42 = arith.constant 0 : index
    %56 = vector.load %arg2[%c0_40, %55, %c0_41, %c0_42] : memref<4x9x9x128xbf16, #tpu.memory_space<vmem>>, vector<1x8x8x128xbf16>
    %57 = vector.shape_cast %56 : vector<1x8x8x128xbf16> to vector<8x8x128xbf16>
    %58 = vector.shape_cast %57 : vector<8x8x128xbf16> to vector<64x128xbf16>
    %c6 = arith.constant 6 : index
    %c0_43 = arith.constant 0 : index
    %c0_44 = arith.constant 0 : index
    %59 = vector.load %arg3[%c6, %c0_43, %c0_44] : memref<9x128x128xbf16, #tpu.memory_space<vmem>>, vector<1x128x128xbf16>
    %60 = vector.shape_cast %59 : vector<1x128x128xbf16> to vector<128x128xbf16>
    %cst_45 = arith.constant dense<0.000000e+00> : vector<64x128xf32>
    %61 = tpu.matmul %58, %60, %cst_45 {dimension_numbers = #tpu.dot_dimension_numbers<[1], [0], [0], [1], [0, 0, 1, 1], [], []>} : vector<64x128xbf16>, vector<128x128xbf16>, vector<64x128xf32> -> vector<64x128xf32>
    %62 = arith.addf %53, %61 : vector<64x128xf32>
    %c1_i32_46 = arith.constant 1 : i32
    %63 = arith.addi %0, %c1_i32_46 : i32
    %c1_47 = arith.constant 1 : index
    %64 = arith.index_cast %63 : i32 to index
    %c0_48 = arith.constant 0 : index
    %c0_49 = arith.constant 0 : index
    %65 = vector.load %arg2[%c1_47, %64, %c0_48, %c0_49] : memref<4x9x9x128xbf16, #tpu.memory_space<vmem>>, vector<1x8x8x128xbf16>
    %66 = vector.shape_cast %65 : vector<1x8x8x128xbf16> to vector<8x8x128xbf16>
    %67 = vector.shape_cast %66 : vector<8x8x128xbf16> to vector<64x128xbf16>
    %c7 = arith.constant 7 : index
    %c0_50 = arith.constant 0 : index
    %c0_51 = arith.constant 0 : index
    %68 = vector.load %arg3[%c7, %c0_50, %c0_51] : memref<9x128x128xbf16, #tpu.memory_space<vmem>>, vector<1x128x128xbf16>
    %69 = vector.shape_cast %68 : vector<1x128x128xbf16> to vector<128x128xbf16>
    %cst_52 = arith.constant dense<0.000000e+00> : vector<64x128xf32>
    %70 = tpu.matmul %67, %69, %cst_52 {dimension_numbers = #tpu.dot_dimension_numbers<[1], [0], [0], [1], [0, 0, 1, 1], [], []>} : vector<64x128xbf16>, vector<128x128xbf16>, vector<64x128xf32> -> vector<64x128xf32>
    %71 = arith.addf %62, %70 : vector<64x128xf32>
    %c1_i32_53 = arith.constant 1 : i32
    %72 = arith.addi %0, %c1_i32_53 : i32
    %c0_54 = arith.constant 0 : index
    %73 = arith.index_cast %72 : i32 to index
    %c1_55 = arith.constant 1 : index
    %c0_56 = arith.constant 0 : index
    %74 = vector.load %arg2[%c0_54, %73, %c1_55, %c0_56] : memref<4x9x9x128xbf16, #tpu.memory_space<vmem>>, vector<1x8x8x128xbf16>
    %75 = vector.shape_cast %74 : vector<1x8x8x128xbf16> to vector<8x8x128xbf16>
    %76 = vector.shape_cast %75 : vector<8x8x128xbf16> to vector<64x128xbf16>
    %c8 = arith.constant 8 : index
    %c0_57 = arith.constant 0 : index
    %c0_58 = arith.constant 0 : index
    %77 = vector.load %arg3[%c8, %c0_57, %c0_58] : memref<9x128x128xbf16, #tpu.memory_space<vmem>>, vector<1x128x128xbf16>
    %78 = vector.shape_cast %77 : vector<1x128x128xbf16> to vector<128x128xbf16>
    %cst_59 = arith.constant dense<0.000000e+00> : vector<64x128xf32>
    %79 = tpu.matmul %76, %78, %cst_59 {dimension_numbers = #tpu.dot_dimension_numbers<[1], [0], [0], [1], [0, 0, 1, 1], [], []>} : vector<64x128xbf16>, vector<128x128xbf16>, vector<64x128xf32> -> vector<64x128xf32>
    %80 = arith.addf %71, %79 : vector<64x128xf32>
    %c0_60 = arith.constant 0 : index
    %c0_61 = arith.constant 0 : index
    %81 = vector.load %arg4[%c0_60, %c0_61] : memref<1x128xf32, #tpu.memory_space<vmem>>, vector<1x128xf32>
    %82 = vector.broadcast %81 : vector<1x128xf32> to vector<64x128xf32>
    %83 = arith.addf %80, %82 : vector<64x128xf32>
    %cst_62 = arith.constant 0.000000e+00 : f32
    %84 = vector.broadcast %cst_62 : f32 to vector<64x128xf32>
    %85 = arith.maximumf %83, %84 : vector<64x128xf32>
    %86 = vector.shape_cast %85 : vector<64x128xf32> to vector<8x8x128xf32>
    %87 = arith.truncf %86 : vector<8x8x128xf32> to vector<8x8x128xbf16>
    %c0_63 = arith.constant 0 : index
    %c0_64 = arith.constant 0 : index
    %c0_65 = arith.constant 0 : index
    %c0_66 = arith.constant 0 : index
    %88 = vector.load %arg5[%c0_63, %c0_64, %c0_65, %c0_66] : memref<1x8x8x128xbf16, #tpu.memory_space<vmem>>, vector<1x8x8x128xbf16>
    %89 = vector.shape_cast %88 : vector<1x8x8x128xbf16> to vector<8x8x128xbf16>
    %90 = vector.shape_cast %87 : vector<8x8x128xbf16> to vector<1x8x8x128xbf16>
    tpu.vector_store %arg5[%c0_63, %c0_64, %c0_65, %c0_66], %90 {strides = array<i32>} : memref<1x8x8x128xbf16, #tpu.memory_space<vmem>>, vector<1x8x8x128xbf16>,
    return
  }
  func.func @transform_0(%arg0: i32, %arg1: i32) -> (i32, i32, i32, i32) {
    %c0_i32 = arith.constant 0 : i32
    %c0_i32_0 = arith.constant 0 : i32
    %c0_i32_1 = arith.constant 0 : i32
    %c0_i32_2 = arith.constant 0 : i32
    return %arg0, %c0_i32, %c0_i32_0, %c0_i32_1 : i32, i32, i32, i32
  }
  func.func @transform_1(%arg0: i32, %arg1: i32) -> (i32, i32, i32) {
    %c0_i32 = arith.constant 0 : i32
    %c0_i32_0 = arith.constant 0 : i32
    %c0_i32_1 = arith.constant 0 : i32
    %c0_i32_2 = arith.constant 0 : i32
    return %c0_i32, %c0_i32_0, %c0_i32_1 : i32, i32, i32
  }
  func.func @transform_2(%arg0: i32, %arg1: i32) -> (i32, i32) {
    %c0_i32 = arith.constant 0 : i32
    %c0_i32_0 = arith.constant 0 : i32
    %c0_i32_1 = arith.constant 0 : i32
    return %c0_i32, %c0_i32_0 : i32, i32
  }
  func.func @transform_3(%arg0: i32, %arg1: i32) -> (i32, i32, i32, i32) {
    %c0_i32 = arith.constant 0 : i32
    %c0_i32_0 = arith.constant 0 : i32
    %c0_i32_1 = arith.constant 0 : i32
    return %arg0, %arg1, %c0_i32, %c0_i32_0 : i32, i32, i32, i32
  }
}

module attributes {stable_mosaic.version = 11 : i64} {
  func.func @_mm2_kernel(%arg0: i32, %arg1: i32, %arg2: memref<128x128xbf16, #tpu.memory_space<vmem>>, %arg3: memref<128x128xbf16, #tpu.memory_space<vmem>>, %arg4: memref<128x128xbf16, #tpu.memory_space<vmem>>, %arg5: memref<128x128xbf16, #tpu.memory_space<vmem>>, %arg6: memref<1x128xf32, #tpu.memory_space<vmem>>, %arg7: memref<128x128xbf16, #tpu.memory_space<vmem>>) attributes {dimension_semantics = [#tpu.dimension_semantics<parallel>, #tpu.dimension_semantics<parallel>], iteration_bounds = array<i64: 1, 1>, scalar_prefetch = 0 : i64, scratch_operands = 0 : i64, tpu.core_type = #tpu.core_type<tc>, window_params = [{transform_indices = @transform_0, window_bounds = array<i64: 128, 128>}, {transform_indices = @transform_1, window_bounds = array<i64: 128, 128>}, {transform_indices = @transform_2, window_bounds = array<i64: 128, 128>}, {transform_indices = @transform_3, window_bounds = array<i64: 128, 128>}, {transform_indices = @transform_4, window_bounds = array<i64: 1, 128>}, {transform_indices = @transform_5, window_bounds = array<i64: 128, 128>}]} {
    %c0 = arith.constant 0 : index
    %c0_0 = arith.constant 0 : index
    %0 = vector.load %arg2[%c0, %c0_0] : memref<128x128xbf16, #tpu.memory_space<vmem>>, vector<128x128xbf16>
    %c0_1 = arith.constant 0 : index
    %c0_2 = arith.constant 0 : index
    %1 = vector.load %arg3[%c0_1, %c0_2] : memref<128x128xbf16, #tpu.memory_space<vmem>>, vector<128x128xbf16>
    %cst = arith.constant dense<0.000000e+00> : vector<128x128xf32>
    %2 = tpu.matmul %0, %1, %cst {dimension_numbers = #tpu.dot_dimension_numbers<[1], [0], [0], [1], [0, 0, 1, 1], [], []>} : vector<128x128xbf16>, vector<128x128xbf16>, vector<128x128xf32> -> vector<128x128xf32>
    %c0_3 = arith.constant 0 : index
    %c0_4 = arith.constant 0 : index
    %3 = vector.load %arg4[%c0_3, %c0_4] : memref<128x128xbf16, #tpu.memory_space<vmem>>, vector<128x128xbf16>
    %c0_5 = arith.constant 0 : index
    %c0_6 = arith.constant 0 : index
    %4 = vector.load %arg5[%c0_5, %c0_6] : memref<128x128xbf16, #tpu.memory_space<vmem>>, vector<128x128xbf16>
    %cst_7 = arith.constant dense<0.000000e+00> : vector<128x128xf32>
    %5 = tpu.matmul %3, %4, %cst_7 {dimension_numbers = #tpu.dot_dimension_numbers<[1], [0], [0], [1], [0, 0, 1, 1], [], []>} : vector<128x128xbf16>, vector<128x128xbf16>, vector<128x128xf32> -> vector<128x128xf32>
    %6 = arith.addf %2, %5 : vector<128x128xf32>
    %c0_8 = arith.constant 0 : index
    %c0_9 = arith.constant 0 : index
    %7 = vector.load %arg6[%c0_8, %c0_9] : memref<1x128xf32, #tpu.memory_space<vmem>>, vector<1x128xf32>
    %8 = vector.broadcast %7 : vector<1x128xf32> to vector<128x128xf32>
    %9 = arith.addf %6, %8 : vector<128x128xf32>
    %cst_10 = arith.constant 0.000000e+00 : f32
    %10 = vector.broadcast %cst_10 : f32 to vector<128x128xf32>
    %11 = arith.maximumf %9, %10 : vector<128x128xf32>
    %12 = arith.truncf %11 : vector<128x128xf32> to vector<128x128xbf16>
    %c0_11 = arith.constant 0 : index
    %c0_12 = arith.constant 0 : index
    %13 = vector.load %arg7[%c0_11, %c0_12] : memref<128x128xbf16, #tpu.memory_space<vmem>>, vector<128x128xbf16>
    tpu.vector_store %arg7[%c0_11, %c0_12], %12 {strides = array<i32>} : memref<128x128xbf16, #tpu.memory_space<vmem>>, vector<128x128xbf16>,
    return
  }
  func.func @transform_0(%arg0: i32, %arg1: i32) -> (i32, i32) {
    %c0_i32 = arith.constant 0 : i32
    %c0_i32_0 = arith.constant 0 : i32
    return %arg0, %c0_i32 : i32, i32
  }
  func.func @transform_1(%arg0: i32, %arg1: i32) -> (i32, i32) {
    %c0_i32 = arith.constant 0 : i32
    %c0_i32_0 = arith.constant 0 : i32
    return %c0_i32, %arg1 : i32, i32
  }
  func.func @transform_2(%arg0: i32, %arg1: i32) -> (i32, i32) {
    %c0_i32 = arith.constant 0 : i32
    %c0_i32_0 = arith.constant 0 : i32
    return %arg0, %c0_i32 : i32, i32
  }
  func.func @transform_3(%arg0: i32, %arg1: i32) -> (i32, i32) {
    %c0_i32 = arith.constant 0 : i32
    %c0_i32_0 = arith.constant 0 : i32
    return %c0_i32, %arg1 : i32, i32
  }
  func.func @transform_4(%arg0: i32, %arg1: i32) -> (i32, i32) {
    %c0_i32 = arith.constant 0 : i32
    %c0_i32_0 = arith.constant 0 : i32
    return %c0_i32, %arg1 : i32, i32
  }
  func.func @transform_5(%arg0: i32, %arg1: i32) -> (i32, i32) {
    %c0_i32 = arith.constant 0 : i32
    return %arg0, %arg1 : i32, i32
  }
}

</mosaic_0001>

<llo_original>
// kernel: bottleneck_forward.3
$region0: #{bottleneck_forward.3}
  #allocation0 [shape = 'u32[]', space=smem, size = 0x4, offset = 0x4, fixed_abs, tag = 'smem constant byte address 0x4 - core index']
  #allocation1 [shape = 'u32[144,128]{1,0:T(1,128)}', space=vmem, size = 0x12000, scoped, tag = 'internal scratch']
  %s0 = inlined_call_operand.vmem [shape: bf16[512,128], index: 0, kind: input, shape index: {}]
  %s1 = inlined_call_operand.vmem [shape: bf16[128,128], index: 1, kind: input, shape index: {}]
  %s2 = inlined_call_operand.vmem [shape: f32[1,128], index: 2, kind: input, shape index: {}]
  %s3 = inlined_call_operand.vmem [shape: bf16[512,128], index: 3, kind: output, shape index: {}]
  %s4 = sld [smem:[#allocation0]]
  $region22: #{bottleneck_forward.3} parent=0
    _
  %s6 = ssub.s32 1, %s4
  %s7 = scalar_select 0, %s6, %s4
  // Predicated region
  $region2: #{bottleneck_forward.3} parent=0 // pred_check
    _
  $region3: #{bottleneck_forward.3} parent=0 // pred_check_branch
    %9 = sbr.rel (0) target = $region5
  $region4: #{bottleneck_forward.3} parent=0 // pred_region
    _
  $region5: #{bottleneck_forward.3} parent=0 // pred_fallthru
    _
  // Predicated region
  $region6: #{bottleneck_forward.3} parent=0 // pred_check
    _
  $region7: #{bottleneck_forward.3} parent=0 // pred_check_branch
    %11 = sbr.rel (0) target = $region9
  $region8: #{bottleneck_forward.3} parent=0 // pred_region
    _
  $region9: #{bottleneck_forward.3} parent=0 // pred_fallthru
    _
  // Predicated region
  $region10: #{bottleneck_forward.3} parent=0 // pred_check
    _
  $region11: #{bottleneck_forward.3} parent=0 // pred_check_branch
    %13 = sbr.rel (0) target = $region13
  $region12: #{bottleneck_forward.3} parent=0 // pred_region
    _
  $region13: #{bottleneck_forward.3} parent=0 // pred_fallthru
    _
  %v15 = vld [vmem:[%s0] sm:$0xf]
  %v16 = vld [vmem:[%s0 + $0x4] sm:$0xf]
  %v17 = vld [vmem:[%s0 + $0x8] sm:$0xf]
  %v18 = vld [vmem:[%s0 + $0xc] sm:$0xf]
  %v19 = vld [vmem:[%s0 + $0x10] sm:$0xf]
  %v20 = vld [vmem:[%s0 + $0x14] sm:$0xf]
  %v21 = vld [vmem:[%s0 + $0x18] sm:$0xf]
  %v22 = vld [vmem:[%s0 + $0x1c] sm:$0xf]
  %v23 = vld [vmem:[%s0 + $0x20] sm:$0xf]
  %v24 = vld [vmem:[%s0 + $0x24] sm:$0xf]
  %v25 = vld [vmem:[%s0 + $0x28] sm:$0xf]
  %v26 = vld [vmem:[%s0 + $0x2c] sm:$0xf]
  %v27 = vld [vmem:[%s0 + $0x30] sm:$0xf]
  %v28 = vld [vmem:[%s0 + $0x34] sm:$0xf]
  %v29 = vld [vmem:[%s0 + $0x38] sm:$0xf]
  %v30 = vld [vmem:[%s0 + $0x3c] sm:$0xf]
  %v31 = vld [vmem:[%s0 + $0x40] sm:$0xf]
  %v32 = vld [vmem:[%s0 + $0x44] sm:$0xf]
  %v33 = vld [vmem:[%s0 + $0x48] sm:$0xf]
  %v34 = vld [vmem:[%s0 + $0x4c] sm:$0xf]
  %v35 = vld [vmem:[%s0 + $0x50] sm:$0xf]
  %v36 = vld [vmem:[%s0 + $0x54] sm:$0xf]
  %v37 = vld [vmem:[%s0 + $0x58] sm:$0xf]
  %v38 = vld [vmem:[%s0 + $0x5c] sm:$0xf]
  %v39 = vld [vmem:[%s0 + $0x60] sm:$0xf]
  %v40 = vld [vmem:[%s0 + $0x64] sm:$0xf]
  %v41 = vld [vmem:[%s0 + $0x68] sm:$0xf]
  %v42 = vld [vmem:[%s0 + $0x6c] sm:$0xf]
  %v43 = vld [vmem:[%s0 + $0x70] sm:$0xf]
  %v44 = vld [vmem:[%s0 + $0x74] sm:$0xf]
  %v45 = vld [vmem:[%s0 + $0x78] sm:$0xf]
  %v46 = vld [vmem:[%s0 + $0x7c] sm:$0xf]
  %v47 = vld [vmem:[%s0 + $0x80] sm:$0xf]
  %v48 = vld [vmem:[%s0 + $0x84] sm:$0xf]
  %v49 = vld [vmem:[%s0 + $0x88] sm:$0xf]
  %v50 = vld [vmem:[%s0 + $0x8c] sm:$0xf]
  %v51 = vld [vmem:[%s0 + $0x90] sm:$0xf]
  %v52 = vld [vmem:[%s0 + $0x94] sm:$0xf]
  %v53 = vld [vmem:[%s0 + $0x98] sm:$0xf]
  %v54 = vld [vmem:[%s0 + $0x9c] sm:$0xf]
  %v55 = vld [vmem:[%s0 + $0xa0] sm:$0xf]
  %v56 = vld [vmem:[%s0 + $0xa4] sm:$0xf]
  %v57 = vld [vmem:[%s0 + $0xa8] sm:$0xf]
  %v58 = vld [vmem:[%s0 + $0xac] sm:$0xf]
  %v59 = vld [vmem:[%s0 + $0xb0] sm:$0xf]
  %v60 = vld [vmem:[%s0 + $0xb4] sm:$0xf]
  %v61 = vld [vmem:[%s0 + $0xb8] sm:$0xf]
  %v62 = vld [vmem:[%s0 + $0xbc] sm:$0xf]
  %v63 = vld [vmem:[%s0 + $0xc0] sm:$0xf]
  %v64 = vld [vmem:[%s0 + $0xc4] sm:$0xf]
  %v65 = vld [vmem:[%s0 + $0xc8] sm:$0xf]
  %v66 = vld [vmem:[%s0 + $0xcc] sm:$0xf]
  %v67 = vld [vmem:[%s0 + $0xd0] sm:$0xf]
  %v68 = vld [vmem:[%s0 + $0xd4] sm:$0xf]
  %v69 = vld [vmem:[%s0 + $0xd8] sm:$0xf]
  %v70 = vld [vmem:[%s0 + $0xdc] sm:$0xf]
  %v71 = vld [vmem:[%s0 + $0xe0] sm:$0xf]
  %v72 = vld [vmem:[%s0 + $0xe4] sm:$0xf]
  %v73 = vld [vmem:[%s0 + $0xe8] sm:$0xf]
  %v74 = vld [vmem:[%s0 + $0xec] sm:$0xf]
  %v75 = vld [vmem:[%s0 + $0xf0] sm:$0xf]
  %v76 = vld [vmem:[%s0 + $0xf4] sm:$0xf]
  %v77 = vld [vmem:[%s0 + $0xf8] sm:$0xf]
  %v78 = vld [vmem:[%s0 + $0xfc] sm:$0xf]
  %v79 = vld [vmem:[%s1] sm:$0xf]
  %v80 = vld [vmem:[%s1 + $0x4] sm:$0xf]
  %v81 = vld [vmem:[%s1 + $0x8] sm:$0xf]
  %v82 = vld [vmem:[%s1 + $0xc] sm:$0xf]
  %v83 = vld [vmem:[%s1 + $0x10] sm:$0xf]
  %v84 = vld [vmem:[%s1 + $0x14] sm:$0xf]
  %v85 = vld [vmem:[%s1 + $0x18] sm:$0xf]
  %v86 = vld [vmem:[%s1 + $0x1c] sm:$0xf]
  %v87 = vld [vmem:[%s1 + $0x20] sm:$0xf]
  %v88 = vld [vmem:[%s1 + $0x24] sm:$0xf]
  %v89 = vld [vmem:[%s1 + $0x28] sm:$0xf]
  %v90 = vld [vmem:[%s1 + $0x2c] sm:$0xf]
  %v91 = vld [vmem:[%s1 + $0x30] sm:$0xf]
  %v92 = vld [vmem:[%s1 + $0x34] sm:$0xf]
  %v93 = vld [vmem:[%s1 + $0x38] sm:$0xf]
  %v94 = vld [vmem:[%s1 + $0x3c] sm:$0xf]
  %v95 = vld [vmem:[%s2] sm:$0x1]
  %v97 = vlaneseq
  %v98 = vshrl.u32 %v97, 7
  %v99 = vsub.s32 0, %v98
  %v100 = vrot.slane %v95, %v99
  %v166 = vunpack.c.l.b16 %v15
  %v167 = vunpack.c.l.b16 %v16
  %v168 = vunpack.c.l.b16 %v17
  %v169 = vunpack.c.l.b16 %v18
  %v170 = vunpack.c.l.b16 %v19
  %v171 = vunpack.c.l.b16 %v20
  %v172 = vunpack.c.l.b16 %v21
  %v173 = vunpack.c.l.b16 %v22
  %v174 = vunpack.c.l.b16 %v23
  %v175 = vunpack.c.l.b16 %v24
  %v176 = vunpack.c.l.b16 %v25
  %v177 = vunpack.c.l.b16 %v26
  %v178 = vunpack.c.l.b16 %v27
  %v179 = vunpack.c.l.b16 %v28
  %v180 = vunpack.c.l.b16 %v29
  %v181 = vunpack.c.l.b16 %v30
  %v182 = vunpack.c.l.b16 %v31
  %v183 = vunpack.c.l.b16 %v32
  %v184 = vunpack.c.l.b16 %v33
  %v185 = vunpack.c.l.b16 %v34
  %v186 = vunpack.c.l.b16 %v35
  %v187 = vunpack.c.l.b16 %v36
  %v188 = vunpack.c.l.b16 %v37
  %v189 = vunpack.c.l.b16 %v38
  %v190 = vunpack.c.l.b16 %v39
  %v191 = vunpack.c.l.b16 %v40
  %v192 = vunpack.c.l.b16 %v41
  %v193 = vunpack.c.l.b16 %v42
  %v194 = vunpack.c.l.b16 %v43
  %v195 = vunpack.c.l.b16 %v44
  %v196 = vunpack.c.l.b16 %v45
  %v197 = vunpack.c.l.b16 %v46
  %v198 = vunpack.c.l.b16 %v47
  %v199 = vunpack.c.l.b16 %v48
  %v200 = vunpack.c.l.b16 %v49
  %v201 = vunpack.c.l.b16 %v50
  %v202 = vunpack.c.l.b16 %v51
  %v203 = vunpack.c.l.b16 %v52
  %v204 = vunpack.c.l.b16 %v53
  %v205 = vunpack.c.l.b16 %v54
  %v206 = vunpack.c.l.b16 %v55
  %v207 = vunpack.c.l.b16 %v56
  %v208 = vunpack.c.l.b16 %v57
  %v209 = vunpack.c.l.b16 %v58
  %v210 = vunpack.c.l.b16 %v59
  %v211 = vunpack.c.l.b16 %v60
  %v212 = vunpack.c.l.b16 %v61
  %v213 = vunpack.c.l.b16 %v62
  %v214 = vunpack.c.l.b16 %v63
  %v215 = vunpack.c.l.b16 %v64
  %v216 = vunpack.c.l.b16 %v65
  %v217 = vunpack.c.l.b16 %v66
  %v218 = vunpack.c.l.b16 %v67
  %v219 = vunpack.c.l.b16 %v68
  %v220 = vunpack.c.l.b16 %v69
  %v221 = vunpack.c.l.b16 %v70
  %v222 = vunpack.c.l.b16 %v71
  %v223 = vunpack.c.l.b16 %v72
  %v224 = vunpack.c.l.b16 %v73
  %v225 = vunpack.c.l.b16 %v74
  %v226 = vunpack.c.l.b16 %v75
  %v227 = vunpack.c.l.b16 %v76
  %v228 = vunpack.c.l.b16 %v77
  %v229 = vunpack.c.l.b16 %v78
  %v230 = vpack.c.b16 %v167, %v166
  %v231 = vpack.c.b16 %v169, %v168
  %v232 = vpack.c.b16 %v171, %v170
  %v233 = vpack.c.b16 %v173, %v172
  %v234 = vpack.c.b16 %v175, %v174
  %v235 = vpack.c.b16 %v177, %v176
  %v236 = vpack.c.b16 %v179, %v178
  %v237 = vpack.c.b16 %v181, %v180
  %v238 = vpack.c.b16 %v183, %v182
  %v239 = vpack.c.b16 %v185, %v184
  %v240 = vpack.c.b16 %v187, %v186
  %v241 = vpack.c.b16 %v189, %v188
  %v242 = vpack.c.b16 %v191, %v190
  %v243 = vpack.c.b16 %v193, %v192
  %v244 = vpack.c.b16 %v195, %v194
  %v245 = vpack.c.b16 %v197, %v196
  %v246 = vpack.c.b16 %v199, %v198
  %v247 = vpack.c.b16 %v201, %v200
  %v248 = vpack.c.b16 %v203, %v202
  %v249 = vpack.c.b16 %v205, %v204
  %v250 = vpack.c.b16 %v207, %v206
  %v251 = vpack.c.b16 %v209, %v208
  %v252 = vpack.c.b16 %v211, %v210
  %v253 = vpack.c.b16 %v213, %v212
  %v254 = vpack.c.b16 %v215, %v214
  %v255 = vpack.c.b16 %v217, %v216
  %v256 = vpack.c.b16 %v219, %v218
  %v257 = vpack.c.b16 %v221, %v220
  %v258 = vpack.c.b16 %v223, %v222
  %v259 = vpack.c.b16 %v225, %v224
  %v260 = vpack.c.b16 %v227, %v226
  %v261 = vpack.c.b16 %v229, %v228
  %v310 = vunpack.c.l.b16 %v79
  %v311 = vunpack.c.l.b16 %v80
  %v312 = vunpack.c.l.b16 %v81
  %v313 = vunpack.c.l.b16 %v82
  %v314 = vunpack.c.l.b16 %v83
  %v315 = vunpack.c.l.b16 %v84
  %v316 = vunpack.c.l.b16 %v85
  %v317 = vunpack.c.l.b16 %v86
  %v318 = vunpack.c.l.b16 %v87
  %v319 = vunpack.c.l.b16 %v88
  %v320 = vunpack.c.l.b16 %v89
  %v321 = vunpack.c.l.b16 %v90
  %v322 = vunpack.c.l.b16 %v91
  %v323 = vunpack.c.l.b16 %v92
  %v324 = vunpack.c.l.b16 %v93
  %v325 = vunpack.c.l.b16 %v94
  %v326 = vpack.c.b16 %v311, %v310
  %v327 = vpack.c.b16 %v313, %v312
  %v328 = vpack.c.b16 %v315, %v314
  %v329 = vpack.c.b16 %v317, %v316
  %v330 = vpack.c.b16 %v319, %v318
  %v331 = vpack.c.b16 %v321, %v320
  %v332 = vpack.c.b16 %v323, %v322
  %v333 = vpack.c.b16 %v325, %v324
  %342 = vmatprep.subr.bf16.mxu0 0
  %343 = vmatpush1.bf16.msra.mxu0 %v326
  %344 = vmatprep.subr.bf16.mxu0 0
  %345 = vmatpush1.bf16.msra.mxu0 %v327
  %346 = vmatprep.subr.bf16.mxu0 0
  %347 = vmatpush1.bf16.msra.mxu0 %v328
  %348 = vmatprep.subr.bf16.mxu0 0
  %349 = vmatpush1.bf16.msra.mxu0 %v329
  %350 = vmatprep.subr.bf16.mxu0 0
  %351 = vmatpush1.bf16.msra.mxu0 %v330
  %352 = vmatprep.subr.bf16.mxu0 0
  %353 = vmatpush1.bf16.msra.mxu0 %v331
  %354 = vmatprep.subr.bf16.mxu0 0
  %355 = vmatpush1.bf16.msra.mxu0 %v332
  %356 = vmatprep.subr.bf16.mxu0 0
  %357 = vmatpush1.bf16.msra.mxu0 %v333
  %358 = vmatprep.subr.bf16.mxu0 0
  %359 = vmatpush1.bf16.msra.mxu0 0
  %360 = vmatprep.subr.bf16.mxu0 0
  %361 = vmatpush1.bf16.msra.mxu0 0
  %362 = vmatprep.subr.bf16.mxu0 0
  %363 = vmatpush1.bf16.msra.mxu0 0
  %364 = vmatprep.subr.bf16.mxu0 0
  %365 = vmatpush1.bf16.msra.mxu0 0
  %366 = vmatprep.subr.bf16.mxu0 0
  %367 = vmatpush1.bf16.msra.mxu0 0
  %368 = vmatprep.subr.bf16.mxu0 0
  %369 = vmatpush1.bf16.msra.mxu0 0
  %370 = vmatprep.subr.bf16.mxu0 0
  %371 = vmatpush1.bf16.msra.mxu0 0
  %372 = vmatprep.subr.bf16.mxu0 0
  %373 = vmatpush1.bf16.msra.mxu0 0
  %374 = vmatprep.mubr.bf16.mxu0 0
  %375 = vmatmul.mubr.bf16.gmra.mrb[0].mxu0 %v230
  %v376 = vpop.f32.mrb[0].mxu0
  %v377 = vadd.f32 %v100, %v376
  %v378 = vpop.f32.mrb[0].mxu0
  %v379 = vpop.f32.mrb[0].mxu0
  %v380 = vadd.f32 %v100, %v379
  %v381 = vpop.f32.mrb[0].mxu0
  %382 = vmatprep.mubr.bf16.mxu0 0
  %383 = vmatmul.mubr.bf16.gmra.mrb[0].mxu0 %v231
  %v384 = vpop.f32.mrb[0].mxu0
  %v385 = vadd.f32 %v100, %v384
  %v386 = vpop.f32.mrb[0].mxu0
  %v387 = vpop.f32.mrb[0].mxu0
  %v388 = vadd.f32 %v100, %v387
  %v389 = vpop.f32.mrb[0].mxu0
  %390 = vmatprep.mubr.bf16.mxu0 0
  %391 = vmatmul.mubr.bf16.gmra.mrb[0].mxu0 %v232
  %v392 = vpop.f32.mrb[0].mxu0
  %v393 = vadd.f32 %v100, %v392
  %v394 = vpop.f32.mrb[0].mxu0
  %v395 = vpop.f32.mrb[0].mxu0
  %v396 = vadd.f32 %v100, %v395
  %v397 = vpop.f32.mrb[0].mxu0
  %398 = vmatprep.mubr.bf16.mxu0 0
  %399 = vmatmul.mubr.bf16.gmra.mrb[0].mxu0 %v233
  %v400 = vpop.f32.mrb[0].mxu0
  %v401 = vadd.f32 %v100, %v400
  %v402 = vpop.f32.mrb[0].mxu0
  %v403 = vpop.f32.mrb[0].mxu0
  %v404 = vadd.f32 %v100, %v403
  %v405 = vpop.f32.mrb[0].mxu0
  %406 = vmatprep.mubr.bf16.mxu0 0
  %407 = vmatmul.mubr.bf16.gmra.mrb[0].mxu0 %v234
  %v408 = vpop.f32.mrb[0].mxu0
  %v409 = vadd.f32 %v100, %v408
  %v410 = vpop.f32.mrb[0].mxu0
  %v411 = vpop.f32.mrb[0].mxu0
  %v412 = vadd.f32 %v100, %v411
  %v413 = vpop.f32.mrb[0].mxu0
  %414 = vmatprep.mubr.bf16.mxu0 0
  %415 = vmatmul.mubr.bf16.gmra.mrb[0].mxu0 %v235
  %v416 = vpop.f32.mrb[0].mxu0
  %v417 = vadd.f32 %v100, %v416
  %v418 = vpop.f32.mrb[0].mxu0
  %v419 = vpop.f32.mrb[0].mxu0
  %v420 = vadd.f32 %v100, %v419
  %v421 = vpop.f32.mrb[0].mxu0
  %422 = vmatprep.mubr.bf16.mxu0 0
  %423 = vmatmul.mubr.bf16.gmra.mrb[0].mxu0 %v236
  %v424 = vpop.f32.mrb[0].mxu0
  %v425 = vadd.f32 %v100, %v424
  %v426 = vpop.f32.mrb[0].mxu0
  %v427 = vpop.f32.mrb[0].mxu0
  %v428 = vadd.f32 %v100, %v427
  %v429 = vpop.f32.mrb[0].mxu0
  %430 = vmatprep.mubr.bf16.mxu0 0
  %431 = vmatmul.mubr.bf16.gmra.mrb[0].mxu0 %v237
  %v432 = vpop.f32.mrb[0].mxu0
  %v433 = vadd.f32 %v100, %v432
  %v434 = vpop.f32.mrb[0].mxu0
  %v435 = vpop.f32.mrb[0].mxu0
  %v436 = vadd.f32 %v100, %v435
  %v437 = vpop.f32.mrb[0].mxu0
  %438 = vmatprep.mubr.bf16.mxu0 0
  %439 = vmatmul.mubr.bf16.gmra.mrb[0].mxu0 %v238
  %v440 = vpop.f32.mrb[0].mxu0
  %v441 = vadd.f32 %v100, %v440
  %v442 = vpop.f32.mrb[0].mxu0
  %v443 = vpop.f32.mrb[0].mxu0
  %v444 = vadd.f32 %v100, %v443
  %v445 = vpop.f32.mrb[0].mxu0
  %446 = vmatprep.mubr.bf16.mxu0 0
  %447 = vmatmul.mubr.bf16.gmra.mrb[0].mxu0 %v239
  %v448 = vpop.f32.mrb[0].mxu0
  %v449 = vadd.f32 %v100, %v448
  %v450 = vpop.f32.mrb[0].mxu0
  %v451 = vpop.f32.mrb[0].mxu0
  %v452 = vadd.f32 %v100, %v451
  %v453 = vpop.f32.mrb[0].mxu0
  %454 = vmatprep.mubr.bf16.mxu0 0
  %455 = vmatmul.mubr.bf16.gmra.mrb[0].mxu0 %v240
  %v456 = vpop.f32.mrb[0].mxu0
  %v457 = vadd.f32 %v100, %v456
  %v458 = vpop.f32.mrb[0].mxu0
  %v459 = vpop.f32.mrb[0].mxu0
  %v460 = vadd.f32 %v100, %v459
  %v461 = vpop.f32.mrb[0].mxu0
  %462 = vmatprep.mubr.bf16.mxu0 0
  %463 = vmatmul.mubr.bf16.gmra.mrb[0].mxu0 %v241
  %v464 = vpop.f32.mrb[0].mxu0
  %v465 = vadd.f32 %v100, %v464
  %v466 = vpop.f32.mrb[0].mxu0
  %v467 = vpop.f32.mrb[0].mxu0
  %v468 = vadd.f32 %v100, %v467
  %v469 = vpop.f32.mrb[0].mxu0
  %470 = vmatprep.mubr.bf16.mxu0 0
  %471 = vmatmul.mubr.bf16.gmra.mrb[0].mxu0 %v242
  %v472 = vpop.f32.mrb[0].mxu0
  %v473 = vadd.f32 %v100, %v472
  %v474 = vpop.f32.mrb[0].mxu0
  %v475 = vpop.f32.mrb[0].mxu0
  %v476 = vadd.f32 %v100, %v475
  %v477 = vpop.f32.mrb[0].mxu0
  %478 = vmatprep.mubr.bf16.mxu0 0
  %479 = vmatmul.mubr.bf16.gmra.mrb[0].mxu0 %v243
  %v480 = vpop.f32.mrb[0].mxu0
  %v481 = vadd.f32 %v100, %v480
  %v482 = vpop.f32.mrb[0].mxu0
  %v483 = vpop.f32.mrb[0].mxu0
  %v484 = vadd.f32 %v100, %v483
  %v485 = vpop.f32.mrb[0].mxu0
  %486 = vmatprep.mubr.bf16.mxu0 0
  %487 = vmatmul.mubr.bf16.gmra.mrb[0].mxu0 %v244
  %v488 = vpop.f32.mrb[0].mxu0
  %v489 = vadd.f32 %v100, %v488
  %v490 = vpop.f32.mrb[0].mxu0
  %v491 = vpop.f32.mrb[0].mxu0
  %v492 = vadd.f32 %v100, %v491
  %v493 = vpop.f32.mrb[0].mxu0
  %494 = vmatprep.mubr.bf16.mxu0 0
  %495 = vmatmul.mubr.bf16.gmra.mrb[0].mxu0 %v245
  %v496 = vpop.f32.mrb[0].mxu0
  %v497 = vadd.f32 %v100, %v496
  %v498 = vpop.f32.mrb[0].mxu0
  %v499 = vpop.f32.mrb[0].mxu0
  %v500 = vadd.f32 %v100, %v499
  %v501 = vpop.f32.mrb[0].mxu0
  %502 = vmatprep.mubr.bf16.mxu0 0
  %503 = vmatmul.mubr.bf16.gmra.mrb[0].mxu0 %v246
  %v504 = vpop.f32.mrb[0].mxu0
  %v505 = vadd.f32 %v100, %v504
  %v506 = vpop.f32.mrb[0].mxu0
  %v507 = vpop.f32.mrb[0].mxu0
  %v508 = vadd.f32 %v100, %v507
  %v509 = vpop.f32.mrb[0].mxu0
  %510 = vmatprep.mubr.bf16.mxu0 0
  %511 = vmatmul.mubr.bf16.gmra.mrb[0].mxu0 %v247
  %v512 = vpop.f32.mrb[0].mxu0
  %v513 = vadd.f32 %v100, %v512
  %v514 = vpop.f32.mrb[0].mxu0
  %v515 = vpop.f32.mrb[0].mxu0
  %v516 = vadd.f32 %v100, %v515
  %v517 = vpop.f32.mrb[0].mxu0
  %518 = vmatprep.mubr.bf16.mxu0 0
  %519 = vmatmul.mubr.bf16.gmra.mrb[0].mxu0 %v248
  %v520 = vpop.f32.mrb[0].mxu0
  %v521 = vadd.f32 %v100, %v520
  %v522 = vpop.f32.mrb[0].mxu0
  %v523 = vpop.f32.mrb[0].mxu0
  %v524 = vadd.f32 %v100, %v523
  %v525 = vpop.f32.mrb[0].mxu0
  %526 = vmatprep.mubr.bf16.mxu0 0
  %527 = vmatmul.mubr.bf16.gmra.mrb[0].mxu0 %v249
  %v528 = vpop.f32.mrb[0].mxu0
  %v529 = vadd.f32 %v100, %v528
  %v530 = vpop.f32.mrb[0].mxu0
  %v531 = vpop.f32.mrb[0].mxu0
  %v532 = vadd.f32 %v100, %v531
  %v533 = vpop.f32.mrb[0].mxu0
  %534 = vmatprep.mubr.bf16.mxu0 0
  %535 = vmatmul.mubr.bf16.gmra.mrb[0].mxu0 %v250
  %v536 = vpop.f32.mrb[0].mxu0
  %v537 = vadd.f32 %v100, %v536
  %v538 = vpop.f32.mrb[0].mxu0
  %v539 = vpop.f32.mrb[0].mxu0
  %v540 = vadd.f32 %v100, %v539
  %v541 = vpop.f32.mrb[0].mxu0
  %542 = vmatprep.mubr.bf16.mxu0 0
  %543 = vmatmul.mubr.bf16.gmra.mrb[0].mxu0 %v251
  %v544 = vpop.f32.mrb[0].mxu0
  %v545 = vadd.f32 %v100, %v544
  %v546 = vpop.f32.mrb[0].mxu0
  %v547 = vpop.f32.mrb[0].mxu0
  %v548 = vadd.f32 %v100, %v547
  %v549 = vpop.f32.mrb[0].mxu0
  %550 = vmatprep.mubr.bf16.mxu0 0
  %551 = vmatmul.mubr.bf16.gmra.mrb[0].mxu0 %v252
  %v552 = vpop.f32.mrb[0].mxu0
  %v553 = vadd.f32 %v100, %v552
  %v554 = vpop.f32.mrb[0].mxu0
  %v555 = vpop.f32.mrb[0].mxu0
  %v556 = vadd.f32 %v100, %v555
  %v557 = vpop.f32.mrb[0].mxu0
  %558 = vmatprep.mubr.bf16.mxu0 0
  %559 = vmatmul.mubr.bf16.gmra.mrb[0].mxu0 %v253
  %v560 = vpop.f32.mrb[0].mxu0
  %v561 = vadd.f32 %v100, %v560
  %v562 = vpop.f32.mrb[0].mxu0
  %v563 = vpop.f32.mrb[0].mxu0
  %v564 = vadd.f32 %v100, %v563
  %v565 = vpop.f32.mrb[0].mxu0
  %566 = vmatprep.mubr.bf16.mxu0 0
  %567 = vmatmul.mubr.bf16.gmra.mrb[0].mxu0 %v254
  %v568 = vpop.f32.mrb[0].mxu0
  %v569 = vadd.f32 %v100, %v568
  %v570 = vpop.f32.mrb[0].mxu0
  %v571 = vpop.f32.mrb[0].mxu0
  %v572 = vadd.f32 %v100, %v571
  %v573 = vpop.f32.mrb[0].mxu0
  %574 = vmatprep.mubr.bf16.mxu0 0
  %575 = vmatmul.mubr.bf16.gmra.mrb[0].mxu0 %v255
  %v576 = vpop.f32.mrb[0].mxu0
  %v577 = vadd.f32 %v100, %v576
  %v578 = vpop.f32.mrb[0].mxu0
  %v579 = vpop.f32.mrb[0].mxu0
  %v580 = vadd.f32 %v100, %v579
  %v581 = vpop.f32.mrb[0].mxu0
  %582 = vmatprep.mubr.bf16.mxu0 0
  %583 = vmatmul.mubr.bf16.gmra.mrb[0].mxu0 %v256
  %v584 = vpop.f32.mrb[0].mxu0
  %v585 = vadd.f32 %v100, %v584
  %v586 = vpop.f32.mrb[0].mxu0
  %v587 = vpop.f32.mrb[0].mxu0
  %v588 = vadd.f32 %v100, %v587
  %v589 = vpop.f32.mrb[0].mxu0
  %590 = vmatprep.mubr.bf16.mxu0 0
  %591 = vmatmul.mubr.bf16.gmra.mrb[0].mxu0 %v257
  %v592 = vpop.f32.mrb[0].mxu0
  %v593 = vadd.f32 %v100, %v592
  %v594 = vpop.f32.mrb[0].mxu0
  %v595 = vpop.f32.mrb[0].mxu0
  %v596 = vadd.f32 %v100, %v595
  %v597 = vpop.f32.mrb[0].mxu0
  %598 = vmatprep.mubr.bf16.mxu0 0
  %599 = vmatmul.mubr.bf16.gmra.mrb[0].mxu0 %v258
  %v600 = vpop.f32.mrb[0].mxu0
  %v601 = vadd.f32 %v100, %v600
  %v602 = vpop.f32.mrb[0].mxu0
  %v603 = vpop.f32.mrb[0].mxu0
  %v604 = vadd.f32 %v100, %v603
  %v605 = vpop.f32.mrb[0].mxu0
  %606 = vmatprep.mubr.bf16.mxu0 0
  %607 = vmatmul.mubr.bf16.gmra.mrb[0].mxu0 %v259
  %v608 = vpop.f32.mrb[0].mxu0
  %v609 = vadd.f32 %v100, %v608
  %v610 = vpop.f32.mrb[0].mxu0
  %v611 = vpop.f32.mrb[0].mxu0
  %v612 = vadd.f32 %v100, %v611
  %v613 = vpop.f32.mrb[0].mxu0
  %614 = vmatprep.mubr.bf16.mxu0 0
  %615 = vmatmul.mubr.bf16.gmra.mrb[0].mxu0 %v260
  %v616 = vpop.f32.mrb[0].mxu0
  %v617 = vadd.f32 %v100, %v616
  %v618 = vpop.f32.mrb[0].mxu0
  %v619 = vpop.f32.mrb[0].mxu0
  %v620 = vadd.f32 %v100, %v619
  %v621 = vpop.f32.mrb[0].mxu0
  %622 = vmatprep.mubr.bf16.mxu0 0
  %623 = vmatmul.mubr.bf16.gmra.mrb[0].mxu0 %v261
  %v624 = vpop.f32.mrb[0].mxu0
  %v625 = vadd.f32 %v100, %v624
  %v626 = vpop.f32.mrb[0].mxu0
  %v627 = vpop.f32.mrb[0].mxu0
  %v628 = vadd.f32 %v100, %v627
  %v629 = vpop.f32.mrb[0].mxu0
  %630 = vdwg.mxu0
  %v631 = vmax.f32 %v377, 0.0
  %v632 = vmax.f32 %v380, 0.0
  %v633 = vmax.f32 %v385, 0.0
  %v634 = vmax.f32 %v388, 0.0
  %v635 = vmax.f32 %v393, 0.0
  %v636 = vmax.f32 %v396, 0.0
  %v637 = vmax.f32 %v401, 0.0
  %v638 = vmax.f32 %v404, 0.0
  %v639 = vmax.f32 %v409, 0.0
  %v640 = vmax.f32 %v412, 0.0
  %v641 = vmax.f32 %v417, 0.0
  %v642 = vmax.f32 %v420, 0.0
  %v643 = vmax.f32 %v425, 0.0
  %v644 = vmax.f32 %v428, 0.0
  %v645 = vmax.f32 %v433, 0.0
  %v646 = vmax.f32 %v436, 0.0
  %v647 = vmax.f32 %v441, 0.0
  %v648 = vmax.f32 %v444, 0.0
  %v649 = vmax.f32 %v449, 0.0
  %v650 = vmax.f32 %v452, 0.0
  %v651 = vmax.f32 %v457, 0.0
  %v652 = vmax.f32 %v460, 0.0
  %v653 = vmax.f32 %v465, 0.0
  %v654 = vmax.f32 %v468, 0.0
  %v655 = vmax.f32 %v473, 0.0
  %v656 = vmax.f32 %v476, 0.0
  %v657 = vmax.f32 %v481, 0.0
  %v658 = vmax.f32 %v484, 0.0
  %v659 = vmax.f32 %v489, 0.0
  %v660 = vmax.f32 %v492, 0.0
  %v661 = vmax.f32 %v497, 0.0
  %v662 = vmax.f32 %v500, 0.0
  %v663 = vmax.f32 %v505, 0.0
  %v664 = vmax.f32 %v508, 0.0
  %v665 = vmax.f32 %v513, 0.0
  %v666 = vmax.f32 %v516, 0.0
  %v667 = vmax.f32 %v521, 0.0
  %v668 = vmax.f32 %v524, 0.0
  %v669 = vmax.f32 %v529, 0.0
  %v670 = vmax.f32 %v532, 0.0
  %v671 = vmax.f32 %v537, 0.0
  %v672 = vmax.f32 %v540, 0.0
  %v673 = vmax.f32 %v545, 0.0
  %v674 = vmax.f32 %v548, 0.0
  %v675 = vmax.f32 %v553, 0.0
  %v676 = vmax.f32 %v556, 0.0
  %v677 = vmax.f32 %v561, 0.0
  %v678 = vmax.f32 %v564, 0.0
  %v679 = vmax.f32 %v569, 0.0
  %v680 = vmax.f32 %v572, 0.0
  %v681 = vmax.f32 %v577, 0.0
  %v682 = vmax.f32 %v580, 0.0
  %v683 = vmax.f32 %v585, 0.0
  %v684 = vmax.f32 %v588, 0.0
  %v685 = vmax.f32 %v593, 0.0
  %v686 = vmax.f32 %v596, 0.0
  %v687 = vmax.f32 %v601, 0.0
  %v688 = vmax.f32 %v604, 0.0
  %v689 = vmax.f32 %v609, 0.0
  %v690 = vmax.f32 %v612, 0.0
  %v691 = vmax.f32 %v617, 0.0
  %v692 = vmax.f32 %v620, 0.0
  %v693 = vmax.f32 %v625, 0.0
  %v694 = vmax.f32 %v628, 0.0
  %v695 = vpack.c.bf16 %v632, %v631
  %v696 = vpack.c.bf16 %v634, %v633
  %v697 = vpack.c.bf16 %v636, %v635
  %v698 = vpack.c.bf16 %v638, %v637
  %v699 = vpack.c.bf16 %v640, %v639
  %v700 = vpack.c.bf16 %v642, %v641
  %v701 = vpack.c.bf16 %v644, %v643
  %v702 = vpack.c.bf16 %v646, %v645
  %v703 = vpack.c.bf16 %v648, %v647
  %v704 = vpack.c.bf16 %v650, %v649
  %v705 = vpack.c.bf16 %v652, %v651
  %v706 = vpack.c.bf16 %v654, %v653
  %v707 = vpack.c.bf16 %v656, %v655
  %v708 = vpack.c.bf16 %v658, %v657
  %v709 = vpack.c.bf16 %v660, %v659
  %v710 = vpack.c.bf16 %v662, %v661
  %v711 = vpack.c.bf16 %v664, %v663
  %v712 = vpack.c.bf16 %v666, %v665
  %v713 = vpack.c.bf16 %v668, %v667
  %v714 = vpack.c.bf16 %v670, %v669
  %v715 = vpack.c.bf16 %v672, %v671
  %v716 = vpack.c.bf16 %v674, %v673
  %v717 = vpack.c.bf16 %v676, %v675
  %v718 = vpack.c.bf16 %v678, %v677
  %v719 = vpack.c.bf16 %v680, %v679
  %v720 = vpack.c.bf16 %v682, %v681
  %v721 = vpack.c.bf16 %v684, %v683
  %v722 = vpack.c.bf16 %v686, %v685
  %v723 = vpack.c.bf16 %v688, %v687
  %v724 = vpack.c.bf16 %v690, %v689
  %v725 = vpack.c.bf16 %v692, %v691
  %v726 = vpack.c.bf16 %v694, %v693
  %v759 = vunpack.c.l.b16 %v695
  %v760 = vunpack.c.h.b16 %v695
  %v761 = vunpack.c.l.b16 %v696
  %v762 = vunpack.c.h.b16 %v696
  %v763 = vunpack.c.l.b16 %v697
  %v764 = vunpack.c.h.b16 %v697
  %v765 = vunpack.c.l.b16 %v698
  %v766 = vunpack.c.h.b16 %v698
  %v767 = vunpack.c.l.b16 %v699
  %v768 = vunpack.c.h.b16 %v699
  %v769 = vunpack.c.l.b16 %v700
  %v770 = vunpack.c.h.b16 %v700
  %v771 = vunpack.c.l.b16 %v701
  %v772 = vunpack.c.h.b16 %v701
  %v773 = vunpack.c.l.b16 %v702
  %v774 = vunpack.c.h.b16 %v702
  %v775 = vunpack.c.l.b16 %v703
  %v776 = vunpack.c.h.b16 %v703
  %v777 = vunpack.c.l.b16 %v704
  %v778 = vunpack.c.h.b16 %v704
  %v779 = vunpack.c.l.b16 %v705
  %v780 = vunpack.c.h.b16 %v705
  %v781 = vunpack.c.l.b16 %v706
  %v782 = vunpack.c.h.b16 %v706
  %v783 = vunpack.c.l.b16 %v707
  %v784 = vunpack.c.h.b16 %v707
  %v785 = vunpack.c.l.b16 %v708
  %v786 = vunpack.c.h.b16 %v708
  %v787 = vunpack.c.l.b16 %v709
  %v788 = vunpack.c.h.b16 %v709
  %v789 = vunpack.c.l.b16 %v710
  %v790 = vunpack.c.h.b16 %v710
  %v791 = vunpack.c.l.b16 %v711
  %v792 = vunpack.c.h.b16 %v711
  %v793 = vunpack.c.l.b16 %v712
  %v794 = vunpack.c.h.b16 %v712
  %v795 = vunpack.c.l.b16 %v713
  %v796 = vunpack.c.h.b16 %v713
  %v797 = vunpack.c.l.b16 %v714
  %v798 = vunpack.c.h.b16 %v714
  %v799 = vunpack.c.l.b16 %v715
  %v800 = vunpack.c.h.b16 %v715
  %v801 = vunpack.c.l.b16 %v716
  %v802 = vunpack.c.h.b16 %v716
  %v803 = vunpack.c.l.b16 %v717
  %v804 = vunpack.c.h.b16 %v717
  %v805 = vunpack.c.l.b16 %v718
  %v806 = vunpack.c.h.b16 %v718
  %v807 = vunpack.c.l.b16 %v719
  %v808 = vunpack.c.h.b16 %v719
  %v809 = vunpack.c.l.b16 %v720
  %v810 = vunpack.c.h.b16 %v720
  %v811 = vunpack.c.l.b16 %v721
  %v812 = vunpack.c.h.b16 %v721
  %v813 = vunpack.c.l.b16 %v722
  %v814 = vunpack.c.h.b16 %v722
  %v815 = vunpack.c.l.b16 %v723
  %v816 = vunpack.c.h.b16 %v723
  %v817 = vunpack.c.l.b16 %v724
  %v818 = vunpack.c.h.b16 %v724
  %v819 = vunpack.c.l.b16 %v725
  %v820 = vunpack.c.h.b16 %v725
  %v821 = vunpack.c.l.b16 %v726
  %v822 = vunpack.c.h.b16 %v726
  %v823 = vpack.c.b16 %v759, %v759
  %v824 = vpack.c.b16 %v760, %v760
  %v825 = vpack.c.b16 %v761, %v761
  %v826 = vpack.c.b16 %v762, %v762
  %v827 = vpack.c.b16 %v763, %v763
  %v828 = vpack.c.b16 %v764, %v764
  %v829 = vpack.c.b16 %v765, %v765
  %v830 = vpack.c.b16 %v766, %v766
  %v831 = vpack.c.b16 %v767, %v767
  %v832 = vpack.c.b16 %v768, %v768
  %v833 = vpack.c.b16 %v769, %v769
  %v834 = vpack.c.b16 %v770, %v770
  %v835 = vpack.c.b16 %v771, %v771
  %v836 = vpack.c.b16 %v772, %v772
  %v837 = vpack.c.b16 %v773, %v773
  %v838 = vpack.c.b16 %v774, %v774
  %v839 = vpack.c.b16 %v775, %v775
  %v840 = vpack.c.b16 %v776, %v776
  %v841 = vpack.c.b16 %v777, %v777
  %v842 = vpack.c.b16 %v778, %v778
  %v843 = vpack.c.b16 %v779, %v779
  %v844 = vpack.c.b16 %v780, %v780
  %v845 = vpack.c.b16 %v781, %v781
  %v846 = vpack.c.b16 %v782, %v782
  %v847 = vpack.c.b16 %v783, %v783
  %v848 = vpack.c.b16 %v784, %v784
  %v849 = vpack.c.b16 %v785, %v785
  %v850 = vpack.c.b16 %v786, %v786
  %v851 = vpack.c.b16 %v787, %v787
  %v852 = vpack.c.b16 %v788, %v788
  %v853 = vpack.c.b16 %v789, %v789
  %v854 = vpack.c.b16 %v790, %v790
  %v855 = vpack.c.b16 %v791, %v791
  %v856 = vpack.c.b16 %v792, %v792
  %v857 = vpack.c.b16 %v793, %v793
  %v858 = vpack.c.b16 %v794, %v794
  %v859 = vpack.c.b16 %v795, %v795
  %v860 = vpack.c.b16 %v796, %v796
  %v861 = vpack.c.b16 %v797, %v797
  %v862 = vpack.c.b16 %v798, %v798
  %v863 = vpack.c.b16 %v799, %v799
  %v864 = vpack.c.b16 %v800, %v800
  %v865 = vpack.c.b16 %v801, %v801
  %v866 = vpack.c.b16 %v802, %v802
  %v867 = vpack.c.b16 %v803, %v803
  %v868 = vpack.c.b16 %v804, %v804
  %v869 = vpack.c.b16 %v805, %v805
  %v870 = vpack.c.b16 %v806, %v806
  %v871 = vpack.c.b16 %v807, %v807
  %v872 = vpack.c.b16 %v808, %v808
  %v873 = vpack.c.b16 %v809, %v809
  %v874 = vpack.c.b16 %v810, %v810
  %v875 = vpack.c.b16 %v811, %v811
  %v876 = vpack.c.b16 %v812, %v812
  %v877 = vpack.c.b16 %v813, %v813
  %v878 = vpack.c.b16 %v814, %v814
  %v879 = vpack.c.b16 %v815, %v815
  %v880 = vpack.c.b16 %v816, %v816
  %v881 = vpack.c.b16 %v817, %v817
  %v882 = vpack.c.b16 %v818, %v818
  %v883 = vpack.c.b16 %v819, %v819
  %v884 = vpack.c.b16 %v820, %v820
  %v885 = vpack.c.b16 %v821, %v821
  %v886 = vpack.c.b16 %v822, %v822
  %951 = vst [vmem:[%s3] sm:$0xf] %v823
  %952 = vst [vmem:[%s3 + $0x4] sm:$0xf] %v824
  %953 = vst [vmem:[%s3 + $0x8] sm:$0xf] %v825
  %954 = vst [vmem:[%s3 + $0xc] sm:$0xf] %v826
  %955 = vst [vmem:[%s3 + $0x10] sm:$0xf] %v827
  %956 = vst [vmem:[%s3 + $0x14] sm:$0xf] %v828
  %957 = vst [vmem:[%s3 + $0x18] sm:$0xf] %v829
  %958 = vst [vmem:[%s3 + $0x1c] sm:$0xf] %v830
  %959 = vst [vmem:[%s3 + $0x20] sm:$0xf] %v831
  %960 = vst [vmem:[%s3 + $0x24] sm:$0xf] %v832
  %961 = vst [vmem:[%s3 + $0x28] sm:$0xf] %v833
  %962 = vst [vmem:[%s3 + $0x2c] sm:$0xf] %v834
  %963 = vst [vmem:[%s3 + $0x30] sm:$0xf] %v835
  %964 = vst [vmem:[%s3 + $0x34] sm:$0xf] %v836
  %965 = vst [vmem:[%s3 + $0x38] sm:$0xf] %v837
  %966 = vst [vmem:[%s3 + $0x3c] sm:$0xf] %v838
  %967 = vst [vmem:[%s3 + $0x40] sm:$0xf] %v839
  %968 = vst [vmem:[%s3 + $0x44] sm:$0xf] %v840
  %969 = vst [vmem:[%s3 + $0x48] sm:$0xf] %v841
  %970 = vst [vmem:[%s3 + $0x4c] sm:$0xf] %v842
  %971 = vst [vmem:[%s3 + $0x50] sm:$0xf] %v843
  %972 = vst [vmem:[%s3 + $0x54] sm:$0xf] %v844
  %973 = vst [vmem:[%s3 + $0x58] sm:$0xf] %v845
  %974 = vst [vmem:[%s3 + $0x5c] sm:$0xf] %v846
  %975 = vst [vmem:[%s3 + $0x60] sm:$0xf] %v847
  %976 = vst [vmem:[%s3 + $0x64] sm:$0xf] %v848
  %977 = vst [vmem:[%s3 + $0x68] sm:$0xf] %v849
  %978 = vst [vmem:[%s3 + $0x6c] sm:$0xf] %v850
  %979 = vst [vmem:[%s3 + $0x70] sm:$0xf] %v851
  %980 = vst [vmem:[%s3 + $0x74] sm:$0xf] %v852
  %981 = vst [vmem:[%s3 + $0x78] sm:$0xf] %v853
  %982 = vst [vmem:[%s3 + $0x7c] sm:$0xf] %v854
  %983 = vst [vmem:[%s3 + $0x80] sm:$0xf] %v855
  %984 = vst [vmem:[%s3 + $0x84] sm:$0xf] %v856
  %985 = vst [vmem:[%s3 + $0x88] sm:$0xf] %v857
  %986 = vst [vmem:[%s3 + $0x8c] sm:$0xf] %v858
  %987 = vst [vmem:[%s3 + $0x90] sm:$0xf] %v859
  %988 = vst [vmem:[%s3 + $0x94] sm:$0xf] %v860
  %989 = vst [vmem:[%s3 + $0x98] sm:$0xf] %v861
  %990 = vst [vmem:[%s3 + $0x9c] sm:$0xf] %v862
  %991 = vst [vmem:[%s3 + $0xa0] sm:$0xf] %v863
  %992 = vst [vmem:[%s3 + $0xa4] sm:$0xf] %v864
  %993 = vst [vmem:[%s3 + $0xa8] sm:$0xf] %v865
  %994 = vst [vmem:[%s3 + $0xac] sm:$0xf] %v866
  %995 = vst [vmem:[%s3 + $0xb0] sm:$0xf] %v867
  %996 = vst [vmem:[%s3 + $0xb4] sm:$0xf] %v868
  %997 = vst [vmem:[%s3 + $0xb8] sm:$0xf] %v869
  %998 = vst [vmem:[%s3 + $0xbc] sm:$0xf] %v870
  %999 = vst [vmem:[%s3 + $0xc0] sm:$0xf] %v871
  %1000 = vst [vmem:[%s3 + $0xc4] sm:$0xf] %v872
  %1001 = vst [vmem:[%s3 + $0xc8] sm:$0xf] %v873
  %1002 = vst [vmem:[%s3 + $0xcc] sm:$0xf] %v874
  %1003 = vst [vmem:[%s3 + $0xd0] sm:$0xf] %v875
  %1004 = vst [vmem:[%s3 + $0xd4] sm:$0xf] %v876
  %1005 = vst [vmem:[%s3 + $0xd8] sm:$0xf] %v877
  %1006 = vst [vmem:[%s3 + $0xdc] sm:$0xf] %v878
  %1007 = vst [vmem:[%s3 + $0xe0] sm:$0xf] %v879
  %1008 = vst [vmem:[%s3 + $0xe4] sm:$0xf] %v880
  %1009 = vst [vmem:[%s3 + $0xe8] sm:$0xf] %v881
  %1010 = vst [vmem:[%s3 + $0xec] sm:$0xf] %v882
  %1011 = vst [vmem:[%s3 + $0xf0] sm:$0xf] %v883
  %1012 = vst [vmem:[%s3 + $0xf4] sm:$0xf] %v884
  %1013 = vst [vmem:[%s3 + $0xf8] sm:$0xf] %v885
  %1014 = vst [vmem:[%s3 + $0xfc] sm:$0xf] %v886
  // Predicated region
  $region14: #{bottleneck_forward.3} parent=0 // pred_check
    _
  $region15: #{bottleneck_forward.3} parent=0 // pred_check_branch
    %1016 = sbr.rel (0) target = $region17
  $region16: #{bottleneck_forward.3} parent=0 // pred_region
    _
  $region17: #{bottleneck_forward.3} parent=0 // pred_fallthru
    _
  // Predicated region
  $region18: #{bottleneck_forward.3} parent=0 // pred_check
    _
  $region19: #{bottleneck_forward.3} parent=0 // pred_check_branch
    %1018 = sbr.rel (0) target = $region21
  $region20: #{bottleneck_forward.3} parent=0 // pred_region
    _
  $region21: #{bottleneck_forward.3} parent=0 // pred_fallthru
    _

// kernel: bottleneck_forward.4
$region0: #{bottleneck_forward.4}
  #allocation0 [shape = 'u32[]', space=smem, size = 0x4, offset = 0x4, fixed_abs, tag = 'smem constant byte address 0x4 - core index']
  #allocation1 [shape = 'u32[144,128]{1,0:T(1,128)}', space=vmem, size = 0x12000, scoped, tag = 'internal scratch']
  %s0 = inlined_call_operand.vmem [shape: bf16[8,9,9,128], index: 0, kind: input, shape index: {}]
  %s1 = inlined_call_operand.vmem [shape: bf16[9,128,128], index: 1, kind: input, shape index: {}]
  %s2 = inlined_call_operand.vmem [shape: f32[1,128], index: 2, kind: input, shape index: {}]
  %s3 = inlined_call_operand.vmem [shape: bf16[2,8,8,128], index: 3, kind: output, shape index: {}]
  %s4 = sld [smem:[#allocation0]]
  $region45: #{bottleneck_forward.4} parent=0
    _
  %s6 = ssub.s32 1, %s4
  %s7 = scalar_select 0, %s6, %s4
  loop: start=0, step=1, limit=4
  $region2: #{bottleneck_forward.4} parent=0 // loop_pre_header
    _
  $region3: #{bottleneck_forward.4} parent=0 // loop_header
    %s9 = sphi 0, %s13
    %p10 = scmp.ge.s32.totalorder %s9, 4
    %s16 = sphi 0, %s28
    %s17 = sphi 0, %s24
    %s18 = sphi 0, %s16
    %s19 = sphi 0, %s17
    %s20 = sphi 0, %s18
    %s21 = sphi 0, %s19
    %s31 = sphi 0, %s33
    %s34 = sphi 0, %s31
    %s35 = sphi 0, %s34
    %s51 = sphi 0, %s35
    %s55 = sphi 0, %s55
    %s57 = sphi 0, %s55
    %s58 = sphi 0, %s57
    %s72 = sphi 0, %s58
    %s76 = sphi 0, %s76
    %s78 = sphi 0, %s76
    %s79 = sphi 0, %s78
    %s93 = sphi 0, %s79
    %s101 = sphi 0, %s103
    %s104 = sphi 0, %s101
    %s105 = sphi 0, %s104
    %s121 = sphi 0, %s105
  $region4: #{bottleneck_forward.4} parent=0 // loop_header_branch
    %12 = sbr.rel (%p10) target = $region8
  $region5: #{bottleneck_forward.4} parent=0 // loop_body
    %s14 = ssub.s32 %s9, 1
    %s15 = ssub.s32 %s9, 2
    %s22 = sadd.s32 1, %s17
    %p23 = scmp.ge.s32.totalorder %s22, 1
    %s24 = scalar_select %p23, 0, %s22
    %s25 = sadd.s32 1, %s16
    %s26 = scalar_select %p23, %s25, %s16
    %p27 = scmp.ge.s32.totalorder %s26, 2
    %s28 = scalar_select %p27, 0, %s26
    %s29 = ssub.s32 %s16, %s28
    %p30 = scmp.eq.s32.totalorder %s29, 0
    %s32 = sadd.s32 %s31, 1
    %s33 = scalar_select %p30, %s31, %s32
    %p36 = pneg %p30
    %p37 = scmp.eq.s32.totalorder %s9, 1
    %p38 = por %p36, %p37
    %p39 = scmp.ne.s32.totalorder %s31, %s34
    %p40 = scmp.eq.s32.totalorder %s9, 0
    %p41 = por %p39, %p40
    %p42 = scmp.ne.s32.totalorder %s31, %s34
    %p43 = scmp.eq.s32.totalorder %s14, 1
    %p44 = por %p42, %p43
    %p45 = scmp.ne.s32.totalorder %s34, %s35
    %p46 = scmp.eq.s32.totalorder %s14, 0
    %p47 = por %p45, %p46
    %p48 = scmp.ne.s32.totalorder %s34, %s35
    %p49 = scmp.eq.s32.totalorder %s15, 1
    %p50 = por %p48, %p49
    %p52 = scmp.ne.s32.totalorder %s35, %s51
    %p53 = scmp.eq.s32.totalorder %s15, 0
    %p54 = por %p52, %p53
    %s56 = sadd.s32 %s55, 1
    %p59 = scmp.eq.s32.totalorder %s9, 1
    %p60 = scmp.ne.s32.totalorder %s55, %s57
    %p61 = scmp.eq.s32.totalorder %s9, 0
    %p62 = por %p60, %p61
    %p63 = scmp.ne.s32.totalorder %s55, %s57
    %p64 = scmp.eq.s32.totalorder %s14, 1
    %p65 = por %p63, %p64
    %p66 = scmp.ne.s32.totalorder %s57, %s58
    %p67 = scmp.eq.s32.totalorder %s14, 0
    %p68 = por %p66, %p67
    %p69 = scmp.ne.s32.totalorder %s57, %s58
    %p70 = scmp.eq.s32.totalorder %s15, 1
    %p71 = por %p69, %p70
    %p73 = scmp.ne.s32.totalorder %s58, %s72
    %p74 = scmp.eq.s32.totalorder %s15, 0
    %p75 = por %p73, %p74
    %s77 = sadd.s32 %s76, 1
    %p80 = scmp.eq.s32.totalorder %s9, 1
    %p81 = scmp.ne.s32.totalorder %s76, %s78
    %p82 = scmp.eq.s32.totalorder %s9, 0
    %p83 = por %p81, %p82
    %p84 = scmp.ne.s32.totalorder %s76, %s78
    %p85 = scmp.eq.s32.totalorder %s14, 1
    %p86 = por %p84, %p85
    %p87 = scmp.ne.s32.totalorder %s78, %s79
    %p88 = scmp.eq.s32.totalorder %s14, 0
    %p89 = por %p87, %p88
    %p90 = scmp.ne.s32.totalorder %s78, %s79
    %p91 = scmp.eq.s32.totalorder %s15, 1
    %p92 = por %p90, %p91
    %p94 = scmp.ne.s32.totalorder %s79, %s93
    %p95 = scmp.eq.s32.totalorder %s15, 0
    %p96 = por %p94, %p95
    %s97 = ssub.s32 %s16, %s28
    %s98 = ssub.s32 %s17, %s24
    %s99 = sor.u32 %s97, %s98
    %p100 = scmp.eq.s32.totalorder %s99, 0
    %s102 = sadd.s32 %s101, 1
    %s103 = scalar_select %p100, %s101, %s102
    %p106 = pneg %p100
    %p107 = scmp.eq.s32.totalorder %s9, 1
    %p108 = por %p106, %p107
    %p109 = scmp.ne.s32.totalorder %s101, %s104
    %p110 = scmp.eq.s32.totalorder %s9, 0
    %p111 = por %p109, %p110
    %p112 = scmp.ne.s32.totalorder %s101, %s104
    %p113 = scmp.eq.s32.totalorder %s14, 1
    %p114 = por %p112, %p113
    %p115 = scmp.ne.s32.totalorder %s104, %s105
    %p116 = scmp.eq.s32.totalorder %s14, 0
    %p117 = por %p115, %p116
    %p118 = scmp.ne.s32.totalorder %s104, %s105
    %p119 = scmp.eq.s32.totalorder %s15, 1
    %p120 = por %p118, %p119
    %p122 = scmp.ne.s32.totalorder %s105, %s121
    %p123 = scmp.eq.s32.totalorder %s15, 0
    %p124 = por %p122, %p123
    %p125 = scmp.le.s32.totalorder 1, %s9
    %p126 = scmp.lt.s32.totalorder %s9, 3
    %p127 = pnand %p125, %p126
    %p128 = pneg %p127
    // Predicated region
    $region9: #{bottleneck_forward.4} parent=5 // pred_check
      _
    $region10: #{bottleneck_forward.4} parent=5 // pred_check_branch
      %130 = sbr.rel (%p127) target = $region12
    $region11: #{bottleneck_forward.4} parent=5 // pred_region
      %s131 = ssub.s32 %s9, 1
      // Predicated region
      $region13: #{bottleneck_forward.4} parent=11 // pred_check
        %p132 = pneg %p68
      $region14: #{bottleneck_forward.4} parent=11 // pred_check_branch
        %134 = sbr.rel (%p132) target = $region16
      $region15: #{bottleneck_forward.4} parent=11 // pred_region
        _
      $region16: #{bottleneck_forward.4} parent=11 // pred_fallthru
        _
      // Predicated region
      $region17: #{bottleneck_forward.4} parent=11 // pred_check
        %p135 = pneg %p89
      $region18: #{bottleneck_forward.4} parent=11 // pred_check_branch
        %137 = sbr.rel (%p135) target = $region20
      $region19: #{bottleneck_forward.4} parent=11 // pred_region
        _
      $region20: #{bottleneck_forward.4} parent=11 // pred_fallthru
        _
    $region12: #{bottleneck_forward.4} parent=5 // pred_fallthru
      _
    %p138 = scmp.lt.s32.totalorder %s9, 2
    // Predicated region
    $region21: #{bottleneck_forward.4} parent=5 // pred_check
      %p139 = pneg %p138
    $region22: #{bottleneck_forward.4} parent=5 // pred_check_branch
      %141 = sbr.rel (%p139) target = $region24
    $region23: #{bottleneck_forward.4} parent=5 // pred_region
      // Predicated region
      $region25: #{bottleneck_forward.4} parent=23 // pred_check
        %p142 = pneg %p41
      $region26: #{bottleneck_forward.4} parent=23 // pred_check_branch
        %144 = sbr.rel (%p142) target = $region28
      $region27: #{bottleneck_forward.4} parent=23 // pred_region
        %s145 = smul.u32 4, %s16
        %p146 = scmp.lt.s32.totalorder %s145, 7
        %s147 = scalar_select %p146, %s145, 7
        %s148 = smul.addr %s147, 18
        %s149 = smul.addr %s148, 4
        %s150 = scalar_lea.vmem %s0, %s149
        %s151 = smul.u32 4, %s16
      $region28: #{bottleneck_forward.4} parent=23 // pred_fallthru
        _
    $region24: #{bottleneck_forward.4} parent=5 // pred_fallthru
      _
    %p152 = scmp.le.s32.totalorder 1, %s9
    %p153 = scmp.lt.s32.totalorder %s9, 3
    %p154 = pnand %p152, %p153
    %p155 = pneg %p154
    // Predicated region
    $region29: #{bottleneck_forward.4} parent=5 // pred_check
      _
    $region30: #{bottleneck_forward.4} parent=5 // pred_check_branch
      %157 = sbr.rel (%p154) target = $region32
    $region31: #{bottleneck_forward.4} parent=5 // pred_region
      %s158 = ssub.s32 %s9, 1
      %s159 = smul.u32 4, %s18
      %p160 = scmp.lt.s32.totalorder %s159, 7
      %s161 = scalar_select %p160, %s159, 7
      %s162 = smul.addr %s161, 18
      %s163 = smul.addr %s162, 4
      %s164 = scalar_lea.vmem %s0, %s163
      %p165 = pneg %p47
      %p166 = pneg %p44
      %p167 = pneg %p68
      %p168 = pneg %p65
      %p169 = pneg %p89
      %p170 = pneg %p86
      %p171 = pneg %p117
      %p172 = pneg %p114
      %s173 = smul.u32 8, %s19
      %p174 = scmp.lt.s32.totalorder %s18, 1
      %s175 = scalar_select %p174, %s18, 1
      %p176 = scmp.lt.s32.totalorder %s173, 7
      %s177 = scalar_select %p176, %s173, 7
      %s178 = smul.addr %s175, 8
      %s179 = sadd.s32 %s177, %s178
      %s180 = smul.addr %s179, 4
      %s181 = scalar_lea.vmem %s3, %s180
      %s182 = smul.u32 4, %s18
      %p183 = scmp.lt.s32.totalorder %s182, 7
      %s184 = scalar_select %p183, %s182, 7
      %s185 = smul.addr %s184, 18
      %s186 = smul.addr %s185, 4
      %s187 = scalar_lea.vmem %s0, %s186
      %s188 = smul.u32 4, %s18
      %s189 = smul.u32 8, %s19
      %p190 = scmp.lt.s32.totalorder %s18, 1
      %s191 = scalar_select %p190, %s18, 1
      %p192 = scmp.lt.s32.totalorder %s189, 7
      %s193 = scalar_select %p192, %s189, 7
      %s194 = smul.addr %s191, 8
      %s195 = sadd.s32 %s193, %s194
      %s196 = smul.addr %s195, 4
      %s197 = scalar_lea.vmem %s3, %s196
      %s198 = smul.u32 8, %s19
      %s200 = smul.u32 %s19, 8
      %s201 = smul.u32 %s200, 2
      %s202 = smul.addr %s201, 4
      %s203 = scalar_lea.vmem %s187, %s202
      %v204 = vld [vmem:[%s203] sm:$0xf]
      %v205 = vld [vmem:[%s203 + $0x8] sm:$0xf]
      %v206 = vld [vmem:[%s203 + $0x10] sm:$0xf]
      %v207 = vld [vmem:[%s203 + $0x18] sm:$0xf]
      %v208 = vld [vmem:[%s203 + $0x20] sm:$0xf]
      %v209 = vld [vmem:[%s203 + $0x28] sm:$0xf]
      %v210 = vld [vmem:[%s203 + $0x30] sm:$0xf]
      %v211 = vld [vmem:[%s203 + $0x38] sm:$0xf]
      %v212 = vld [vmem:[%s1] sm:$0xf]
      %v213 = vld [vmem:[%s1 + $0x4] sm:$0xf]
      %v214 = vld [vmem:[%s1 + $0x8] sm:$0xf]
      %v215 = vld [vmem:[%s1 + $0xc] sm:$0xf]
      %v216 = vld [vmem:[%s1 + $0x10] sm:$0xf]
      %v217 = vld [vmem:[%s1 + $0x14] sm:$0xf]
      %v218 = vld [vmem:[%s1 + $0x18] sm:$0xf]
      %v219 = vld [vmem:[%s1 + $0x1c] sm:$0xf]
      %v220 = vld [vmem:[%s1 + $0x20] sm:$0xf]
      %v221 = vld [vmem:[%s1 + $0x24] sm:$0xf]
      %v222 = vld [vmem:[%s1 + $0x28] sm:$0xf]
      %v223 = vld [vmem:[%s1 + $0x2c] sm:$0xf]
      %v224 = vld [vmem:[%s1 + $0x30] sm:$0xf]
      %v225 = vld [vmem:[%s1 + $0x34] sm:$0xf]
      %v226 = vld [vmem:[%s1 + $0x38] sm:$0xf]
      %v227 = vld [vmem:[%s1 + $0x3c] sm:$0xf]
      %s228 = sadd.s32 %s201, 18
      %s229 = smul.addr %s228, 4
      %s230 = scalar_lea.vmem %s187, %s229
      %v231 = vld [vmem:[%s230] sm:$0xf]
      %v232 = vld [vmem:[%s230 + $0x8] sm:$0xf]
      %v233 = vld [vmem:[%s230 + $0x10] sm:$0xf]
      %v234 = vld [vmem:[%s230 + $0x18] sm:$0xf]
      %v235 = vld [vmem:[%s230 + $0x20] sm:$0xf]
      %v236 = vld [vmem:[%s230 + $0x28] sm:$0xf]
      %v237 = vld [vmem:[%s230 + $0x30] sm:$0xf]
      %v238 = vld [vmem:[%s230 + $0x38] sm:$0xf]
      %s239 = scalar_lea.vmem %s1, 64
      %v240 = vld [vmem:[%s239] sm:$0xf]
      %v241 = vld [vmem:[%s239 + $0x4] sm:$0xf]
      %v242 = vld [vmem:[%s239 + $0x8] sm:$0xf]
      %v243 = vld [vmem:[%s239 + $0xc] sm:$0xf]
      %v244 = vld [vmem:[%s239 + $0x10] sm:$0xf]
      %v245 = vld [vmem:[%s239 + $0x14] sm:$0xf]
      %v246 = vld [vmem:[%s239 + $0x18] sm:$0xf]
      %v247 = vld [vmem:[%s239 + $0x1c] sm:$0xf]
      %v248 = vld [vmem:[%s239 + $0x20] sm:$0xf]
      %v249 = vld [vmem:[%s239 + $0x24] sm:$0xf]
      %v250 = vld [vmem:[%s239 + $0x28] sm:$0xf]
      %v251 = vld [vmem:[%s239 + $0x2c] sm:$0xf]
      %v252 = vld [vmem:[%s239 + $0x30] sm:$0xf]
      %v253 = vld [vmem:[%s239 + $0x34] sm:$0xf]
      %v254 = vld [vmem:[%s239 + $0x38] sm:$0xf]
      %v255 = vld [vmem:[%s239 + $0x3c] sm:$0xf]
      %v264 = vunpack.c.l.b16 %v231
      %v265 = vunpack.c.l.b16 %v232
      %v266 = vunpack.c.l.b16 %v233
      %v267 = vunpack.c.l.b16 %v234
      %v268 = vunpack.c.l.b16 %v235
      %v269 = vunpack.c.l.b16 %v236
      %v270 = vunpack.c.l.b16 %v237
      %v271 = vunpack.c.l.b16 %v238
      %v272 = vpack.c.b16 %v265, %v264
      %v273 = vpack.c.b16 %v267, %v266
      %v274 = vpack.c.b16 %v269, %v268
      %v275 = vpack.c.b16 %v271, %v270
      %v296 = vunpack.c.l.b16 %v240
      %v297 = vunpack.c.l.b16 %v241
      %v298 = vunpack.c.l.b16 %v242
      %v299 = vunpack.c.l.b16 %v243
      %v300 = vunpack.c.l.b16 %v244
      %v301 = vunpack.c.l.b16 %v245
      %v302 = vunpack.c.l.b16 %v246
      %v303 = vunpack.c.l.b16 %v247
      %v304 = vunpack.c.l.b16 %v248
      %v305 = vunpack.c.l.b16 %v249
      %v306 = vunpack.c.l.b16 %v250
      %v307 = vunpack.c.l.b16 %v251
      %v308 = vunpack.c.l.b16 %v252
      %v309 = vunpack.c.l.b16 %v253
      %v310 = vunpack.c.l.b16 %v254
      %v311 = vunpack.c.l.b16 %v255
      %v312 = vpack.c.b16 %v297, %v296
      %v313 = vpack.c.b16 %v299, %v298
      %v314 = vpack.c.b16 %v301, %v300
      %v315 = vpack.c.b16 %v303, %v302
      %v316 = vpack.c.b16 %v305, %v304
      %v317 = vpack.c.b16 %v307, %v306
      %v318 = vpack.c.b16 %v309, %v308
      %v319 = vpack.c.b16 %v311, %v310
      %328 = vmatprep.subr.bf16.mxu0 0
      %329 = vmatpush1.bf16.msra.mxu0 %v312
      %330 = vmatprep.subr.bf16.mxu0 0
      %331 = vmatpush1.bf16.msra.mxu0 %v313
      %332 = vmatprep.subr.bf16.mxu0 0
      %333 = vmatpush1.bf16.msra.mxu0 %v314
      %334 = vmatprep.subr.bf16.mxu0 0
      %335 = vmatpush1.bf16.msra.mxu0 %v315
      %336 = vmatprep.subr.bf16.mxu0 0
      %337 = vmatpush1.bf16.msra.mxu0 %v316
      %338 = vmatprep.subr.bf16.mxu0 0
      %339 = vmatpush1.bf16.msra.mxu0 %v317
      %340 = vmatprep.subr.bf16.mxu0 0
      %341 = vmatpush1.bf16.msra.mxu0 %v318
      %342 = vmatprep.subr.bf16.mxu0 0
      %343 = vmatpush1.bf16.msra.mxu0 %v319
      %344 = vmatprep.subr.bf16.mxu0 0
      %345 = vmatpush1.bf16.msra.mxu0 0
      %346 = vmatprep.subr.bf16.mxu0 0
      %347 = vmatpush1.bf16.msra.mxu0 0
      %348 = vmatprep.subr.bf16.mxu0 0
      %349 = vmatpush1.bf16.msra.mxu0 0
      %350 = vmatprep.subr.bf16.mxu0 0
      %351 = vmatpush1.bf16.msra.mxu0 0
      %352 = vmatprep.subr.bf16.mxu0 0
      %353 = vmatpush1.bf16.msra.mxu0 0
      %354 = vmatprep.subr.bf16.mxu0 0
      %355 = vmatpush1.bf16.msra.mxu0 0
      %356 = vmatprep.subr.bf16.mxu0 0
      %357 = vmatpush1.bf16.msra.mxu0 0
      %358 = vmatprep.subr.bf16.mxu0 0
      %359 = vmatpush1.bf16.msra.mxu0 0
      %360 = vmatprep.mubr.bf16.mxu0 0
      %361 = vmatmul.mubr.bf16.gmra.mrb[0].mxu0 %v272
      %v362 = vpop.f32.mrb[0].mxu0
      %v363 = vadd.f32 0.0, %v362
      %v364 = vpop.f32.mrb[0].mxu0
      %v365 = vpop.f32.mrb[0].mxu0
      %v366 = vadd.f32 0.0, %v365
      %v367 = vpop.f32.mrb[0].mxu0
      %368 = vmatprep.mubr.bf16.mxu0 0
      %369 = vmatmul.mubr.bf16.gmra.mrb[0].mxu0 %v273
      %v370 = vpop.f32.mrb[0].mxu0
      %v371 = vadd.f32 0.0, %v370
      %v372 = vpop.f32.mrb[0].mxu0
      %v373 = vpop.f32.mrb[0].mxu0
      %v374 = vadd.f32 0.0, %v373
      %v375 = vpop.f32.mrb[0].mxu0
      %376 = vmatprep.mubr.bf16.mxu0 0
      %377 = vmatmul.mubr.bf16.gmra.mrb[0].mxu0 %v274
      %v378 = vpop.f32.mrb[0].mxu0
      %v379 = vadd.f32 0.0, %v378
      %v380 = vpop.f32.mrb[0].mxu0
      %v381 = vpop.f32.mrb[0].mxu0
      %v382 = vadd.f32 0.0, %v381
      %v383 = vpop.f32.mrb[0].mxu0
      %384 = vmatprep.mubr.bf16.mxu0 0
      %385 = vmatmul.mubr.bf16.gmra.mrb[0].mxu0 %v275
      %v386 = vpop.f32.mrb[0].mxu0
      %v387 = vadd.f32 0.0, %v386
      %v388 = vpop.f32.mrb[0].mxu0
      %v389 = vpop.f32.mrb[0].mxu0
      %v390 = vadd.f32 0.0, %v389
      %v391 = vpop.f32.mrb[0].mxu0
      %392 = vdwg.mxu0
      %v401 = vunpack.c.l.b16 %v204
      %v402 = vunpack.c.l.b16 %v205
      %v403 = vunpack.c.l.b16 %v206
      %v404 = vunpack.c.l.b16 %v207
      %v405 = vunpack.c.l.b16 %v208
      %v406 = vunpack.c.l.b16 %v209
      %v407 = vunpack.c.l.b16 %v210
      %v408 = vunpack.c.l.b16 %v211
      %v409 = vpack.c.b16 %v402, %v401
      %v410 = vpack.c.b16 %v404, %v403
      %v411 = vpack.c.b16 %v406, %v405
      %v412 = vpack.c.b16 %v408, %v407
      %v433 = vunpack.c.l.b16 %v212
      %v434 = vunpack.c.l.b16 %v213
      %v435 = vunpack.c.l.b16 %v214
      %v436 = vunpack.c.l.b16 %v215
      %v437 = vunpack.c.l.b16 %v216
      %v438 = vunpack.c.l.b16 %v217
      %v439 = vunpack.c.l.b16 %v218
      %v440 = vunpack.c.l.b16 %v219
      %v441 = vunpack.c.l.b16 %v220
      %v442 = vunpack.c.l.b16 %v221
      %v443 = vunpack.c.l.b16 %v222
      %v444 = vunpack.c.l.b16 %v223
      %v445 = vunpack.c.l.b16 %v224
      %v446 = vunpack.c.l.b16 %v225
      %v447 = vunpack.c.l.b16 %v226
      %v448 = vunpack.c.l.b16 %v227
      %v449 = vpack.c.b16 %v434, %v433
      %v450 = vpack.c.b16 %v436, %v435
      %v451 = vpack.c.b16 %v438, %v437
      %v452 = vpack.c.b16 %v440, %v439
      %v453 = vpack.c.b16 %v442, %v441
      %v454 = vpack.c.b16 %v444, %v443
      %v455 = vpack.c.b16 %v446, %v445
      %v456 = vpack.c.b16 %v448, %v447
      %465 = vmatprep.subr.bf16.mxu0 0
      %466 = vmatpush1.bf16.msra.mxu0 %v449
      %467 = vmatprep.subr.bf16.mxu0 0
      %468 = vmatpush1.bf16.msra.mxu0 %v450
      %469 = vmatprep.subr.bf16.mxu0 0
      %470 = vmatpush1.bf16.msra.mxu0 %v451
      %471 = vmatprep.subr.bf16.mxu0 0
      %472 = vmatpush1.bf16.msra.mxu0 %v452
      %473 = vmatprep.subr.bf16.mxu0 0
      %474 = vmatpush1.bf16.msra.mxu0 %v453
      %475 = vmatprep.subr.bf16.mxu0 0
      %476 = vmatpush1.bf16.msra.mxu0 %v454
      %477 = vmatprep.subr.bf16.mxu0 0
      %478 = vmatpush1.bf16.msra.mxu0 %v455
      %479 = vmatprep.subr.bf16.mxu0 0
      %480 = vmatpush1.bf16.msra.mxu0 %v456
      %481 = vmatprep.subr.bf16.mxu0 0
      %482 = vmatpush1.bf16.msra.mxu0 0
      %483 = vmatprep.subr.bf16.mxu0 0
      %484 = vmatpush1.bf16.msra.mxu0 0
      %485 = vmatprep.subr.bf16.mxu0 0
      %486 = vmatpush1.bf16.msra.mxu0 0
      %487 = vmatprep.subr.bf16.mxu0 0
      %488 = vmatpush1.bf16.msra.mxu0 0
      %489 = vmatprep.subr.bf16.mxu0 0
      %490 = vmatpush1.bf16.msra.mxu0 0
      %491 = vmatprep.subr.bf16.mxu0 0
      %492 = vmatpush1.bf16.msra.mxu0 0
      %493 = vmatprep.subr.bf16.mxu0 0
      %494 = vmatpush1.bf16.msra.mxu0 0
      %495 = vmatprep.subr.bf16.mxu0 0
      %496 = vmatpush1.bf16.msra.mxu0 0
      %497 = vmatprep.mubr.bf16.mxu0 0
      %498 = vmatmul.mubr.bf16.gmra.mrb[0].mxu0 %v409
      %v499 = vpop.f32.mrb[0].mxu0
      %v500 = vadd.f32 %v363, %v499
      %v501 = vpop.f32.mrb[0].mxu0
      %v502 = vpop.f32.mrb[0].mxu0
      %v503 = vadd.f32 %v366, %v502
      %v504 = vpop.f32.mrb[0].mxu0
      %505 = vmatprep.mubr.bf16.mxu0 0
      %506 = vmatmul.mubr.bf16.gmra.mrb[0].mxu0 %v410
      %v507 = vpop.f32.mrb[0].mxu0
      %v508 = vadd.f32 %v371, %v507
      %v509 = vpop.f32.mrb[0].mxu0
      %v510 = vpop.f32.mrb[0].mxu0
      %v511 = vadd.f32 %v374, %v510
      %v512 = vpop.f32.mrb[0].mxu0
      %513 = vmatprep.mubr.bf16.mxu0 0
      %514 = vmatmul.mubr.bf16.gmra.mrb[0].mxu0 %v411
      %v515 = vpop.f32.mrb[0].mxu0
      %v516 = vadd.f32 %v379, %v515
      %v517 = vpop.f32.mrb[0].mxu0
      %v518 = vpop.f32.mrb[0].mxu0
      %v519 = vadd.f32 %v382, %v518
      %v520 = vpop.f32.mrb[0].mxu0
      %521 = vmatprep.mubr.bf16.mxu0 0
      %522 = vmatmul.mubr.bf16.gmra.mrb[0].mxu0 %v412
      %v523 = vpop.f32.mrb[0].mxu0
      %v524 = vadd.f32 %v387, %v523
      %v525 = vpop.f32.mrb[0].mxu0
      %v526 = vpop.f32.mrb[0].mxu0
      %v527 = vadd.f32 %v390, %v526
      %v528 = vpop.f32.mrb[0].mxu0
      %529 = vdwg.mxu0
      %v530 = vld [vmem:[%s203] sm:$0xf]
      %v531 = vld [vmem:[%s203 + $0x4] sm:$0x1]
      %v532 = vld [vmem:[%s203 + $0x8] sm:$0xf]
      %v533 = vld [vmem:[%s203 + $0xc] sm:$0x1]
      %v534 = vld [vmem:[%s203 + $0x10] sm:$0xf]
      %v535 = vld [vmem:[%s203 + $0x14] sm:$0x1]
      %v536 = vld [vmem:[%s203 + $0x18] sm:$0xf]
      %v537 = vld [vmem:[%s203 + $0x1c] sm:$0x1]
      %v538 = vld [vmem:[%s203 + $0x20] sm:$0xf]
      %v539 = vld [vmem:[%s203 + $0x24] sm:$0x1]
      %v540 = vld [vmem:[%s203 + $0x28] sm:$0xf]
      %v541 = vld [vmem:[%s203 + $0x2c] sm:$0x1]
      %v542 = vld [vmem:[%s203 + $0x30] sm:$0xf]
      %v543 = vld [vmem:[%s203 + $0x34] sm:$0x1]
      %v544 = vld [vmem:[%s203 + $0x38] sm:$0xf]
      %v545 = vld [vmem:[%s203 + $0x3c] sm:$0x1]
      %vm546 = vsmask.f32 3328
      %vm547 = vsmask.f32 7440
      %vm548 = vmor %vm546, %vm547
      %v550 = vshrl.u32 %v530, 16
      %v552 = vrot.slane %v550, 4
      %v553 = vshll.u32 %v530, 16
      %v555 = vrot.slane %v553, 5
      %v556 = vor.u32 %v552, %v555
      %v557 = vrot.slane %v556, 4
      %v559 = vshll.u32 %v531, 16
      %v561 = vrot.slane %v559, 5
      %v562 = vsel %vm548, %v557, %v561
      %v564 = vshrl.u32 %v532, 16
      %v566 = vrot.slane %v564, 4
      %v567 = vshll.u32 %v532, 16
      %v569 = vrot.slane %v567, 5
      %v570 = vor.u32 %v566, %v569
      %v571 = vrot.slane %v570, 4
      %v573 = vshll.u32 %v533, 16
      %v575 = vrot.slane %v573, 5
      %v576 = vsel %vm548, %v571, %v575
      %v578 = vshrl.u32 %v534, 16
      %v580 = vrot.slane %v578, 4
      %v581 = vshll.u32 %v534, 16
      %v583 = vrot.slane %v581, 5
      %v584 = vor.u32 %v580, %v583
      %v585 = vrot.slane %v584, 4
      %v587 = vshll.u32 %v535, 16
      %v589 = vrot.slane %v587, 5
      %v590 = vsel %vm548, %v585, %v589
      %v592 = vshrl.u32 %v536, 16
      %v594 = vrot.slane %v592, 4
      %v595 = vshll.u32 %v536, 16
      %v597 = vrot.slane %v595, 5
      %v598 = vor.u32 %v594, %v597
      %v599 = vrot.slane %v598, 4
      %v601 = vshll.u32 %v537, 16
      %v603 = vrot.slane %v601, 5
      %v604 = vsel %vm548, %v599, %v603
      %v606 = vshrl.u32 %v538, 16
      %v608 = vrot.slane %v606, 4
      %v609 = vshll.u32 %v538, 16
      %v611 = vrot.slane %v609, 5
      %v612 = vor.u32 %v608, %v611
      %v613 = vrot.slane %v612, 4
      %v615 = vshll.u32 %v539, 16
      %v617 = vrot.slane %v615, 5
      %v618 = vsel %vm548, %v613, %v617
      %v620 = vshrl.u32 %v540, 16
      %v622 = vrot.slane %v620, 4
      %v623 = vshll.u32 %v540, 16
      %v625 = vrot.slane %v623, 5
      %v626 = vor.u32 %v622, %v625
      %v627 = vrot.slane %v626, 4
      %v629 = vshll.u32 %v541, 16
      %v631 = vrot.slane %v629, 5
      %v632 = vsel %vm548, %v627, %v631
      %v634 = vshrl.u32 %v542, 16
      %v636 = vrot.slane %v634, 4
      %v637 = vshll.u32 %v542, 16
      %v639 = vrot.slane %v637, 5
      %v640 = vor.u32 %v636, %v639
      %v641 = vrot.slane %v640, 4
      %v643 = vshll.u32 %v543, 16
      %v645 = vrot.slane %v643, 5
      %v646 = vsel %vm548, %v641, %v645
      %v648 = vshrl.u32 %v544, 16
      %v650 = vrot.slane %v648, 4
      %v651 = vshll.u32 %v544, 16
      %v653 = vrot.slane %v651, 5
      %v654 = vor.u32 %v650, %v653
      %v655 = vrot.slane %v654, 4
      %v657 = vshll.u32 %v545, 16
      %v659 = vrot.slane %v657, 5
      %v660 = vsel %vm548, %v655, %v659
      %s661 = scalar_lea.vmem %s1, 128
      %v662 = vld [vmem:[%s661] sm:$0xf]
      %v663 = vld [vmem:[%s661 + $0x4] sm:$0xf]
      %v664 = vld [vmem:[%s661 + $0x8] sm:$0xf]
      %v665 = vld [vmem:[%s661 + $0xc] sm:$0xf]
      %v666 = vld [vmem:[%s661 + $0x10] sm:$0xf]
      %v667 = vld [vmem:[%s661 + $0x14] sm:$0xf]
      %v668 = vld [vmem:[%s661 + $0x18] sm:$0xf]
      %v669 = vld [vmem:[%s661 + $0x1c] sm:$0xf]
      %v670 = vld [vmem:[%s661 + $0x20] sm:$0xf]
      %v671 = vld [vmem:[%s661 + $0x24] sm:$0xf]
      %v672 = vld [vmem:[%s661 + $0x28] sm:$0xf]
      %v673 = vld [vmem:[%s661 + $0x2c] sm:$0xf]
      %v674 = vld [vmem:[%s661 + $0x30] sm:$0xf]
      %v675 = vld [vmem:[%s661 + $0x34] sm:$0xf]
      %v676 = vld [vmem:[%s661 + $0x38] sm:$0xf]
      %v677 = vld [vmem:[%s661 + $0x3c] sm:$0xf]
      %v678 = vunpack.c.l.b16 %v562
      %v679 = vunpack.c.l.b16 %v576
      %v680 = vunpack.c.l.b16 %v590
      %v681 = vunpack.c.l.b16 %v604
      %v682 = vunpack.c.l.b16 %v618
      %v683 = vunpack.c.l.b16 %v632
      %v684 = vunpack.c.l.b16 %v646
      %v685 = vunpack.c.l.b16 %v660
      %v686 = vpack.c.b16 %v679, %v678
      %v687 = vpack.c.b16 %v681, %v680
      %v688 = vpack.c.b16 %v683, %v682
      %v689 = vpack.c.b16 %v685, %v684
      %v710 = vunpack.c.l.b16 %v662
      %v711 = vunpack.c.l.b16 %v663
      %v712 = vunpack.c.l.b16 %v664
      %v713 = vunpack.c.l.b16 %v665
      %v714 = vunpack.c.l.b16 %v666
      %v715 = vunpack.c.l.b16 %v667
      %v716 = vunpack.c.l.b16 %v668
      %v717 = vunpack.c.l.b16 %v669
      %v718 = vunpack.c.l.b16 %v670
      %v719 = vunpack.c.l.b16 %v671
      %v720 = vunpack.c.l.b16 %v672
      %v721 = vunpack.c.l.b16 %v673
      %v722 = vunpack.c.l.b16 %v674
      %v723 = vunpack.c.l.b16 %v675
      %v724 = vunpack.c.l.b16 %v676
      %v725 = vunpack.c.l.b16 %v677
      %v726 = vpack.c.b16 %v711, %v710
      %v727 = vpack.c.b16 %v713, %v712
      %v728 = vpack.c.b16 %v715, %v714
      %v729 = vpack.c.b16 %v717, %v716
      %v730 = vpack.c.b16 %v719, %v718
      %v731 = vpack.c.b16 %v721, %v720
      %v732 = vpack.c.b16 %v723, %v722
      %v733 = vpack.c.b16 %v725, %v724
      %742 = vmatprep.subr.bf16.mxu0 0
      %743 = vmatpush1.bf16.msra.mxu0 %v726
      %744 = vmatprep.subr.bf16.mxu0 0
      %745 = vmatpush1.bf16.msra.mxu0 %v727
      %746 = vmatprep.subr.bf16.mxu0 0
      %747 = vmatpush1.bf16.msra.mxu0 %v728
      %748 = vmatprep.subr.bf16.mxu0 0
      %749 = vmatpush1.bf16.msra.mxu0 %v729
      %750 = vmatprep.subr.bf16.mxu0 0
      %751 = vmatpush1.bf16.msra.mxu0 %v730
      %752 = vmatprep.subr.bf16.mxu0 0
      %753 = vmatpush1.bf16.msra.mxu0 %v731
      %754 = vmatprep.subr.bf16.mxu0 0
      %755 = vmatpush1.bf16.msra.mxu0 %v732
      %756 = vmatprep.subr.bf16.mxu0 0
      %757 = vmatpush1.bf16.msra.mxu0 %v733
      %758 = vmatprep.subr.bf16.mxu0 0
      %759 = vmatpush1.bf16.msra.mxu0 0
      %760 = vmatprep.subr.bf16.mxu0 0
      %761 = vmatpush1.bf16.msra.mxu0 0
      %762 = vmatprep.subr.bf16.mxu0 0
      %763 = vmatpush1.bf16.msra.mxu0 0
      %764 = vmatprep.subr.bf16.mxu0 0
      %765 = vmatpush1.bf16.msra.mxu0 0
      %766 = vmatprep.subr.bf16.mxu0 0
      %767 = vmatpush1.bf16.msra.mxu0 0
      %768 = vmatprep.subr.bf16.mxu0 0
      %769 = vmatpush1.bf16.msra.mxu0 0
      %770 = vmatprep.subr.bf16.mxu0 0
      %771 = vmatpush1.bf16.msra.mxu0 0
      %772 = vmatprep.subr.bf16.mxu0 0
      %773 = vmatpush1.bf16.msra.mxu0 0
      %774 = vmatprep.mubr.bf16.mxu0 0
      %775 = vmatmul.mubr.bf16.gmra.mrb[0].mxu0 %v686
      %v776 = vpop.f32.mrb[0].mxu0
      %v777 = vadd.f32 0.0, %v776
      %v778 = vpop.f32.mrb[0].mxu0
      %v779 = vpop.f32.mrb[0].mxu0
      %v780 = vadd.f32 0.0, %v779
      %v781 = vpop.f32.mrb[0].mxu0
      %782 = vmatprep.mubr.bf16.mxu0 0
      %783 = vmatmul.mubr.bf16.gmra.mrb[0].mxu0 %v687
      %v784 = vpop.f32.mrb[0].mxu0
      %v785 = vadd.f32 0.0, %v784
      %v786 = vpop.f32.mrb[0].mxu0
      %v787 = vpop.f32.mrb[0].mxu0
      %v788 = vadd.f32 0.0, %v787
      %v789 = vpop.f32.mrb[0].mxu0
      %790 = vmatprep.mubr.bf16.mxu0 0
      %791 = vmatmul.mubr.bf16.gmra.mrb[0].mxu0 %v688
      %v792 = vpop.f32.mrb[0].mxu0
      %v793 = vadd.f32 0.0, %v792
      %v794 = vpop.f32.mrb[0].mxu0
      %v795 = vpop.f32.mrb[0].mxu0
      %v796 = vadd.f32 0.0, %v795
      %v797 = vpop.f32.mrb[0].mxu0
      %798 = vmatprep.mubr.bf16.mxu0 0
      %799 = vmatmul.mubr.bf16.gmra.mrb[0].mxu0 %v689
      %v800 = vpop.f32.mrb[0].mxu0
      %v801 = vadd.f32 0.0, %v800
      %v802 = vpop.f32.mrb[0].mxu0
      %v803 = vpop.f32.mrb[0].mxu0
      %v804 = vadd.f32 0.0, %v803
      %v805 = vpop.f32.mrb[0].mxu0
      %806 = vdwg.mxu0
      %v807 = vadd.f32 %v500, %v777
      %v808 = vadd.f32 %v503, %v780
      %v809 = vadd.f32 %v508, %v785
      %v810 = vadd.f32 %v511, %v788
      %v811 = vadd.f32 %v516, %v793
      %v812 = vadd.f32 %v519, %v796
      %v813 = vadd.f32 %v524, %v801
      %v814 = vadd.f32 %v527, %v804
      %s815 = sadd.s32 %s201, 36
      %s816 = smul.addr %s815, 4
      %s817 = scalar_lea.vmem %s187, %s816
      %v818 = vld [vmem:[%s817] sm:$0xf]
      %v819 = vld [vmem:[%s817 + $0x8] sm:$0xf]
      %v820 = vld [vmem:[%s817 + $0x10] sm:$0xf]
      %v821 = vld [vmem:[%s817 + $0x18] sm:$0xf]
      %v822 = vld [vmem:[%s817 + $0x20] sm:$0xf]
      %v823 = vld [vmem:[%s817 + $0x28] sm:$0xf]
      %v824 = vld [vmem:[%s817 + $0x30] sm:$0xf]
      %v825 = vld [vmem:[%s817 + $0x38] sm:$0xf]
      %s826 = scalar_lea.vmem %s1, 192
      %v827 = vld [vmem:[%s826] sm:$0xf]
      %v828 = vld [vmem:[%s826 + $0x4] sm:$0xf]
      %v829 = vld [vmem:[%s826 + $0x8] sm:$0xf]
      %v830 = vld [vmem:[%s826 + $0xc] sm:$0xf]
      %v831 = vld [vmem:[%s826 + $0x10] sm:$0xf]
      %v832 = vld [vmem:[%s826 + $0x14] sm:$0xf]
      %v833 = vld [vmem:[%s826 + $0x18] sm:$0xf]
      %v834 = vld [vmem:[%s826 + $0x1c] sm:$0xf]
      %v835 = vld [vmem:[%s826 + $0x20] sm:$0xf]
      %v836 = vld [vmem:[%s826 + $0x24] sm:$0xf]
      %v837 = vld [vmem:[%s826 + $0x28] sm:$0xf]
      %v838 = vld [vmem:[%s826 + $0x2c] sm:$0xf]
      %v839 = vld [vmem:[%s826 + $0x30] sm:$0xf]
      %v840 = vld [vmem:[%s826 + $0x34] sm:$0xf]
      %v841 = vld [vmem:[%s826 + $0x38] sm:$0xf]
      %v842 = vld [vmem:[%s826 + $0x3c] sm:$0xf]
      %v851 = vunpack.c.l.b16 %v818
      %v852 = vunpack.c.l.b16 %v819
      %v853 = vunpack.c.l.b16 %v820
      %v854 = vunpack.c.l.b16 %v821
      %v855 = vunpack.c.l.b16 %v822
      %v856 = vunpack.c.l.b16 %v823
      %v857 = vunpack.c.l.b16 %v824
      %v858 = vunpack.c.l.b16 %v825
      %v859 = vpack.c.b16 %v852, %v851
      %v860 = vpack.c.b16 %v854, %v853
      %v861 = vpack.c.b16 %v856, %v855
      %v862 = vpack.c.b16 %v858, %v857
      %v883 = vunpack.c.l.b16 %v827
      %v884 = vunpack.c.l.b16 %v828
      %v885 = vunpack.c.l.b16 %v829
      %v886 = vunpack.c.l.b16 %v830
      %v887 = vunpack.c.l.b16 %v831
      %v888 = vunpack.c.l.b16 %v832
      %v889 = vunpack.c.l.b16 %v833
      %v890 = vunpack.c.l.b16 %v834
      %v891 = vunpack.c.l.b16 %v835
      %v892 = vunpack.c.l.b16 %v836
      %v893 = vunpack.c.l.b16 %v837
      %v894 = vunpack.c.l.b16 %v838
      %v895 = vunpack.c.l.b16 %v839
      %v896 = vunpack.c.l.b16 %v840
      %v897 = vunpack.c.l.b16 %v841
      %v898 = vunpack.c.l.b16 %v842
      %v899 = vpack.c.b16 %v884, %v883
      %v900 = vpack.c.b16 %v886, %v885
      %v901 = vpack.c.b16 %v888, %v887
      %v902 = vpack.c.b16 %v890, %v889
      %v903 = vpack.c.b16 %v892, %v891
      %v904 = vpack.c.b16 %v894, %v893
      %v905 = vpack.c.b16 %v896, %v895
      %v906 = vpack.c.b16 %v898, %v897
      %915 = vmatprep.subr.bf16.mxu0 0
      %916 = vmatpush1.bf16.msra.mxu0 %v899
      %917 = vmatprep.subr.bf16.mxu0 0
      %918 = vmatpush1.bf16.msra.mxu0 %v900
      %919 = vmatprep.subr.bf16.mxu0 0
      %920 = vmatpush1.bf16.msra.mxu0 %v901
      %921 = vmatprep.subr.bf16.mxu0 0
      %922 = vmatpush1.bf16.msra.mxu0 %v902
      %923 = vmatprep.subr.bf16.mxu0 0
      %924 = vmatpush1.bf16.msra.mxu0 %v903
      %925 = vmatprep.subr.bf16.mxu0 0
      %926 = vmatpush1.bf16.msra.mxu0 %v904
      %927 = vmatprep.subr.bf16.mxu0 0
      %928 = vmatpush1.bf16.msra.mxu0 %v905
      %929 = vmatprep.subr.bf16.mxu0 0
      %930 = vmatpush1.bf16.msra.mxu0 %v906
      %931 = vmatprep.subr.bf16.mxu0 0
      %932 = vmatpush1.bf16.msra.mxu0 0
      %933 = vmatprep.subr.bf16.mxu0 0
      %934 = vmatpush1.bf16.msra.mxu0 0
      %935 = vmatprep.subr.bf16.mxu0 0
      %936 = vmatpush1.bf16.msra.mxu0 0
      %937 = vmatprep.subr.bf16.mxu0 0
      %938 = vmatpush1.bf16.msra.mxu0 0
      %939 = vmatprep.subr.bf16.mxu0 0
      %940 = vmatpush1.bf16.msra.mxu0 0
      %941 = vmatprep.subr.bf16.mxu0 0
      %942 = vmatpush1.bf16.msra.mxu0 0
      %943 = vmatprep.subr.bf16.mxu0 0
      %944 = vmatpush1.bf16.msra.mxu0 0
      %945 = vmatprep.subr.bf16.mxu0 0
      %946 = vmatpush1.bf16.msra.mxu0 0
      %947 = vmatprep.mubr.bf16.mxu0 0
      %948 = vmatmul.mubr.bf16.gmra.mrb[0].mxu0 %v859
      %v949 = vpop.f32.mrb[0].mxu0
      %v950 = vadd.f32 0.0, %v949
      %v951 = vpop.f32.mrb[0].mxu0
      %v952 = vpop.f32.mrb[0].mxu0
      %v953 = vadd.f32 0.0, %v952
      %v954 = vpop.f32.mrb[0].mxu0
      %955 = vmatprep.mubr.bf16.mxu0 0
      %956 = vmatmul.mubr.bf16.gmra.mrb[0].mxu0 %v860
      %v957 = vpop.f32.mrb[0].mxu0
      %v958 = vadd.f32 0.0, %v957
      %v959 = vpop.f32.mrb[0].mxu0
      %v960 = vpop.f32.mrb[0].mxu0
      %v961 = vadd.f32 0.0, %v960
      %v962 = vpop.f32.mrb[0].mxu0
      %963 = vmatprep.mubr.bf16.mxu0 0
      %964 = vmatmul.mubr.bf16.gmra.mrb[0].mxu0 %v861
      %v965 = vpop.f32.mrb[0].mxu0
      %v966 = vadd.f32 0.0, %v965
      %v967 = vpop.f32.mrb[0].mxu0
      %v968 = vpop.f32.mrb[0].mxu0
      %v969 = vadd.f32 0.0, %v968
      %v970 = vpop.f32.mrb[0].mxu0
      %971 = vmatprep.mubr.bf16.mxu0 0
      %972 = vmatmul.mubr.bf16.gmra.mrb[0].mxu0 %v862
      %v973 = vpop.f32.mrb[0].mxu0
      %v974 = vadd.f32 0.0, %v973
      %v975 = vpop.f32.mrb[0].mxu0
      %v976 = vpop.f32.mrb[0].mxu0
      %v977 = vadd.f32 0.0, %v976
      %v978 = vpop.f32.mrb[0].mxu0
      %979 = vdwg.mxu0
      %v980 = vadd.f32 %v807, %v950
      %v981 = vadd.f32 %v808, %v953
      %v982 = vadd.f32 %v809, %v958
      %v983 = vadd.f32 %v810, %v961
      %v984 = vadd.f32 %v811, %v966
      %v985 = vadd.f32 %v812, %v969
      %v986 = vadd.f32 %v813, %v974
      %v987 = vadd.f32 %v814, %v977
      %s988 = sadd.s32 %s201, 54
      %s989 = smul.addr %s988, 4
      %s990 = scalar_lea.vmem %s187, %s989
      %v991 = vld [vmem:[%s990] sm:$0xf]
      %v992 = vld [vmem:[%s990 + $0x8] sm:$0xf]
      %v993 = vld [vmem:[%s990 + $0x10] sm:$0xf]
      %v994 = vld [vmem:[%s990 + $0x18] sm:$0xf]
      %v995 = vld [vmem:[%s990 + $0x20] sm:$0xf]
      %v996 = vld [vmem:[%s990 + $0x28] sm:$0xf]
      %v997 = vld [vmem:[%s990 + $0x30] sm:$0xf]
      %v998 = vld [vmem:[%s990 + $0x38] sm:$0xf]
      %s999 = scalar_lea.vmem %s1, 256
      %v1000 = vld [vmem:[%s999] sm:$0xf]
      %v1001 = vld [vmem:[%s999 + $0x4] sm:$0xf]
      %v1002 = vld [vmem:[%s999 + $0x8] sm:$0xf]
      %v1003 = vld [vmem:[%s999 + $0xc] sm:$0xf]
      %v1004 = vld [vmem:[%s999 + $0x10] sm:$0xf]
      %v1005 = vld [vmem:[%s999 + $0x14] sm:$0xf]
      %v1006 = vld [vmem:[%s999 + $0x18] sm:$0xf]
      %v1007 = vld [vmem:[%s999 + $0x1c] sm:$0xf]
      %v1008 = vld [vmem:[%s999 + $0x20] sm:$0xf]
      %v1009 = vld [vmem:[%s999 + $0x24] sm:$0xf]
      %v1010 = vld [vmem:[%s999 + $0x28] sm:$0xf]
      %v1011 = vld [vmem:[%s999 + $0x2c] sm:$0xf]
      %v1012 = vld [vmem:[%s999 + $0x30] sm:$0xf]
      %v1013 = vld [vmem:[%s999 + $0x34] sm:$0xf]
      %v1014 = vld [vmem:[%s999 + $0x38] sm:$0xf]
      %v1015 = vld [vmem:[%s999 + $0x3c] sm:$0xf]
      %v1024 = vunpack.c.l.b16 %v991
      %v1025 = vunpack.c.l.b16 %v992
      %v1026 = vunpack.c.l.b16 %v993
      %v1027 = vunpack.c.l.b16 %v994
      %v1028 = vunpack.c.l.b16 %v995
      %v1029 = vunpack.c.l.b16 %v996
      %v1030 = vunpack.c.l.b16 %v997
      %v1031 = vunpack.c.l.b16 %v998
      %v1032 = vpack.c.b16 %v1025, %v1024
      %v1033 = vpack.c.b16 %v1027, %v1026
      %v1034 = vpack.c.b16 %v1029, %v1028
      %v1035 = vpack.c.b16 %v1031, %v1030
      %v1056 = vunpack.c.l.b16 %v1000
      %v1057 = vunpack.c.l.b16 %v1001
      %v1058 = vunpack.c.l.b16 %v1002
      %v1059 = vunpack.c.l.b16 %v1003
      %v1060 = vunpack.c.l.b16 %v1004
      %v1061 = vunpack.c.l.b16 %v1005
      %v1062 = vunpack.c.l.b16 %v1006
      %v1063 = vunpack.c.l.b16 %v1007
      %v1064 = vunpack.c.l.b16 %v1008
      %v1065 = vunpack.c.l.b16 %v1009
      %v1066 = vunpack.c.l.b16 %v1010
      %v1067 = vunpack.c.l.b16 %v1011
      %v1068 = vunpack.c.l.b16 %v1012
      %v1069 = vunpack.c.l.b16 %v1013
      %v1070 = vunpack.c.l.b16 %v1014
      %v1071 = vunpack.c.l.b16 %v1015
      %v1072 = vpack.c.b16 %v1057, %v1056
      %v1073 = vpack.c.b16 %v1059, %v1058
      %v1074 = vpack.c.b16 %v1061, %v1060
      %v1075 = vpack.c.b16 %v1063, %v1062
      %v1076 = vpack.c.b16 %v1065, %v1064
      %v1077 = vpack.c.b16 %v1067, %v1066
      %v1078 = vpack.c.b16 %v1069, %v1068
      %v1079 = vpack.c.b16 %v1071, %v1070
      %1088 = vmatprep.subr.bf16.mxu0 0
      %1089 = vmatpush1.bf16.msra.mxu0 %v1072
      %1090 = vmatprep.subr.bf16.mxu0 0
      %1091 = vmatpush1.bf16.msra.mxu0 %v1073
      %1092 = vmatprep.subr.bf16.mxu0 0
      %1093 = vmatpush1.bf16.msra.mxu0 %v1074
      %1094 = vmatprep.subr.bf16.mxu0 0
      %1095 = vmatpush1.bf16.msra.mxu0 %v1075
      %1096 = vmatprep.subr.bf16.mxu0 0
      %1097 = vmatpush1.bf16.msra.mxu0 %v1076
      %1098 = vmatprep.subr.bf16.mxu0 0
      %1099 = vmatpush1.bf16.msra.mxu0 %v1077
      %1100 = vmatprep.subr.bf16.mxu0 0
      %1101 = vmatpush1.bf16.msra.mxu0 %v1078
      %1102 = vmatprep.subr.bf16.mxu0 0
      %1103 = vmatpush1.bf16.msra.mxu0 %v1079
      %1104 = vmatprep.subr.bf16.mxu0 0
      %1105 = vmatpush1.bf16.msra.mxu0 0
      %1106 = vmatprep.subr.bf16.mxu0 0
      %1107 = vmatpush1.bf16.msra.mxu0 0
      %1108 = vmatprep.subr.bf16.mxu0 0
      %1109 = vmatpush1.bf16.msra.mxu0 0
      %1110 = vmatprep.subr.bf16.mxu0 0
      %1111 = vmatpush1.bf16.msra.mxu0 0
      %1112 = vmatprep.subr.bf16.mxu0 0
      %1113 = vmatpush1.bf16.msra.mxu0 0
      %1114 = vmatprep.subr.bf16.mxu0 0
      %1115 = vmatpush1.bf16.msra.mxu0 0
      %1116 = vmatprep.subr.bf16.mxu0 0
      %1117 = vmatpush1.bf16.msra.mxu0 0
      %1118 = vmatprep.subr.bf16.mxu0 0
      %1119 = vmatpush1.bf16.msra.mxu0 0
      %1120 = vmatprep.mubr.bf16.mxu0 0
      %1121 = vmatmul.mubr.bf16.gmra.mrb[0].mxu0 %v1032
      %v1122 = vpop.f32.mrb[0].mxu0
      %v1123 = vadd.f32 0.0, %v1122
      %v1124 = vpop.f32.mrb[0].mxu0
      %v1125 = vpop.f32.mrb[0].mxu0
      %v1126 = vadd.f32 0.0, %v1125
      %v1127 = vpop.f32.mrb[0].mxu0
      %1128 = vmatprep.mubr.bf16.mxu0 0
      %1129 = vmatmul.mubr.bf16.gmra.mrb[0].mxu0 %v1033
      %v1130 = vpop.f32.mrb[0].mxu0
      %v1131 = vadd.f32 0.0, %v1130
      %v1132 = vpop.f32.mrb[0].mxu0
      %v1133 = vpop.f32.mrb[0].mxu0
      %v1134 = vadd.f32 0.0, %v1133
      %v1135 = vpop.f32.mrb[0].mxu0
      %1136 = vmatprep.mubr.bf16.mxu0 0
      %1137 = vmatmul.mubr.bf16.gmra.mrb[0].mxu0 %v1034
      %v1138 = vpop.f32.mrb[0].mxu0
      %v1139 = vadd.f32 0.0, %v1138
      %v1140 = vpop.f32.mrb[0].mxu0
      %v1141 = vpop.f32.mrb[0].mxu0
      %v1142 = vadd.f32 0.0, %v1141
      %v1143 = vpop.f32.mrb[0].mxu0
      %1144 = vmatprep.mubr.bf16.mxu0 0
      %1145 = vmatmul.mubr.bf16.gmra.mrb[0].mxu0 %v1035
      %v1146 = vpop.f32.mrb[0].mxu0
      %v1147 = vadd.f32 0.0, %v1146
      %v1148 = vpop.f32.mrb[0].mxu0
      %v1149 = vpop.f32.mrb[0].mxu0
      %v1150 = vadd.f32 0.0, %v1149
      %v1151 = vpop.f32.mrb[0].mxu0
      %1152 = vdwg.mxu0
      %v1153 = vadd.f32 %v980, %v1123
      %v1154 = vadd.f32 %v981, %v1126
      %v1155 = vadd.f32 %v982, %v1131
      %v1156 = vadd.f32 %v983, %v1134
      %v1157 = vadd.f32 %v984, %v1139
      %v1158 = vadd.f32 %v985, %v1142
      %v1159 = vadd.f32 %v986, %v1147
      %v1160 = vadd.f32 %v987, %v1150
      %v1161 = vld [vmem:[%s817] sm:$0xf]
      %v1162 = vld [vmem:[%s817 + $0x4] sm:$0x1]
      %v1163 = vld [vmem:[%s817 + $0x8] sm:$0xf]
      %v1164 = vld [vmem:[%s817 + $0xc] sm:$0x1]
      %v1165 = vld [vmem:[%s817 + $0x10] sm:$0xf]
      %v1166 = vld [vmem:[%s817 + $0x14] sm:$0x1]
      %v1167 = vld [vmem:[%s817 + $0x18] sm:$0xf]
      %v1168 = vld [vmem:[%s817 + $0x1c] sm:$0x1]
      %v1169 = vld [vmem:[%s817 + $0x20] sm:$0xf]
      %v1170 = vld [vmem:[%s817 + $0x24] sm:$0x1]
      %v1171 = vld [vmem:[%s817 + $0x28] sm:$0xf]
      %v1172 = vld [vmem:[%s817 + $0x2c] sm:$0x1]
      %v1173 = vld [vmem:[%s817 + $0x30] sm:$0xf]
      %v1174 = vld [vmem:[%s817 + $0x34] sm:$0x1]
      %v1175 = vld [vmem:[%s817 + $0x38] sm:$0xf]
      %v1176 = vld [vmem:[%s817 + $0x3c] sm:$0x1]
      %v1178 = vshrl.u32 %v1161, 16
      %v1180 = vrot.slane %v1178, 4
      %v1181 = vshll.u32 %v1161, 16
      %v1183 = vrot.slane %v1181, 5
      %v1184 = vor.u32 %v1180, %v1183
      %v1185 = vrot.slane %v1184, 4
      %v1187 = vshll.u32 %v1162, 16
      %v1189 = vrot.slane %v1187, 5
      %v1190 = vsel %vm548, %v1185, %v1189
      %v1192 = vshrl.u32 %v1163, 16
      %v1194 = vrot.slane %v1192, 4
      %v1195 = vshll.u32 %v1163, 16
      %v1197 = vrot.slane %v1195, 5
      %v1198 = vor.u32 %v1194, %v1197
      %v1199 = vrot.slane %v1198, 4
      %v1201 = vshll.u32 %v1164, 16
      %v1203 = vrot.slane %v1201, 5
      %v1204 = vsel %vm548, %v1199, %v1203
      %v1206 = vshrl.u32 %v1165, 16
      %v1208 = vrot.slane %v1206, 4
      %v1209 = vshll.u32 %v1165, 16
      %v1211 = vrot.slane %v1209, 5
      %v1212 = vor.u32 %v1208, %v1211
      %v1213 = vrot.slane %v1212, 4
      %v1215 = vshll.u32 %v1166, 16
      %v1217 = vrot.slane %v1215, 5
      %v1218 = vsel %vm548, %v1213, %v1217
      %v1220 = vshrl.u32 %v1167, 16
      %v1222 = vrot.slane %v1220, 4
      %v1223 = vshll.u32 %v1167, 16
      %v1225 = vrot.slane %v1223, 5
      %v1226 = vor.u32 %v1222, %v1225
      %v1227 = vrot.slane %v1226, 4
      %v1229 = vshll.u32 %v1168, 16
      %v1231 = vrot.slane %v1229, 5
      %v1232 = vsel %vm548, %v1227, %v1231
      %v1234 = vshrl.u32 %v1169, 16
      %v1236 = vrot.slane %v1234, 4
      %v1237 = vshll.u32 %v1169, 16
      %v1239 = vrot.slane %v1237, 5
      %v1240 = vor.u32 %v1236, %v1239
      %v1241 = vrot.slane %v1240, 4
      %v1243 = vshll.u32 %v1170, 16
      %v1245 = vrot.slane %v1243, 5
      %v1246 = vsel %vm548, %v1241, %v1245
      %v1248 = vshrl.u32 %v1171, 16
      %v1250 = vrot.slane %v1248, 4
      %v1251 = vshll.u32 %v1171, 16
      %v1253 = vrot.slane %v1251, 5
      %v1254 = vor.u32 %v1250, %v1253
      %v1255 = vrot.slane %v1254, 4
      %v1257 = vshll.u32 %v1172, 16
      %v1259 = vrot.slane %v1257, 5
      %v1260 = vsel %vm548, %v1255, %v1259
      %v1262 = vshrl.u32 %v1173, 16
      %v1264 = vrot.slane %v1262, 4
      %v1265 = vshll.u32 %v1173, 16
      %v1267 = vrot.slane %v1265, 5
      %v1268 = vor.u32 %v1264, %v1267
      %v1269 = vrot.slane %v1268, 4
      %v1271 = vshll.u32 %v1174, 16
      %v1273 = vrot.slane %v1271, 5
      %v1274 = vsel %vm548, %v1269, %v1273
      %v1276 = vshrl.u32 %v1175, 16
      %v1278 = vrot.slane %v1276, 4
      %v1279 = vshll.u32 %v1175, 16
      %v1281 = vrot.slane %v1279, 5
      %v1282 = vor.u32 %v1278, %v1281
      %v1283 = vrot.slane %v1282, 4
      %v1285 = vshll.u32 %v1176, 16
      %v1287 = vrot.slane %v1285, 5
      %v1288 = vsel %vm548, %v1283, %v1287
      %s1289 = scalar_lea.vmem %s1, 320
      %v1290 = vld [vmem:[%s1289] sm:$0xf]
      %v1291 = vld [vmem:[%s1289 + $0x4] sm:$0xf]
      %v1292 = vld [vmem:[%s1289 + $0x8] sm:$0xf]
      %v1293 = vld [vmem:[%s1289 + $0xc] sm:$0xf]
      %v1294 = vld [vmem:[%s1289 + $0x10] sm:$0xf]
      %v1295 = vld [vmem:[%s1289 + $0x14] sm:$0xf]
      %v1296 = vld [vmem:[%s1289 + $0x18] sm:$0xf]
      %v1297 = vld [vmem:[%s1289 + $0x1c] sm:$0xf]
      %v1298 = vld [vmem:[%s1289 + $0x20] sm:$0xf]
      %v1299 = vld [vmem:[%s1289 + $0x24] sm:$0xf]
      %v1300 = vld [vmem:[%s1289 + $0x28] sm:$0xf]
      %v1301 = vld [vmem:[%s1289 + $0x2c] sm:$0xf]
      %v1302 = vld [vmem:[%s1289 + $0x30] sm:$0xf]
      %v1303 = vld [vmem:[%s1289 + $0x34] sm:$0xf]
      %v1304 = vld [vmem:[%s1289 + $0x38] sm:$0xf]
      %v1305 = vld [vmem:[%s1289 + $0x3c] sm:$0xf]
      %v1306 = vunpack.c.l.b16 %v1190
      %v1307 = vunpack.c.l.b16 %v1204
      %v1308 = vunpack.c.l.b16 %v1218
      %v1309 = vunpack.c.l.b16 %v1232
      %v1310 = vunpack.c.l.b16 %v1246
      %v1311 = vunpack.c.l.b16 %v1260
      %v1312 = vunpack.c.l.b16 %v1274
      %v1313 = vunpack.c.l.b16 %v1288
      %v1314 = vpack.c.b16 %v1307, %v1306
      %v1315 = vpack.c.b16 %v1309, %v1308
      %v1316 = vpack.c.b16 %v1311, %v1310
      %v1317 = vpack.c.b16 %v1313, %v1312
      %v1338 = vunpack.c.l.b16 %v1290
      %v1339 = vunpack.c.l.b16 %v1291
      %v1340 = vunpack.c.l.b16 %v1292
      %v1341 = vunpack.c.l.b16 %v1293
      %v1342 = vunpack.c.l.b16 %v1294
      %v1343 = vunpack.c.l.b16 %v1295
      %v1344 = vunpack.c.l.b16 %v1296
      %v1345 = vunpack.c.l.b16 %v1297
      %v1346 = vunpack.c.l.b16 %v1298
      %v1347 = vunpack.c.l.b16 %v1299
      %v1348 = vunpack.c.l.b16 %v1300
      %v1349 = vunpack.c.l.b16 %v1301
      %v1350 = vunpack.c.l.b16 %v1302
      %v1351 = vunpack.c.l.b16 %v1303
      %v1352 = vunpack.c.l.b16 %v1304
      %v1353 = vunpack.c.l.b16 %v1305
      %v1354 = vpack.c.b16 %v1339, %v1338
      %v1355 = vpack.c.b16 %v1341, %v1340
      %v1356 = vpack.c.b16 %v1343, %v1342
      %v1357 = vpack.c.b16 %v1345, %v1344
      %v1358 = vpack.c.b16 %v1347, %v1346
      %v1359 = vpack.c.b16 %v1349, %v1348
      %v1360 = vpack.c.b16 %v1351, %v1350
      %v1361 = vpack.c.b16 %v1353, %v1352
      %1370 = vmatprep.subr.bf16.mxu0 0
      %1371 = vmatpush1.bf16.msra.mxu0 %v1354
      %1372 = vmatprep.subr.bf16.mxu0 0
      %1373 = vmatpush1.bf16.msra.mxu0 %v1355
      %1374 = vmatprep.subr.bf16.mxu0 0
      %1375 = vmatpush1.bf16.msra.mxu0 %v1356
      %1376 = vmatprep.subr.bf16.mxu0 0
      %1377 = vmatpush1.bf16.msra.mxu0 %v1357
      %1378 = vmatprep.subr.bf16.mxu0 0
      %1379 = vmatpush1.bf16.msra.mxu0 %v1358
      %1380 = vmatprep.subr.bf16.mxu0 0
      %1381 = vmatpush1.bf16.msra.mxu0 %v1359
      %1382 = vmatprep.subr.bf16.mxu0 0
      %1383 = vmatpush1.bf16.msra.mxu0 %v1360
      %1384 = vmatprep.subr.bf16.mxu0 0
      %1385 = vmatpush1.bf16.msra.mxu0 %v1361
      %1386 = vmatprep.subr.bf16.mxu0 0
      %1387 = vmatpush1.bf16.msra.mxu0 0
      %1388 = vmatprep.subr.bf16.mxu0 0
      %1389 = vmatpush1.bf16.msra.mxu0 0
      %1390 = vmatprep.subr.bf16.mxu0 0
      %1391 = vmatpush1.bf16.msra.mxu0 0
      %1392 = vmatprep.subr.bf16.mxu0 0
      %1393 = vmatpush1.bf16.msra.mxu0 0
      %1394 = vmatprep.subr.bf16.mxu0 0
      %1395 = vmatpush1.bf16.msra.mxu0 0
      %1396 = vmatprep.subr.bf16.mxu0 0
      %1397 = vmatpush1.bf16.msra.mxu0 0
      %1398 = vmatprep.subr.bf16.mxu0 0
      %1399 = vmatpush1.bf16.msra.mxu0 0
      %1400 = vmatprep.subr.bf16.mxu0 0
      %1401 = vmatpush1.bf16.msra.mxu0 0
      %1402 = vmatprep.mubr.bf16.mxu0 0
      %1403 = vmatmul.mubr.bf16.gmra.mrb[0].mxu0 %v1314
      %v1404 = vpop.f32.mrb[0].mxu0
      %v1405 = vadd.f32 0.0, %v1404
      %v1406 = vpop.f32.mrb[0].mxu0
      %v1407 = vpop.f32.mrb[0].mxu0
      %v1408 = vadd.f32 0.0, %v1407
      %v1409 = vpop.f32.mrb[0].mxu0
      %1410 = vmatprep.mubr.bf16.mxu0 0
      %1411 = vmatmul.mubr.bf16.gmra.mrb[0].mxu0 %v1315
      %v1412 = vpop.f32.mrb[0].mxu0
      %v1413 = vadd.f32 0.0, %v1412
      %v1414 = vpop.f32.mrb[0].mxu0
      %v1415 = vpop.f32.mrb[0].mxu0
      %v1416 = vadd.f32 0.0, %v1415
      %v1417 = vpop.f32.mrb[0].mxu0
      %1418 = vmatprep.mubr.bf16.mxu0 0
      %1419 = vmatmul.mubr.bf16.gmra.mrb[0].mxu0 %v1316
      %v1420 = vpop.f32.mrb[0].mxu0
      %v1421 = vadd.f32 0.0, %v1420
      %v1422 = vpop.f32.mrb[0].mxu0
      %v1423 = vpop.f32.mrb[0].mxu0
      %v1424 = vadd.f32 0.0, %v1423
      %v1425 = vpop.f32.mrb[0].mxu0
      %1426 = vmatprep.mubr.bf16.mxu0 0
      %1427 = vmatmul.mubr.bf16.gmra.mrb[0].mxu0 %v1317
      %v1428 = vpop.f32.mrb[0].mxu0
      %v1429 = vadd.f32 0.0, %v1428
      %v1430 = vpop.f32.mrb[0].mxu0
      %v1431 = vpop.f32.mrb[0].mxu0
      %v1432 = vadd.f32 0.0, %v1431
      %v1433 = vpop.f32.mrb[0].mxu0
      %1434 = vdwg.mxu0
      %v1435 = vadd.f32 %v1153, %v1405
      %v1436 = vadd.f32 %v1154, %v1408
      %v1437 = vadd.f32 %v1155, %v1413
      %v1438 = vadd.f32 %v1156, %v1416
      %v1439 = vadd.f32 %v1157, %v1421
      %v1440 = vadd.f32 %v1158, %v1424
      %v1441 = vadd.f32 %v1159, %v1429
      %v1442 = vadd.f32 %v1160, %v1432
      %s1443 = sadd.s32 %s200, 1
      %s1444 = smul.u32 %s1443, 2
      %s1445 = smul.addr %s1444, 4
      %s1446 = scalar_lea.vmem %s187, %s1445
      %v1447 = vld [vmem:[%s1446] sm:$0xf]
      %v1448 = vld [vmem:[%s1446 + $0x8] sm:$0xf]
      %v1449 = vld [vmem:[%s1446 + $0x10] sm:$0xf]
      %v1450 = vld [vmem:[%s1446 + $0x18] sm:$0xf]
      %v1451 = vld [vmem:[%s1446 + $0x20] sm:$0xf]
      %v1452 = vld [vmem:[%s1446 + $0x28] sm:$0xf]
      %v1453 = vld [vmem:[%s1446 + $0x30] sm:$0xf]
      %v1454 = vld [vmem:[%s1446 + $0x38] sm:$0xf]
      %s1455 = scalar_lea.vmem %s1, 384
      %v1456 = vld [vmem:[%s1455] sm:$0xf]
      %v1457 = vld [vmem:[%s1455 + $0x4] sm:$0xf]
      %v1458 = vld [vmem:[%s1455 + $0x8] sm:$0xf]
      %v1459 = vld [vmem:[%s1455 + $0xc] sm:$0xf]
      %v1460 = vld [vmem:[%s1455 + $0x10] sm:$0xf]
      %v1461 = vld [vmem:[%s1455 + $0x14] sm:$0xf]
      %v1462 = vld [vmem:[%s1455 + $0x18] sm:$0xf]
      %v1463 = vld [vmem:[%s1455 + $0x1c] sm:$0xf]
      %v1464 = vld [vmem:[%s1455 + $0x20] sm:$0xf]
      %v1465 = vld [vmem:[%s1455 + $0x24] sm:$0xf]
      %v1466 = vld [vmem:[%s1455 + $0x28] sm:$0xf]
      %v1467 = vld [vmem:[%s1455 + $0x2c] sm:$0xf]
      %v1468 = vld [vmem:[%s1455 + $0x30] sm:$0xf]
      %v1469 = vld [vmem:[%s1455 + $0x34] sm:$0xf]
      %v1470 = vld [vmem:[%s1455 + $0x38] sm:$0xf]
      %v1471 = vld [vmem:[%s1455 + $0x3c] sm:$0xf]
      %v1480 = vunpack.c.l.b16 %v1447
      %v1481 = vunpack.c.l.b16 %v1448
      %v1482 = vunpack.c.l.b16 %v1449
      %v1483 = vunpack.c.l.b16 %v1450
      %v1484 = vunpack.c.l.b16 %v1451
      %v1485 = vunpack.c.l.b16 %v1452
      %v1486 = vunpack.c.l.b16 %v1453
      %v1487 = vunpack.c.l.b16 %v1454
      %v1488 = vpack.c.b16 %v1481, %v1480
      %v1489 = vpack.c.b16 %v1483, %v1482
      %v1490 = vpack.c.b16 %v1485, %v1484
      %v1491 = vpack.c.b16 %v1487, %v1486
      %v1512 = vunpack.c.l.b16 %v1456
      %v1513 = vunpack.c.l.b16 %v1457
      %v1514 = vunpack.c.l.b16 %v1458
      %v1515 = vunpack.c.l.b16 %v1459
      %v1516 = vunpack.c.l.b16 %v1460
      %v1517 = vunpack.c.l.b16 %v1461
      %v1518 = vunpack.c.l.b16 %v1462
      %v1519 = vunpack.c.l.b16 %v1463
      %v1520 = vunpack.c.l.b16 %v1464
      %v1521 = vunpack.c.l.b16 %v1465
      %v1522 = vunpack.c.l.b16 %v1466
      %v1523 = vunpack.c.l.b16 %v1467
      %v1524 = vunpack.c.l.b16 %v1468
      %v1525 = vunpack.c.l.b16 %v1469
      %v1526 = vunpack.c.l.b16 %v1470
      %v1527 = vunpack.c.l.b16 %v1471
      %v1528 = vpack.c.b16 %v1513, %v1512
      %v1529 = vpack.c.b16 %v1515, %v1514
      %v1530 = vpack.c.b16 %v1517, %v1516
      %v1531 = vpack.c.b16 %v1519, %v1518
      %v1532 = vpack.c.b16 %v1521, %v1520
      %v1533 = vpack.c.b16 %v1523, %v1522
      %v1534 = vpack.c.b16 %v1525, %v1524
      %v1535 = vpack.c.b16 %v1527, %v1526
      %1544 = vmatprep.subr.bf16.mxu0 0
      %1545 = vmatpush1.bf16.msra.mxu0 %v1528
      %1546 = vmatprep.subr.bf16.mxu0 0
      %1547 = vmatpush1.bf16.msra.mxu0 %v1529
      %1548 = vmatprep.subr.bf16.mxu0 0
      %1549 = vmatpush1.bf16.msra.mxu0 %v1530
      %1550 = vmatprep.subr.bf16.mxu0 0
      %1551 = vmatpush1.bf16.msra.mxu0 %v1531
      %1552 = vmatprep.subr.bf16.mxu0 0
      %1553 = vmatpush1.bf16.msra.mxu0 %v1532
      %1554 = vmatprep.subr.bf16.mxu0 0
      %1555 = vmatpush1.bf16.msra.mxu0 %v1533
      %1556 = vmatprep.subr.bf16.mxu0 0
      %1557 = vmatpush1.bf16.msra.mxu0 %v1534
      %1558 = vmatprep.subr.bf16.mxu0 0
      %1559 = vmatpush1.bf16.msra.mxu0 %v1535
      %1560 = vmatprep.subr.bf16.mxu0 0
      %1561 = vmatpush1.bf16.msra.mxu0 0
      %1562 = vmatprep.subr.bf16.mxu0 0
      %1563 = vmatpush1.bf16.msra.mxu0 0
      %1564 = vmatprep.subr.bf16.mxu0 0
      %1565 = vmatpush1.bf16.msra.mxu0 0
      %1566 = vmatprep.subr.bf16.mxu0 0
      %1567 = vmatpush1.bf16.msra.mxu0 0
      %1568 = vmatprep.subr.bf16.mxu0 0
      %1569 = vmatpush1.bf16.msra.mxu0 0
      %1570 = vmatprep.subr.bf16.mxu0 0
      %1571 = vmatpush1.bf16.msra.mxu0 0
      %1572 = vmatprep.subr.bf16.mxu0 0
      %1573 = vmatpush1.bf16.msra.mxu0 0
      %1574 = vmatprep.subr.bf16.mxu0 0
      %1575 = vmatpush1.bf16.msra.mxu0 0
      %1576 = vmatprep.mubr.bf16.mxu0 0
      %1577 = vmatmul.mubr.bf16.gmra.mrb[0].mxu0 %v1488
      %v1578 = vpop.f32.mrb[0].mxu0
      %v1579 = vadd.f32 0.0, %v1578
      %v1580 = vpop.f32.mrb[0].mxu0
      %v1581 = vpop.f32.mrb[0].mxu0
      %v1582 = vadd.f32 0.0, %v1581
      %v1583 = vpop.f32.mrb[0].mxu0
      %1584 = vmatprep.mubr.bf16.mxu0 0
      %1585 = vmatmul.mubr.bf16.gmra.mrb[0].mxu0 %v1489
      %v1586 = vpop.f32.mrb[0].mxu0
      %v1587 = vadd.f32 0.0, %v1586
      %v1588 = vpop.f32.mrb[0].mxu0
      %v1589 = vpop.f32.mrb[0].mxu0
      %v1590 = vadd.f32 0.0, %v1589
      %v1591 = vpop.f32.mrb[0].mxu0
      %1592 = vmatprep.mubr.bf16.mxu0 0
      %1593 = vmatmul.mubr.bf16.gmra.mrb[0].mxu0 %v1490
      %v1594 = vpop.f32.mrb[0].mxu0
      %v1595 = vadd.f32 0.0, %v1594
      %v1596 = vpop.f32.mrb[0].mxu0
      %v1597 = vpop.f32.mrb[0].mxu0
      %v1598 = vadd.f32 0.0, %v1597
      %v1599 = vpop.f32.mrb[0].mxu0
      %1600 = vmatprep.mubr.bf16.mxu0 0
      %1601 = vmatmul.mubr.bf16.gmra.mrb[0].mxu0 %v1491
      %v1602 = vpop.f32.mrb[0].mxu0
      %v1603 = vadd.f32 0.0, %v1602
      %v1604 = vpop.f32.mrb[0].mxu0
      %v1605 = vpop.f32.mrb[0].mxu0
      %v1606 = vadd.f32 0.0, %v1605
      %v1607 = vpop.f32.mrb[0].mxu0
      %1608 = vdwg.mxu0
      %v1609 = vadd.f32 %v1435, %v1579
      %v1610 = vadd.f32 %v1436, %v1582
      %v1611 = vadd.f32 %v1437, %v1587
      %v1612 = vadd.f32 %v1438, %v1590
      %v1613 = vadd.f32 %v1439, %v1595
      %v1614 = vadd.f32 %v1440, %v1598
      %v1615 = vadd.f32 %v1441, %v1603
      %v1616 = vadd.f32 %v1442, %v1606
      %s1617 = sadd.s32 %s1444, 18
      %s1618 = smul.addr %s1617, 4
      %s1619 = scalar_lea.vmem %s187, %s1618
      %v1620 = vld [vmem:[%s1619] sm:$0xf]
      %v1621 = vld [vmem:[%s1619 + $0x8] sm:$0xf]
      %v1622 = vld [vmem:[%s1619 + $0x10] sm:$0xf]
      %v1623 = vld [vmem:[%s1619 + $0x18] sm:$0xf]
      %v1624 = vld [vmem:[%s1619 + $0x20] sm:$0xf]
      %v1625 = vld [vmem:[%s1619 + $0x28] sm:$0xf]
      %v1626 = vld [vmem:[%s1619 + $0x30] sm:$0xf]
      %v1627 = vld [vmem:[%s1619 + $0x38] sm:$0xf]
      %s1628 = scalar_lea.vmem %s1, 448
      %v1629 = vld [vmem:[%s1628] sm:$0xf]
      %v1630 = vld [vmem:[%s1628 + $0x4] sm:$0xf]
      %v1631 = vld [vmem:[%s1628 + $0x8] sm:$0xf]
      %v1632 = vld [vmem:[%s1628 + $0xc] sm:$0xf]
      %v1633 = vld [vmem:[%s1628 + $0x10] sm:$0xf]
      %v1634 = vld [vmem:[%s1628 + $0x14] sm:$0xf]
      %v1635 = vld [vmem:[%s1628 + $0x18] sm:$0xf]
      %v1636 = vld [vmem:[%s1628 + $0x1c] sm:$0xf]
      %v1637 = vld [vmem:[%s1628 + $0x20] sm:$0xf]
      %v1638 = vld [vmem:[%s1628 + $0x24] sm:$0xf]
      %v1639 = vld [vmem:[%s1628 + $0x28] sm:$0xf]
      %v1640 = vld [vmem:[%s1628 + $0x2c] sm:$0xf]
      %v1641 = vld [vmem:[%s1628 + $0x30] sm:$0xf]
      %v1642 = vld [vmem:[%s1628 + $0x34] sm:$0xf]
      %v1643 = vld [vmem:[%s1628 + $0x38] sm:$0xf]
      %v1644 = vld [vmem:[%s1628 + $0x3c] sm:$0xf]
      %v1653 = vunpack.c.l.b16 %v1620
      %v1654 = vunpack.c.l.b16 %v1621
      %v1655 = vunpack.c.l.b16 %v1622
      %v1656 = vunpack.c.l.b16 %v1623
      %v1657 = vunpack.c.l.b16 %v1624
      %v1658 = vunpack.c.l.b16 %v1625
      %v1659 = vunpack.c.l.b16 %v1626
      %v1660 = vunpack.c.l.b16 %v1627
      %v1661 = vpack.c.b16 %v1654, %v1653
      %v1662 = vpack.c.b16 %v1656, %v1655
      %v1663 = vpack.c.b16 %v1658, %v1657
      %v1664 = vpack.c.b16 %v1660, %v1659
      %v1685 = vunpack.c.l.b16 %v1629
      %v1686 = vunpack.c.l.b16 %v1630
      %v1687 = vunpack.c.l.b16 %v1631
      %v1688 = vunpack.c.l.b16 %v1632
      %v1689 = vunpack.c.l.b16 %v1633
      %v1690 = vunpack.c.l.b16 %v1634
      %v1691 = vunpack.c.l.b16 %v1635
      %v1692 = vunpack.c.l.b16 %v1636
      %v1693 = vunpack.c.l.b16 %v1637
      %v1694 = vunpack.c.l.b16 %v1638
      %v1695 = vunpack.c.l.b16 %v1639
      %v1696 = vunpack.c.l.b16 %v1640
      %v1697 = vunpack.c.l.b16 %v1641
      %v1698 = vunpack.c.l.b16 %v1642
      %v1699 = vunpack.c.l.b16 %v1643
      %v1700 = vunpack.c.l.b16 %v1644
      %v1701 = vpack.c.b16 %v1686, %v1685
      %v1702 = vpack.c.b16 %v1688, %v1687
      %v1703 = vpack.c.b16 %v1690, %v1689
      %v1704 = vpack.c.b16 %v1692, %v1691
      %v1705 = vpack.c.b16 %v1694, %v1693
      %v1706 = vpack.c.b16 %v1696, %v1695
      %v1707 = vpack.c.b16 %v1698, %v1697
      %v1708 = vpack.c.b16 %v1700, %v1699
      %1717 = vmatprep.subr.bf16.mxu0 0
      %1718 = vmatpush1.bf16.msra.mxu0 %v1701
      %1719 = vmatprep.subr.bf16.mxu0 0
      %1720 = vmatpush1.bf16.msra.mxu0 %v1702
      %1721 = vmatprep.subr.bf16.mxu0 0
      %1722 = vmatpush1.bf16.msra.mxu0 %v1703
      %1723 = vmatprep.subr.bf16.mxu0 0
      %1724 = vmatpush1.bf16.msra.mxu0 %v1704
      %1725 = vmatprep.subr.bf16.mxu0 0
      %1726 = vmatpush1.bf16.msra.mxu0 %v1705
      %1727 = vmatprep.subr.bf16.mxu0 0
      %1728 = vmatpush1.bf16.msra.mxu0 %v1706
      %1729 = vmatprep.subr.bf16.mxu0 0
      %1730 = vmatpush1.bf16.msra.mxu0 %v1707
      %1731 = vmatprep.subr.bf16.mxu0 0
      %1732 = vmatpush1.bf16.msra.mxu0 %v1708
      %1733 = vmatprep.subr.bf16.mxu0 0
      %1734 = vmatpush1.bf16.msra.mxu0 0
      %1735 = vmatprep.subr.bf16.mxu0 0
      %1736 = vmatpush1.bf16.msra.mxu0 0
      %1737 = vmatprep.subr.bf16.mxu0 0
      %1738 = vmatpush1.bf16.msra.mxu0 0
      %1739 = vmatprep.subr.bf16.mxu0 0
      %1740 = vmatpush1.bf16.msra.mxu0 0
      %1741 = vmatprep.subr.bf16.mxu0 0
      %1742 = vmatpush1.bf16.msra.mxu0 0
      %1743 = vmatprep.subr.bf16.mxu0 0
      %1744 = vmatpush1.bf16.msra.mxu0 0
      %1745 = vmatprep.subr.bf16.mxu0 0
      %1746 = vmatpush1.bf16.msra.mxu0 0
      %1747 = vmatprep.subr.bf16.mxu0 0
      %1748 = vmatpush1.bf16.msra.mxu0 0
      %1749 = vmatprep.mubr.bf16.mxu0 0
      %1750 = vmatmul.mubr.bf16.gmra.mrb[0].mxu0 %v1661
      %v1751 = vpop.f32.mrb[0].mxu0
      %v1752 = vadd.f32 0.0, %v1751
      %v1753 = vpop.f32.mrb[0].mxu0
      %v1754 = vpop.f32.mrb[0].mxu0
      %v1755 = vadd.f32 0.0, %v1754
      %v1756 = vpop.f32.mrb[0].mxu0
      %1757 = vmatprep.mubr.bf16.mxu0 0
      %1758 = vmatmul.mubr.bf16.gmra.mrb[0].mxu0 %v1662
      %v1759 = vpop.f32.mrb[0].mxu0
      %v1760 = vadd.f32 0.0, %v1759
      %v1761 = vpop.f32.mrb[0].mxu0
      %v1762 = vpop.f32.mrb[0].mxu0
      %v1763 = vadd.f32 0.0, %v1762
      %v1764 = vpop.f32.mrb[0].mxu0
      %1765 = vmatprep.mubr.bf16.mxu0 0
      %1766 = vmatmul.mubr.bf16.gmra.mrb[0].mxu0 %v1663
      %v1767 = vpop.f32.mrb[0].mxu0
      %v1768 = vadd.f32 0.0, %v1767
      %v1769 = vpop.f32.mrb[0].mxu0
      %v1770 = vpop.f32.mrb[0].mxu0
      %v1771 = vadd.f32 0.0, %v1770
      %v1772 = vpop.f32.mrb[0].mxu0
      %1773 = vmatprep.mubr.bf16.mxu0 0
      %1774 = vmatmul.mubr.bf16.gmra.mrb[0].mxu0 %v1664
      %v1775 = vpop.f32.mrb[0].mxu0
      %v1776 = vadd.f32 0.0, %v1775
      %v1777 = vpop.f32.mrb[0].mxu0
      %v1778 = vpop.f32.mrb[0].mxu0
      %v1779 = vadd.f32 0.0, %v1778
      %v1780 = vpop.f32.mrb[0].mxu0
      %1781 = vdwg.mxu0
      %v1782 = vadd.f32 %v1609, %v1752
      %v1783 = vadd.f32 %v1610, %v1755
      %v1784 = vadd.f32 %v1611, %v1760
      %v1785 = vadd.f32 %v1612, %v1763
      %v1786 = vadd.f32 %v1613, %v1768
      %v1787 = vadd.f32 %v1614, %v1771
      %v1788 = vadd.f32 %v1615, %v1776
      %v1789 = vadd.f32 %v1616, %v1779
      %v1790 = vld [vmem:[%s1446] sm:$0xf]
      %v1791 = vld [vmem:[%s1446 + $0x4] sm:$0x1]
      %v1792 = vld [vmem:[%s1446 + $0x8] sm:$0xf]
      %v1793 = vld [vmem:[%s1446 + $0xc] sm:$0x1]
      %v1794 = vld [vmem:[%s1446 + $0x10] sm:$0xf]
      %v1795 = vld [vmem:[%s1446 + $0x14] sm:$0x1]
      %v1796 = vld [vmem:[%s1446 + $0x18] sm:$0xf]
      %v1797 = vld [vmem:[%s1446 + $0x1c] sm:$0x1]
      %v1798 = vld [vmem:[%s1446 + $0x20] sm:$0xf]
      %v1799 = vld [vmem:[%s1446 + $0x24] sm:$0x1]
      %v1800 = vld [vmem:[%s1446 + $0x28] sm:$0xf]
      %v1801 = vld [vmem:[%s1446 + $0x2c] sm:$0x1]
      %v1802 = vld [vmem:[%s1446 + $0x30] sm:$0xf]
      %v1803 = vld [vmem:[%s1446 + $0x34] sm:$0x1]
      %v1804 = vld [vmem:[%s1446 + $0x38] sm:$0xf]
      %v1805 = vld [vmem:[%s1446 + $0x3c] sm:$0x1]
      %v1807 = vshrl.u32 %v1790, 16
      %v1809 = vrot.slane %v1807, 4
      %v1810 = vshll.u32 %v1790, 16
      %v1812 = vrot.slane %v1810, 5
      %v1813 = vor.u32 %v1809, %v1812
      %v1814 = vrot.slane %v1813, 4
      %v1816 = vshll.u32 %v1791, 16
      %v1818 = vrot.slane %v1816, 5
      %v1819 = vsel %vm548, %v1814, %v1818
      %v1821 = vshrl.u32 %v1792, 16
      %v1823 = vrot.slane %v1821, 4
      %v1824 = vshll.u32 %v1792, 16
      %v1826 = vrot.slane %v1824, 5
      %v1827 = vor.u32 %v1823, %v1826
      %v1828 = vrot.slane %v1827, 4
      %v1830 = vshll.u32 %v1793, 16
      %v1832 = vrot.slane %v1830, 5
      %v1833 = vsel %vm548, %v1828, %v1832
      %v1835 = vshrl.u32 %v1794, 16
      %v1837 = vrot.slane %v1835, 4
      %v1838 = vshll.u32 %v1794, 16
      %v1840 = vrot.slane %v1838, 5
      %v1841 = vor.u32 %v1837, %v1840
      %v1842 = vrot.slane %v1841, 4
      %v1844 = vshll.u32 %v1795, 16
      %v1846 = vrot.slane %v1844, 5
      %v1847 = vsel %vm548, %v1842, %v1846
      %v1849 = vshrl.u32 %v1796, 16
      %v1851 = vrot.slane %v1849, 4
      %v1852 = vshll.u32 %v1796, 16
      %v1854 = vrot.slane %v1852, 5
      %v1855 = vor.u32 %v1851, %v1854
      %v1856 = vrot.slane %v1855, 4
      %v1858 = vshll.u32 %v1797, 16
      %v1860 = vrot.slane %v1858, 5
      %v1861 = vsel %vm548, %v1856, %v1860
      %v1863 = vshrl.u32 %v1798, 16
      %v1865 = vrot.slane %v1863, 4
      %v1866 = vshll.u32 %v1798, 16
      %v1868 = vrot.slane %v1866, 5
      %v1869 = vor.u32 %v1865, %v1868
      %v1870 = vrot.slane %v1869, 4
      %v1872 = vshll.u32 %v1799, 16
      %v1874 = vrot.slane %v1872, 5
      %v1875 = vsel %vm548, %v1870, %v1874
      %v1877 = vshrl.u32 %v1800, 16
      %v1879 = vrot.slane %v1877, 4
      %v1880 = vshll.u32 %v1800, 16
      %v1882 = vrot.slane %v1880, 5
      %v1883 = vor.u32 %v1879, %v1882
      %v1884 = vrot.slane %v1883, 4
      %v1886 = vshll.u32 %v1801, 16
      %v1888 = vrot.slane %v1886, 5
      %v1889 = vsel %vm548, %v1884, %v1888
      %v1891 = vshrl.u32 %v1802, 16
      %v1893 = vrot.slane %v1891, 4
      %v1894 = vshll.u32 %v1802, 16
      %v1896 = vrot.slane %v1894, 5
      %v1897 = vor.u32 %v1893, %v1896
      %v1898 = vrot.slane %v1897, 4
      %v1900 = vshll.u32 %v1803, 16
      %v1902 = vrot.slane %v1900, 5
      %v1903 = vsel %vm548, %v1898, %v1902
      %v1905 = vshrl.u32 %v1804, 16
      %v1907 = vrot.slane %v1905, 4
      %v1908 = vshll.u32 %v1804, 16
      %v1910 = vrot.slane %v1908, 5
      %v1911 = vor.u32 %v1907, %v1910
      %v1912 = vrot.slane %v1911, 4
      %v1914 = vshll.u32 %v1805, 16
      %v1916 = vrot.slane %v1914, 5
      %v1917 = vsel %vm548, %v1912, %v1916
      %s1918 = scalar_lea.vmem %s1, 512
      %v1919 = vld [vmem:[%s1918] sm:$0xf]
      %v1920 = vld [vmem:[%s1918 + $0x4] sm:$0xf]
      %v1921 = vld [vmem:[%s1918 + $0x8] sm:$0xf]
      %v1922 = vld [vmem:[%s1918 + $0xc] sm:$0xf]
      %v1923 = vld [vmem:[%s1918 + $0x10] sm:$0xf]
      %v1924 = vld [vmem:[%s1918 + $0x14] sm:$0xf]
      %v1925 = vld [vmem:[%s1918 + $0x18] sm:$0xf]
      %v1926 = vld [vmem:[%s1918 + $0x1c] sm:$0xf]
      %v1927 = vld [vmem:[%s1918 + $0x20] sm:$0xf]
      %v1928 = vld [vmem:[%s1918 + $0x24] sm:$0xf]
      %v1929 = vld [vmem:[%s1918 + $0x28] sm:$0xf]
      %v1930 = vld [vmem:[%s1918 + $0x2c] sm:$0xf]
      %v1931 = vld [vmem:[%s1918 + $0x30] sm:$0xf]
      %v1932 = vld [vmem:[%s1918 + $0x34] sm:$0xf]
      %v1933 = vld [vmem:[%s1918 + $0x38] sm:$0xf]
      %v1934 = vld [vmem:[%s1918 + $0x3c] sm:$0xf]
      %v1935 = vunpack.c.l.b16 %v1819
      %v1936 = vunpack.c.l.b16 %v1833
      %v1937 = vunpack.c.l.b16 %v1847
      %v1938 = vunpack.c.l.b16 %v1861
      %v1939 = vunpack.c.l.b16 %v1875
      %v1940 = vunpack.c.l.b16 %v1889
      %v1941 = vunpack.c.l.b16 %v1903
      %v1942 = vunpack.c.l.b16 %v1917
      %v1943 = vpack.c.b16 %v1936, %v1935
      %v1944 = vpack.c.b16 %v1938, %v1937
      %v1945 = vpack.c.b16 %v1940, %v1939
      %v1946 = vpack.c.b16 %v1942, %v1941
      %v1967 = vunpack.c.l.b16 %v1919
      %v1968 = vunpack.c.l.b16 %v1920
      %v1969 = vunpack.c.l.b16 %v1921
      %v1970 = vunpack.c.l.b16 %v1922
      %v1971 = vunpack.c.l.b16 %v1923
      %v1972 = vunpack.c.l.b16 %v1924
      %v1973 = vunpack.c.l.b16 %v1925
      %v1974 = vunpack.c.l.b16 %v1926
      %v1975 = vunpack.c.l.b16 %v1927
      %v1976 = vunpack.c.l.b16 %v1928
      %v1977 = vunpack.c.l.b16 %v1929
      %v1978 = vunpack.c.l.b16 %v1930
      %v1979 = vunpack.c.l.b16 %v1931
      %v1980 = vunpack.c.l.b16 %v1932
      %v1981 = vunpack.c.l.b16 %v1933
      %v1982 = vunpack.c.l.b16 %v1934
      %v1983 = vpack.c.b16 %v1968, %v1967
      %v1984 = vpack.c.b16 %v1970, %v1969
      %v1985 = vpack.c.b16 %v1972, %v1971
      %v1986 = vpack.c.b16 %v1974, %v1973
      %v1987 = vpack.c.b16 %v1976, %v1975
      %v1988 = vpack.c.b16 %v1978, %v1977
      %v1989 = vpack.c.b16 %v1980, %v1979
      %v1990 = vpack.c.b16 %v1982, %v1981
      %1999 = vmatprep.subr.bf16.mxu0 0
      %2000 = vmatpush1.bf16.msra.mxu0 %v1983
      %2001 = vmatprep.subr.bf16.mxu0 0
      %2002 = vmatpush1.bf16.msra.mxu0 %v1984
      %2003 = vmatprep.subr.bf16.mxu0 0
      %2004 = vmatpush1.bf16.msra.mxu0 %v1985
      %2005 = vmatprep.subr.bf16.mxu0 0
      %2006 = vmatpush1.bf16.msra.mxu0 %v1986
      %2007 = vmatprep.subr.bf16.mxu0 0
      %2008 = vmatpush1.bf16.msra.mxu0 %v1987
      %2009 = vmatprep.subr.bf16.mxu0 0
      %2010 = vmatpush1.bf16.msra.mxu0 %v1988
      %2011 = vmatprep.subr.bf16.mxu0 0
      %2012 = vmatpush1.bf16.msra.mxu0 %v1989
      %2013 = vmatprep.subr.bf16.mxu0 0
      %2014 = vmatpush1.bf16.msra.mxu0 %v1990
      %2015 = vmatprep.subr.bf16.mxu0 0
      %2016 = vmatpush1.bf16.msra.mxu0 0
      %2017 = vmatprep.subr.bf16.mxu0 0
      %2018 = vmatpush1.bf16.msra.mxu0 0
      %2019 = vmatprep.subr.bf16.mxu0 0
      %2020 = vmatpush1.bf16.msra.mxu0 0
      %2021 = vmatprep.subr.bf16.mxu0 0
      %2022 = vmatpush1.bf16.msra.mxu0 0
      %2023 = vmatprep.subr.bf16.mxu0 0
      %2024 = vmatpush1.bf16.msra.mxu0 0
      %2025 = vmatprep.subr.bf16.mxu0 0
      %2026 = vmatpush1.bf16.msra.mxu0 0
      %2027 = vmatprep.subr.bf16.mxu0 0
      %2028 = vmatpush1.bf16.msra.mxu0 0
      %2029 = vmatprep.subr.bf16.mxu0 0
      %2030 = vmatpush1.bf16.msra.mxu0 0
      %2031 = vmatprep.mubr.bf16.mxu0 0
      %2032 = vmatmul.mubr.bf16.gmra.mrb[0].mxu0 %v1943
      %v2033 = vpop.f32.mrb[0].mxu0
      %v2034 = vadd.f32 0.0, %v2033
      %v2035 = vpop.f32.mrb[0].mxu0
      %v2036 = vpop.f32.mrb[0].mxu0
      %v2037 = vadd.f32 0.0, %v2036
      %v2038 = vpop.f32.mrb[0].mxu0
      %2039 = vmatprep.mubr.bf16.mxu0 0
      %2040 = vmatmul.mubr.bf16.gmra.mrb[0].mxu0 %v1944
      %v2041 = vpop.f32.mrb[0].mxu0
      %v2042 = vadd.f32 0.0, %v2041
      %v2043 = vpop.f32.mrb[0].mxu0
      %v2044 = vpop.f32.mrb[0].mxu0
      %v2045 = vadd.f32 0.0, %v2044
      %v2046 = vpop.f32.mrb[0].mxu0
      %2047 = vmatprep.mubr.bf16.mxu0 0
      %2048 = vmatmul.mubr.bf16.gmra.mrb[0].mxu0 %v1945
      %v2049 = vpop.f32.mrb[0].mxu0
      %v2050 = vadd.f32 0.0, %v2049
      %v2051 = vpop.f32.mrb[0].mxu0
      %v2052 = vpop.f32.mrb[0].mxu0
      %v2053 = vadd.f32 0.0, %v2052
      %v2054 = vpop.f32.mrb[0].mxu0
      %2055 = vmatprep.mubr.bf16.mxu0 0
      %2056 = vmatmul.mubr.bf16.gmra.mrb[0].mxu0 %v1946
      %v2057 = vpop.f32.mrb[0].mxu0
      %v2058 = vadd.f32 0.0, %v2057
      %v2059 = vpop.f32.mrb[0].mxu0
      %v2060 = vpop.f32.mrb[0].mxu0
      %v2061 = vadd.f32 0.0, %v2060
      %v2062 = vpop.f32.mrb[0].mxu0
      %2063 = vdwg.mxu0
      %v2064 = vadd.f32 %v1782, %v2034
      %v2065 = vadd.f32 %v1783, %v2037
      %v2066 = vadd.f32 %v1784, %v2042
      %v2067 = vadd.f32 %v1785, %v2045
      %v2068 = vadd.f32 %v1786, %v2050
      %v2069 = vadd.f32 %v1787, %v2053
      %v2070 = vadd.f32 %v1788, %v2058
      %v2071 = vadd.f32 %v1789, %v2061
      %v2072 = vld [vmem:[%s2] sm:$0x1]
      %v2074 = vlaneseq
      %v2075 = vshrl.u32 %v2074, 7
      %v2076 = vsub.s32 0, %v2075
      %v2077 = vrot.slane %v2072, %v2076
      %v2079 = vadd.f32 %v2064, %v2077
      %v2080 = vadd.f32 %v2065, %v2077
      %v2081 = vadd.f32 %v2066, %v2077
      %v2082 = vadd.f32 %v2067, %v2077
      %v2083 = vadd.f32 %v2068, %v2077
      %v2084 = vadd.f32 %v2069, %v2077
      %v2085 = vadd.f32 %v2070, %v2077
      %v2086 = vadd.f32 %v2071, %v2077
      %v2087 = vmax.f32 %v2079, 0.0
      %v2088 = vmax.f32 %v2080, 0.0
      %v2089 = vmax.f32 %v2081, 0.0
      %v2090 = vmax.f32 %v2082, 0.0
      %v2091 = vmax.f32 %v2083, 0.0
      %v2092 = vmax.f32 %v2084, 0.0
      %v2093 = vmax.f32 %v2085, 0.0
      %v2094 = vmax.f32 %v2086, 0.0
      %v2095 = vpack.c.bf16 %v2087, %v2087
      %v2096 = vpack.c.bf16 %v2088, %v2088
      %v2097 = vpack.c.bf16 %v2089, %v2089
      %v2098 = vpack.c.bf16 %v2090, %v2090
      %v2099 = vpack.c.bf16 %v2091, %v2091
      %v2100 = vpack.c.bf16 %v2092, %v2092
      %v2101 = vpack.c.bf16 %v2093, %v2093
      %v2102 = vpack.c.bf16 %v2094, %v2094
      %2103 = vst [vmem:[%s197] sm:$0xf] %v2095
      %2104 = vst [vmem:[%s197 + $0x4] sm:$0xf] %v2096
      %2105 = vst [vmem:[%s197 + $0x8] sm:$0xf] %v2097
      %2106 = vst [vmem:[%s197 + $0xc] sm:$0xf] %v2098
      %2107 = vst [vmem:[%s197 + $0x10] sm:$0xf] %v2099
      %2108 = vst [vmem:[%s197 + $0x14] sm:$0xf] %v2100
      %2109 = vst [vmem:[%s197 + $0x18] sm:$0xf] %v2101
      %2110 = vst [vmem:[%s197 + $0x1c] sm:$0xf] %v2102
      %s2111 = smul.u32 8, %s19
      %p2112 = scmp.lt.s32.totalorder %s18, 1
      %s2113 = scalar_select %p2112, %s18, 1
      %p2114 = scmp.lt.s32.totalorder %s2111, 7
      %s2115 = scalar_select %p2114, %s2111, 7
      %s2116 = smul.addr %s2113, 8
      %s2117 = sadd.s32 %s2115, %s2116
      %s2118 = smul.addr %s2117, 4
      %s2119 = scalar_lea.vmem %s3, %s2118
      // Predicated region
      $region33: #{bottleneck_forward.4} parent=31 // pred_check
        %p2120 = pneg %p114
      $region34: #{bottleneck_forward.4} parent=31 // pred_check_branch
        %2122 = sbr.rel (%p2120) target = $region36
      $region35: #{bottleneck_forward.4} parent=31 // pred_region
        %s2123 = smul.u32 8, %s19
      $region36: #{bottleneck_forward.4} parent=31 // pred_fallthru
        _
    $region32: #{bottleneck_forward.4} parent=5 // pred_fallthru
      _
    %p2124 = scmp.le.s32.totalorder 2, %s9
    // Predicated region
    $region37: #{bottleneck_forward.4} parent=5 // pred_check
      %p2125 = pneg %p2124
    $region38: #{bottleneck_forward.4} parent=5 // pred_check_branch
      %2127 = sbr.rel (%p2125) target = $region40
    $region39: #{bottleneck_forward.4} parent=5 // pred_region
      %s2128 = ssub.s32 %s9, 2
      // Predicated region
      $region41: #{bottleneck_forward.4} parent=39 // pred_check
        %p2129 = pneg %p120
      $region42: #{bottleneck_forward.4} parent=39 // pred_check_branch
        %2131 = sbr.rel (%p2129) target = $region44
      $region43: #{bottleneck_forward.4} parent=39 // pred_region
        %s2132 = smul.u32 8, %s21
        %p2133 = scmp.lt.s32.totalorder %s20, 1
        %s2134 = scalar_select %p2133, %s20, 1
        %p2135 = scmp.lt.s32.totalorder %s2132, 7
        %s2136 = scalar_select %p2135, %s2132, 7
        %s2137 = smul.addr %s2134, 8
        %s2138 = sadd.s32 %s2136, %s2137
        %s2139 = smul.addr %s2138, 4
        %s2140 = scalar_lea.vmem %s3, %s2139
      $region44: #{bottleneck_forward.4} parent=39 // pred_fallthru
        _
    $region40: #{bottleneck_forward.4} parent=5 // pred_fallthru
      _
  $region6: #{bottleneck_forward.4} parent=0 // loop_footer
    %s13 = sadd.s32 1, %s9
  $region7: #{bottleneck_forward.4} parent=0 // loop_footer_branch
    %8 = sbr.rel target = $region3
  $region8: #{bottleneck_forward.4} parent=0 // loop_exit
    _

// kernel: bottleneck_forward.5
$region0: #{bottleneck_forward.5}
  #allocation0 [shape = 'u32[]', space=smem, size = 0x4, offset = 0x4, fixed_abs, tag = 'smem constant byte address 0x4 - core index']
  #allocation1 [shape = 'u32[144,128]{1,0:T(1,128)}', space=vmem, size = 0x12000, scoped, tag = 'internal scratch']
  %s0 = inlined_call_operand.vmem [shape: bf16[128,128], index: 0, kind: input, shape index: {}]
  %s1 = inlined_call_operand.vmem [shape: bf16[128,128], index: 1, kind: input, shape index: {}]
  %s2 = inlined_call_operand.vmem [shape: bf16[128,128], index: 2, kind: input, shape index: {}]
  %s3 = inlined_call_operand.vmem [shape: bf16[128,128], index: 3, kind: input, shape index: {}]
  %s4 = inlined_call_operand.vmem [shape: f32[1,128], index: 4, kind: input, shape index: {}]
  %s5 = inlined_call_operand.vmem [shape: bf16[128,128], index: 5, kind: output, shape index: {}]
  %s6 = sld [smem:[#allocation0]]
  $region30: #{bottleneck_forward.5} parent=0
    _
  %s8 = ssub.s32 1, %s6
  %s9 = scalar_select 0, %s8, %s6
  // Predicated region
  $region2: #{bottleneck_forward.5} parent=0 // pred_check
    _
  $region3: #{bottleneck_forward.5} parent=0 // pred_check_branch
    %11 = sbr.rel (0) target = $region5
  $region4: #{bottleneck_forward.5} parent=0 // pred_region
    _
  $region5: #{bottleneck_forward.5} parent=0 // pred_fallthru
    _
  // Predicated region
  $region6: #{bottleneck_forward.5} parent=0 // pred_check
    _
  $region7: #{bottleneck_forward.5} parent=0 // pred_check_branch
    %13 = sbr.rel (0) target = $region9
  $region8: #{bottleneck_forward.5} parent=0 // pred_region
    _
  $region9: #{bottleneck_forward.5} parent=0 // pred_fallthru
    _
  // Predicated region
  $region10: #{bottleneck_forward.5} parent=0 // pred_check
    _
  $region11: #{bottleneck_forward.5} parent=0 // pred_check_branch
    %15 = sbr.rel (0) target = $region13
  $region12: #{bottleneck_forward.5} parent=0 // pred_region
    _
  $region13: #{bottleneck_forward.5} parent=0 // pred_fallthru
    _
  // Predicated region
  $region14: #{bottleneck_forward.5} parent=0 // pred_check
    _
  $region15: #{bottleneck_forward.5} parent=0 // pred_check_branch
    %17 = sbr.rel (0) target = $region17
  $region16: #{bottleneck_forward.5} parent=0 // pred_region
    _
  $region17: #{bottleneck_forward.5} parent=0 // pred_fallthru
    _
  // Predicated region
  $region18: #{bottleneck_forward.5} parent=0 // pred_check
    _
  $region19: #{bottleneck_forward.5} parent=0 // pred_check_branch
    %19 = sbr.rel (0) target = $region21
  $region20: #{bottleneck_forward.5} parent=0 // pred_region
    _
  $region21: #{bottleneck_forward.5} parent=0 // pred_fallthru
    _
  %v21 = vld [vmem:[%s0] sm:$0xf]
  %v22 = vld [vmem:[%s0 + $0x4] sm:$0xf]
  %v23 = vld [vmem:[%s0 + $0x8] sm:$0xf]
  %v24 = vld [vmem:[%s0 + $0xc] sm:$0xf]
  %v25 = vld [vmem:[%s0 + $0x10] sm:$0xf]
  %v26 = vld [vmem:[%s0 + $0x14] sm:$0xf]
  %v27 = vld [vmem:[%s0 + $0x18] sm:$0xf]
  %v28 = vld [vmem:[%s0 + $0x1c] sm:$0xf]
  %v29 = vld [vmem:[%s0 + $0x20] sm:$0xf]
  %v30 = vld [vmem:[%s0 + $0x24] sm:$0xf]
  %v31 = vld [vmem:[%s0 + $0x28] sm:$0xf]
  %v32 = vld [vmem:[%s0 + $0x2c] sm:$0xf]
  %v33 = vld [vmem:[%s0 + $0x30] sm:$0xf]
  %v34 = vld [vmem:[%s0 + $0x34] sm:$0xf]
  %v35 = vld [vmem:[%s0 + $0x38] sm:$0xf]
  %v36 = vld [vmem:[%s0 + $0x3c] sm:$0xf]
  %v37 = vld [vmem:[%s1] sm:$0xf]
  %v38 = vld [vmem:[%s1 + $0x4] sm:$0xf]
  %v39 = vld [vmem:[%s1 + $0x8] sm:$0xf]
  %v40 = vld [vmem:[%s1 + $0xc] sm:$0xf]
  %v41 = vld [vmem:[%s1 + $0x10] sm:$0xf]
  %v42 = vld [vmem:[%s1 + $0x14] sm:$0xf]
  %v43 = vld [vmem:[%s1 + $0x18] sm:$0xf]
  %v44 = vld [vmem:[%s1 + $0x1c] sm:$0xf]
  %v45 = vld [vmem:[%s1 + $0x20] sm:$0xf]
  %v46 = vld [vmem:[%s1 + $0x24] sm:$0xf]
  %v47 = vld [vmem:[%s1 + $0x28] sm:$0xf]
  %v48 = vld [vmem:[%s1 + $0x2c] sm:$0xf]
  %v49 = vld [vmem:[%s1 + $0x30] sm:$0xf]
  %v50 = vld [vmem:[%s1 + $0x34] sm:$0xf]
  %v51 = vld [vmem:[%s1 + $0x38] sm:$0xf]
  %v52 = vld [vmem:[%s1 + $0x3c] sm:$0xf]
  %v53 = vld [vmem:[%s2] sm:$0xf]
  %v54 = vld [vmem:[%s2 + $0x4] sm:$0xf]
  %v55 = vld [vmem:[%s2 + $0x8] sm:$0xf]
  %v56 = vld [vmem:[%s2 + $0xc] sm:$0xf]
  %v57 = vld [vmem:[%s2 + $0x10] sm:$0xf]
  %v58 = vld [vmem:[%s2 + $0x14] sm:$0xf]
  %v59 = vld [vmem:[%s2 + $0x18] sm:$0xf]
  %v60 = vld [vmem:[%s2 + $0x1c] sm:$0xf]
  %v61 = vld [vmem:[%s2 + $0x20] sm:$0xf]
  %v62 = vld [vmem:[%s2 + $0x24] sm:$0xf]
  %v63 = vld [vmem:[%s2 + $0x28] sm:$0xf]
  %v64 = vld [vmem:[%s2 + $0x2c] sm:$0xf]
  %v65 = vld [vmem:[%s2 + $0x30] sm:$0xf]
  %v66 = vld [vmem:[%s2 + $0x34] sm:$0xf]
  %v67 = vld [vmem:[%s2 + $0x38] sm:$0xf]
  %v68 = vld [vmem:[%s2 + $0x3c] sm:$0xf]
  %v69 = vld [vmem:[%s3] sm:$0xf]
  %v70 = vld [vmem:[%s3 + $0x4] sm:$0xf]
  %v71 = vld [vmem:[%s3 + $0x8] sm:$0xf]
  %v72 = vld [vmem:[%s3 + $0xc] sm:$0xf]
  %v73 = vld [vmem:[%s3 + $0x10] sm:$0xf]
  %v74 = vld [vmem:[%s3 + $0x14] sm:$0xf]
  %v75 = vld [vmem:[%s3 + $0x18] sm:$0xf]
  %v76 = vld [vmem:[%s3 + $0x1c] sm:$0xf]
  %v77 = vld [vmem:[%s3 + $0x20] sm:$0xf]
  %v78 = vld [vmem:[%s3 + $0x24] sm:$0xf]
  %v79 = vld [vmem:[%s3 + $0x28] sm:$0xf]
  %v80 = vld [vmem:[%s3 + $0x2c] sm:$0xf]
  %v81 = vld [vmem:[%s3 + $0x30] sm:$0xf]
  %v82 = vld [vmem:[%s3 + $0x34] sm:$0xf]
  %v83 = vld [vmem:[%s3 + $0x38] sm:$0xf]
  %v84 = vld [vmem:[%s3 + $0x3c] sm:$0xf]
  %v101 = vunpack.c.l.b16 %v53
  %v102 = vunpack.c.l.b16 %v54
  %v103 = vunpack.c.l.b16 %v55
  %v104 = vunpack.c.l.b16 %v56
  %v105 = vunpack.c.l.b16 %v57
  %v106 = vunpack.c.l.b16 %v58
  %v107 = vunpack.c.l.b16 %v59
  %v108 = vunpack.c.l.b16 %v60
  %v109 = vunpack.c.l.b16 %v61
  %v110 = vunpack.c.l.b16 %v62
  %v111 = vunpack.c.l.b16 %v63
  %v112 = vunpack.c.l.b16 %v64
  %v113 = vunpack.c.l.b16 %v65
  %v114 = vunpack.c.l.b16 %v66
  %v115 = vunpack.c.l.b16 %v67
  %v116 = vunpack.c.l.b16 %v68
  %v117 = vpack.c.b16 %v102, %v101
  %v118 = vpack.c.b16 %v104, %v103
  %v119 = vpack.c.b16 %v106, %v105
  %v120 = vpack.c.b16 %v108, %v107
  %v121 = vpack.c.b16 %v110, %v109
  %v122 = vpack.c.b16 %v112, %v111
  %v123 = vpack.c.b16 %v114, %v113
  %v124 = vpack.c.b16 %v116, %v115
  %v149 = vunpack.c.l.b16 %v69
  %v150 = vunpack.c.l.b16 %v70
  %v151 = vunpack.c.l.b16 %v71
  %v152 = vunpack.c.l.b16 %v72
  %v153 = vunpack.c.l.b16 %v73
  %v154 = vunpack.c.l.b16 %v74
  %v155 = vunpack.c.l.b16 %v75
  %v156 = vunpack.c.l.b16 %v76
  %v157 = vunpack.c.l.b16 %v77
  %v158 = vunpack.c.l.b16 %v78
  %v159 = vunpack.c.l.b16 %v79
  %v160 = vunpack.c.l.b16 %v80
  %v161 = vunpack.c.l.b16 %v81
  %v162 = vunpack.c.l.b16 %v82
  %v163 = vunpack.c.l.b16 %v83
  %v164 = vunpack.c.l.b16 %v84
  %v165 = vpack.c.b16 %v150, %v149
  %v166 = vpack.c.b16 %v152, %v151
  %v167 = vpack.c.b16 %v154, %v153
  %v168 = vpack.c.b16 %v156, %v155
  %v169 = vpack.c.b16 %v158, %v157
  %v170 = vpack.c.b16 %v160, %v159
  %v171 = vpack.c.b16 %v162, %v161
  %v172 = vpack.c.b16 %v164, %v163
  %181 = vmatprep.subr.bf16.mxu0 0
  %182 = vmatpush1.bf16.msra.mxu0 %v165
  %183 = vmatprep.subr.bf16.mxu0 0
  %184 = vmatpush1.bf16.msra.mxu0 %v166
  %185 = vmatprep.subr.bf16.mxu0 0
  %186 = vmatpush1.bf16.msra.mxu0 %v167
  %187 = vmatprep.subr.bf16.mxu0 0
  %188 = vmatpush1.bf16.msra.mxu0 %v168
  %189 = vmatprep.subr.bf16.mxu0 0
  %190 = vmatpush1.bf16.msra.mxu0 %v169
  %191 = vmatprep.subr.bf16.mxu0 0
  %192 = vmatpush1.bf16.msra.mxu0 %v170
  %193 = vmatprep.subr.bf16.mxu0 0
  %194 = vmatpush1.bf16.msra.mxu0 %v171
  %195 = vmatprep.subr.bf16.mxu0 0
  %196 = vmatpush1.bf16.msra.mxu0 %v172
  %197 = vmatprep.subr.bf16.mxu0 0
  %198 = vmatpush1.bf16.msra.mxu0 0
  %199 = vmatprep.subr.bf16.mxu0 0
  %200 = vmatpush1.bf16.msra.mxu0 0
  %201 = vmatprep.subr.bf16.mxu0 0
  %202 = vmatpush1.bf16.msra.mxu0 0
  %203 = vmatprep.subr.bf16.mxu0 0
  %204 = vmatpush1.bf16.msra.mxu0 0
  %205 = vmatprep.subr.bf16.mxu0 0
  %206 = vmatpush1.bf16.msra.mxu0 0
  %207 = vmatprep.subr.bf16.mxu0 0
  %208 = vmatpush1.bf16.msra.mxu0 0
  %209 = vmatprep.subr.bf16.mxu0 0
  %210 = vmatpush1.bf16.msra.mxu0 0
  %211 = vmatprep.subr.bf16.mxu0 0
  %212 = vmatpush1.bf16.msra.mxu0 0
  %213 = vmatprep.mubr.bf16.mxu0 0
  %214 = vmatmul.mubr.bf16.gmra.mrb[0].mxu0 %v117
  %v215 = vpop.f32.mrb[0].mxu0
  %v216 = vadd.f32 0.0, %v215
  %v217 = vpop.f32.mrb[0].mxu0
  %v218 = vpop.f32.mrb[0].mxu0
  %v219 = vadd.f32 0.0, %v218
  %v220 = vpop.f32.mrb[0].mxu0
  %221 = vmatprep.mubr.bf16.mxu0 0
  %222 = vmatmul.mubr.bf16.gmra.mrb[0].mxu0 %v118
  %v223 = vpop.f32.mrb[0].mxu0
  %v224 = vadd.f32 0.0, %v223
  %v225 = vpop.f32.mrb[0].mxu0
  %v226 = vpop.f32.mrb[0].mxu0
  %v227 = vadd.f32 0.0, %v226
  %v228 = vpop.f32.mrb[0].mxu0
  %229 = vmatprep.mubr.bf16.mxu0 0
  %230 = vmatmul.mubr.bf16.gmra.mrb[0].mxu0 %v119
  %v231 = vpop.f32.mrb[0].mxu0
  %v232 = vadd.f32 0.0, %v231
  %v233 = vpop.f32.mrb[0].mxu0
  %v234 = vpop.f32.mrb[0].mxu0
  %v235 = vadd.f32 0.0, %v234
  %v236 = vpop.f32.mrb[0].mxu0
  %237 = vmatprep.mubr.bf16.mxu0 0
  %238 = vmatmul.mubr.bf16.gmra.mrb[0].mxu0 %v120
  %v239 = vpop.f32.mrb[0].mxu0
  %v240 = vadd.f32 0.0, %v239
  %v241 = vpop.f32.mrb[0].mxu0
  %v242 = vpop.f32.mrb[0].mxu0
  %v243 = vadd.f32 0.0, %v242
  %v244 = vpop.f32.mrb[0].mxu0
  %245 = vmatprep.mubr.bf16.mxu0 0
  %246 = vmatmul.mubr.bf16.gmra.mrb[0].mxu0 %v121
  %v247 = vpop.f32.mrb[0].mxu0
  %v248 = vadd.f32 0.0, %v247
  %v249 = vpop.f32.mrb[0].mxu0
  %v250 = vpop.f32.mrb[0].mxu0
  %v251 = vadd.f32 0.0, %v250
  %v252 = vpop.f32.mrb[0].mxu0
  %253 = vmatprep.mubr.bf16.mxu0 0
  %254 = vmatmul.mubr.bf16.gmra.mrb[0].mxu0 %v122
  %v255 = vpop.f32.mrb[0].mxu0
  %v256 = vadd.f32 0.0, %v255
  %v257 = vpop.f32.mrb[0].mxu0
  %v258 = vpop.f32.mrb[0].mxu0
  %v259 = vadd.f32 0.0, %v258
  %v260 = vpop.f32.mrb[0].mxu0
  %261 = vmatprep.mubr.bf16.mxu0 0
  %262 = vmatmul.mubr.bf16.gmra.mrb[0].mxu0 %v123
  %v263 = vpop.f32.mrb[0].mxu0
  %v264 = vadd.f32 0.0, %v263
  %v265 = vpop.f32.mrb[0].mxu0
  %v266 = vpop.f32.mrb[0].mxu0
  %v267 = vadd.f32 0.0, %v266
  %v268 = vpop.f32.mrb[0].mxu0
  %269 = vmatprep.mubr.bf16.mxu0 0
  %270 = vmatmul.mubr.bf16.gmra.mrb[0].mxu0 %v124
  %v271 = vpop.f32.mrb[0].mxu0
  %v272 = vadd.f32 0.0, %v271
  %v273 = vpop.f32.mrb[0].mxu0
  %v274 = vpop.f32.mrb[0].mxu0
  %v275 = vadd.f32 0.0, %v274
  %v276 = vpop.f32.mrb[0].mxu0
  %277 = vdwg.mxu0
  %v294 = vunpack.c.l.b16 %v21
  %v295 = vunpack.c.l.b16 %v22
  %v296 = vunpack.c.l.b16 %v23
  %v297 = vunpack.c.l.b16 %v24
  %v298 = vunpack.c.l.b16 %v25
  %v299 = vunpack.c.l.b16 %v26
  %v300 = vunpack.c.l.b16 %v27
  %v301 = vunpack.c.l.b16 %v28
  %v302 = vunpack.c.l.b16 %v29
  %v303 = vunpack.c.l.b16 %v30
  %v304 = vunpack.c.l.b16 %v31
  %v305 = vunpack.c.l.b16 %v32
  %v306 = vunpack.c.l.b16 %v33
  %v307 = vunpack.c.l.b16 %v34
  %v308 = vunpack.c.l.b16 %v35
  %v309 = vunpack.c.l.b16 %v36
  %v310 = vpack.c.b16 %v295, %v294
  %v311 = vpack.c.b16 %v297, %v296
  %v312 = vpack.c.b16 %v299, %v298
  %v313 = vpack.c.b16 %v301, %v300
  %v314 = vpack.c.b16 %v303, %v302
  %v315 = vpack.c.b16 %v305, %v304
  %v316 = vpack.c.b16 %v307, %v306
  %v317 = vpack.c.b16 %v309, %v308
  %v342 = vunpack.c.l.b16 %v37
  %v343 = vunpack.c.l.b16 %v38
  %v344 = vunpack.c.l.b16 %v39
  %v345 = vunpack.c.l.b16 %v40
  %v346 = vunpack.c.l.b16 %v41
  %v347 = vunpack.c.l.b16 %v42
  %v348 = vunpack.c.l.b16 %v43
  %v349 = vunpack.c.l.b16 %v44
  %v350 = vunpack.c.l.b16 %v45
  %v351 = vunpack.c.l.b16 %v46
  %v352 = vunpack.c.l.b16 %v47
  %v353 = vunpack.c.l.b16 %v48
  %v354 = vunpack.c.l.b16 %v49
  %v355 = vunpack.c.l.b16 %v50
  %v356 = vunpack.c.l.b16 %v51
  %v357 = vunpack.c.l.b16 %v52
  %v358 = vpack.c.b16 %v343, %v342
  %v359 = vpack.c.b16 %v345, %v344
  %v360 = vpack.c.b16 %v347, %v346
  %v361 = vpack.c.b16 %v349, %v348
  %v362 = vpack.c.b16 %v351, %v350
  %v363 = vpack.c.b16 %v353, %v352
  %v364 = vpack.c.b16 %v355, %v354
  %v365 = vpack.c.b16 %v357, %v356
  %374 = vmatprep.subr.bf16.mxu0 0
  %375 = vmatpush1.bf16.msra.mxu0 %v358
  %376 = vmatprep.subr.bf16.mxu0 0
  %377 = vmatpush1.bf16.msra.mxu0 %v359
  %378 = vmatprep.subr.bf16.mxu0 0
  %379 = vmatpush1.bf16.msra.mxu0 %v360
  %380 = vmatprep.subr.bf16.mxu0 0
  %381 = vmatpush1.bf16.msra.mxu0 %v361
  %382 = vmatprep.subr.bf16.mxu0 0
  %383 = vmatpush1.bf16.msra.mxu0 %v362
  %384 = vmatprep.subr.bf16.mxu0 0
  %385 = vmatpush1.bf16.msra.mxu0 %v363
  %386 = vmatprep.subr.bf16.mxu0 0
  %387 = vmatpush1.bf16.msra.mxu0 %v364
  %388 = vmatprep.subr.bf16.mxu0 0
  %389 = vmatpush1.bf16.msra.mxu0 %v365
  %390 = vmatprep.subr.bf16.mxu0 0
  %391 = vmatpush1.bf16.msra.mxu0 0
  %392 = vmatprep.subr.bf16.mxu0 0
  %393 = vmatpush1.bf16.msra.mxu0 0
  %394 = vmatprep.subr.bf16.mxu0 0
  %395 = vmatpush1.bf16.msra.mxu0 0
  %396 = vmatprep.subr.bf16.mxu0 0
  %397 = vmatpush1.bf16.msra.mxu0 0
  %398 = vmatprep.subr.bf16.mxu0 0
  %399 = vmatpush1.bf16.msra.mxu0 0
  %400 = vmatprep.subr.bf16.mxu0 0
  %401 = vmatpush1.bf16.msra.mxu0 0
  %402 = vmatprep.subr.bf16.mxu0 0
  %403 = vmatpush1.bf16.msra.mxu0 0
  %404 = vmatprep.subr.bf16.mxu0 0
  %405 = vmatpush1.bf16.msra.mxu0 0
  %406 = vmatprep.mubr.bf16.mxu0 0
  %407 = vmatmul.mubr.bf16.gmra.mrb[0].mxu0 %v310
  %v408 = vpop.f32.mrb[0].mxu0
  %v409 = vadd.f32 %v216, %v408
  %v410 = vpop.f32.mrb[0].mxu0
  %v411 = vpop.f32.mrb[0].mxu0
  %v412 = vadd.f32 %v219, %v411
  %v413 = vpop.f32.mrb[0].mxu0
  %414 = vmatprep.mubr.bf16.mxu0 0
  %415 = vmatmul.mubr.bf16.gmra.mrb[0].mxu0 %v311
  %v416 = vpop.f32.mrb[0].mxu0
  %v417 = vadd.f32 %v224, %v416
  %v418 = vpop.f32.mrb[0].mxu0
  %v419 = vpop.f32.mrb[0].mxu0
  %v420 = vadd.f32 %v227, %v419
  %v421 = vpop.f32.mrb[0].mxu0
  %422 = vmatprep.mubr.bf16.mxu0 0
  %423 = vmatmul.mubr.bf16.gmra.mrb[0].mxu0 %v312
  %v424 = vpop.f32.mrb[0].mxu0
  %v425 = vadd.f32 %v232, %v424
  %v426 = vpop.f32.mrb[0].mxu0
  %v427 = vpop.f32.mrb[0].mxu0
  %v428 = vadd.f32 %v235, %v427
  %v429 = vpop.f32.mrb[0].mxu0
  %430 = vmatprep.mubr.bf16.mxu0 0
  %431 = vmatmul.mubr.bf16.gmra.mrb[0].mxu0 %v313
  %v432 = vpop.f32.mrb[0].mxu0
  %v433 = vadd.f32 %v240, %v432
  %v434 = vpop.f32.mrb[0].mxu0
  %v435 = vpop.f32.mrb[0].mxu0
  %v436 = vadd.f32 %v243, %v435
  %v437 = vpop.f32.mrb[0].mxu0
  %438 = vmatprep.mubr.bf16.mxu0 0
  %439 = vmatmul.mubr.bf16.gmra.mrb[0].mxu0 %v314
  %v440 = vpop.f32.mrb[0].mxu0
  %v441 = vadd.f32 %v248, %v440
  %v442 = vpop.f32.mrb[0].mxu0
  %v443 = vpop.f32.mrb[0].mxu0
  %v444 = vadd.f32 %v251, %v443
  %v445 = vpop.f32.mrb[0].mxu0
  %446 = vmatprep.mubr.bf16.mxu0 0
  %447 = vmatmul.mubr.bf16.gmra.mrb[0].mxu0 %v315
  %v448 = vpop.f32.mrb[0].mxu0
  %v449 = vadd.f32 %v256, %v448
  %v450 = vpop.f32.mrb[0].mxu0
  %v451 = vpop.f32.mrb[0].mxu0
  %v452 = vadd.f32 %v259, %v451
  %v453 = vpop.f32.mrb[0].mxu0
  %454 = vmatprep.mubr.bf16.mxu0 0
  %455 = vmatmul.mubr.bf16.gmra.mrb[0].mxu0 %v316
  %v456 = vpop.f32.mrb[0].mxu0
  %v457 = vadd.f32 %v264, %v456
  %v458 = vpop.f32.mrb[0].mxu0
  %v459 = vpop.f32.mrb[0].mxu0
  %v460 = vadd.f32 %v267, %v459
  %v461 = vpop.f32.mrb[0].mxu0
  %462 = vmatprep.mubr.bf16.mxu0 0
  %463 = vmatmul.mubr.bf16.gmra.mrb[0].mxu0 %v317
  %v464 = vpop.f32.mrb[0].mxu0
  %v465 = vadd.f32 %v272, %v464
  %v466 = vpop.f32.mrb[0].mxu0
  %v467 = vpop.f32.mrb[0].mxu0
  %v468 = vadd.f32 %v275, %v467
  %v469 = vpop.f32.mrb[0].mxu0
  %470 = vdwg.mxu0
  %v471 = vld [vmem:[%s4] sm:$0x1]
  %v473 = vlaneseq
  %v474 = vshrl.u32 %v473, 7
  %v475 = vsub.s32 0, %v474
  %v476 = vrot.slane %v471, %v475
  %v478 = vadd.f32 %v409, %v476
  %v479 = vadd.f32 %v412, %v476
  %v480 = vadd.f32 %v417, %v476
  %v481 = vadd.f32 %v420, %v476
  %v482 = vadd.f32 %v425, %v476
  %v483 = vadd.f32 %v428, %v476
  %v484 = vadd.f32 %v433, %v476
  %v485 = vadd.f32 %v436, %v476
  %v486 = vadd.f32 %v441, %v476
  %v487 = vadd.f32 %v444, %v476
  %v488 = vadd.f32 %v449, %v476
  %v489 = vadd.f32 %v452, %v476
  %v490 = vadd.f32 %v457, %v476
  %v491 = vadd.f32 %v460, %v476
  %v492 = vadd.f32 %v465, %v476
  %v493 = vadd.f32 %v468, %v476
  %v494 = vmax.f32 %v478, 0.0
  %v495 = vmax.f32 %v479, 0.0
  %v496 = vmax.f32 %v480, 0.0
  %v497 = vmax.f32 %v481, 0.0
  %v498 = vmax.f32 %v482, 0.0
  %v499 = vmax.f32 %v483, 0.0
  %v500 = vmax.f32 %v484, 0.0
  %v501 = vmax.f32 %v485, 0.0
  %v502 = vmax.f32 %v486, 0.0
  %v503 = vmax.f32 %v487, 0.0
  %v504 = vmax.f32 %v488, 0.0
  %v505 = vmax.f32 %v489, 0.0
  %v506 = vmax.f32 %v490, 0.0
  %v507 = vmax.f32 %v491, 0.0
  %v508 = vmax.f32 %v492, 0.0
  %v509 = vmax.f32 %v493, 0.0
  %v510 = vpack.c.bf16 %v495, %v494
  %v511 = vpack.c.bf16 %v497, %v496
  %v512 = vpack.c.bf16 %v499, %v498
  %v513 = vpack.c.bf16 %v501, %v500
  %v514 = vpack.c.bf16 %v503, %v502
  %v515 = vpack.c.bf16 %v505, %v504
  %v516 = vpack.c.bf16 %v507, %v506
  %v517 = vpack.c.bf16 %v509, %v508
  %v526 = vunpack.c.l.b16 %v510
  %v527 = vunpack.c.h.b16 %v510
  %v528 = vunpack.c.l.b16 %v511
  %v529 = vunpack.c.h.b16 %v511
  %v530 = vunpack.c.l.b16 %v512
  %v531 = vunpack.c.h.b16 %v512
  %v532 = vunpack.c.l.b16 %v513
  %v533 = vunpack.c.h.b16 %v513
  %v534 = vunpack.c.l.b16 %v514
  %v535 = vunpack.c.h.b16 %v514
  %v536 = vunpack.c.l.b16 %v515
  %v537 = vunpack.c.h.b16 %v515
  %v538 = vunpack.c.l.b16 %v516
  %v539 = vunpack.c.h.b16 %v516
  %v540 = vunpack.c.l.b16 %v517
  %v541 = vunpack.c.h.b16 %v517
  %v542 = vpack.c.b16 %v526, %v526
  %v543 = vpack.c.b16 %v527, %v527
  %v544 = vpack.c.b16 %v528, %v528
  %v545 = vpack.c.b16 %v529, %v529
  %v546 = vpack.c.b16 %v530, %v530
  %v547 = vpack.c.b16 %v531, %v531
  %v548 = vpack.c.b16 %v532, %v532
  %v549 = vpack.c.b16 %v533, %v533
  %v550 = vpack.c.b16 %v534, %v534
  %v551 = vpack.c.b16 %v535, %v535
  %v552 = vpack.c.b16 %v536, %v536
  %v553 = vpack.c.b16 %v537, %v537
  %v554 = vpack.c.b16 %v538, %v538
  %v555 = vpack.c.b16 %v539, %v539
  %v556 = vpack.c.b16 %v540, %v540
  %v557 = vpack.c.b16 %v541, %v541
  %574 = vst [vmem:[%s5] sm:$0xf] %v542
  %575 = vst [vmem:[%s5 + $0x4] sm:$0xf] %v543
  %576 = vst [vmem:[%s5 + $0x8] sm:$0xf] %v544
  %577 = vst [vmem:[%s5 + $0xc] sm:$0xf] %v545
  %578 = vst [vmem:[%s5 + $0x10] sm:$0xf] %v546
  %579 = vst [vmem:[%s5 + $0x14] sm:$0xf] %v547
  %580 = vst [vmem:[%s5 + $0x18] sm:$0xf] %v548
  %581 = vst [vmem:[%s5 + $0x1c] sm:$0xf] %v549
  %582 = vst [vmem:[%s5 + $0x20] sm:$0xf] %v550
  %583 = vst [vmem:[%s5 + $0x24] sm:$0xf] %v551
  %584 = vst [vmem:[%s5 + $0x28] sm:$0xf] %v552
  %585 = vst [vmem:[%s5 + $0x2c] sm:$0xf] %v553
  %586 = vst [vmem:[%s5 + $0x30] sm:$0xf] %v554
  %587 = vst [vmem:[%s5 + $0x34] sm:$0xf] %v555
  %588 = vst [vmem:[%s5 + $0x38] sm:$0xf] %v556
  %589 = vst [vmem:[%s5 + $0x3c] sm:$0xf] %v557
  // Predicated region
  $region22: #{bottleneck_forward.5} parent=0 // pred_check
    _
  $region23: #{bottleneck_forward.5} parent=0 // pred_check_branch
    %591 = sbr.rel (0) target = $region25
  $region24: #{bottleneck_forward.5} parent=0 // pred_region
    _
  $region25: #{bottleneck_forward.5} parent=0 // pred_fallthru
    _
  // Predicated region
  $region26: #{bottleneck_forward.5} parent=0 // pred_check
    _
  $region27: #{bottleneck_forward.5} parent=0 // pred_check_branch
    %593 = sbr.rel (0) target = $region29
  $region28: #{bottleneck_forward.5} parent=0 // pred_region
    _
  $region29: #{bottleneck_forward.5} parent=0 // pred_fallthru
    _

</llo_original>
